<compile_context>
chip_gen: v7x
topology: tpu7x:2x2x1
jax: 0.10.0
libtpu: 0.0.40
codegen_flags: <defaults>
</compile_context>

<pallas_src>
import functools
import numpy as np

import jax
import jax.numpy as jnp
from jax.experimental import pallas as pl
from jax.experimental.pallas import tpu as pltpu


# ----------------------------- Pallas kernel --------------------------------

def _lepe_attn_kernel(q_ref, k_ref, v_ref, w_ref, b_ref, o_ref, *,
                      scale, num_heads):
    """Fused LePE (depthwise 3x3, per-window zero pad) + windowed attention.

    q/k/v/o refs : (BH, H_sp, BW, W_sp, C) -- BH*BW windows per grid step,
                   C = num_heads*head_dim on the lane axis.
    w_ref        : (3, 3, C)  depthwise conv weight, channels-last.
    b_ref        : (1, C)     conv bias.
    """
    BH, Hs, BW, Ws, C = q_ref.shape
    D = C // num_heads
    S = Hs * Ws
    f32 = jnp.float32
    bf16 = jnp.bfloat16

    # -------- LePE: depthwise 3x3 conv, zero-padded per window --------------
    # Window edges coincide with block edges on axes 1 (H_sp) and 3 (W_sp), so
    # zero padding == zero-filled shifts.  No halo scratch, no program_id-gated
    # init -> megacore (v7x) safe with all-parallel grid axes.
    v_f32 = v_ref[...].astype(f32)
    w_f32 = w_ref[...].astype(f32)          # hoisted: 9 tap broadcasts total
    bias = b_ref[0].astype(f32)

    def _shift(x, axis, d):
        # result[..., y, ...] = x[..., y + d, ...], zero-filled out of range.
        if d == 0:
            return x
        n = x.shape[axis]
        if n == 1:
            return jnp.zeros_like(x)
        keep = [slice(None)] * x.ndim
        zero = [slice(None)] * x.ndim
        zero[axis] = slice(0, 1)
        z = jnp.zeros_like(x[tuple(zero)])
        if d > 0:
            keep[axis] = slice(1, None)
            return jnp.concatenate([x[tuple(keep)], z], axis=axis)
        keep[axis] = slice(0, n - 1)
        return jnp.concatenate([z, x[tuple(keep)]], axis=axis)

    lepe = v_f32 * w_f32[1, 1]
    for i in range(3):
        vsh = v_f32 if i == 1 else _shift(v_f32, 1, i - 1)   # H_sp axis (leading)
        for j in range(3):
            if i == 1 and j == 1:
                continue
            lepe = lepe + _shift(vsh, 3, j - 1) * w_f32[i, j]  # W_sp axis
    lepe = lepe + bias

    # -------- attention: bf16 MXU operands, f32 accumulation ----------------
    q_bf = (q_ref[...].astype(f32) * scale).astype(bf16)     # scale/cast hoisted
    k_bf = k_ref[...].astype(bf16)
    v_bf = v_ref[...].astype(bf16)

    # TODO(synk): for very large head counts / window batches a lax.fori_loop
    # with pl.ds head slices would bound unroll; static unroll is fine for
    # CSWin's <=16 heads and the small per-step window batch chosen below.
    for a in range(BH):
        for b in range(BW):
            qw = q_bf[a, :, b].reshape(S, C)
            kw = k_bf[a, :, b].reshape(S, C)
            vw = v_bf[a, :, b].reshape(S, C)
            heads = []
            for h in range(num_heads):
                lo = h * D
                s = jnp.einsum("sd,td->st", qw[:, lo:lo + D], kw[:, lo:lo + D],
                               preferred_element_type=f32)         # (S, S) f32
                s = s - jnp.max(s, axis=-1, keepdims=True)
                p = jnp.exp(s)
                den = jnp.sum(p, axis=-1, keepdims=True)
                r = pl.reciprocal(den, approx=True)
                r = r * (2.0 - den * r)          # one Newton step -> ~f32 exact
                p = (p * r).astype(bf16)
                # TODO(synk): attn_drop is nn.Dropout(0.0) -> identity; no RNG.
                heads.append(jnp.einsum("st,td->sd", p, vw[:, lo:lo + D],
                                        preferred_element_type=f32))
            attn = jnp.concatenate(heads, axis=-1)                 # (S, C) f32
            out = attn.reshape(Hs, Ws, C) + lepe[a, :, b]
            o_ref[a, :, b, :, :] = out.astype(o_ref.dtype)         # one full-C store


# ----------------------------- tiling heuristics -----------------------------

def _round_up(x, m):
    return (x + m - 1) // m * m


def _vmem_budget():
    """(tile-selection budget bytes, vmem_limit_bytes or None), per chip gen."""
    cap = None
    try:
        info = pltpu.get_tpu_info()
        for name in ("vmem_capacity_bytes", "vmem_bytes", "vmem_size_bytes"):
            val = getattr(info, name, None)
            if val:
                cap = int(val)
                break
    except Exception:
        cap = None
    if cap is None:
        return 20 << 20, None                 # unknown chip: stay conservative
    if cap >= (100 << 20):                    # v5e / v6e: 128 MiB physical VMEM
        return 48 << 20, 96 << 20
    return 22 << 20, 40 << 20                 # v7x-class: 64 MiB physical VMEM


def _block_bytes(bh, Hs, bw, Ws, C, itemsize):
    # Account for (sublane, lane) tile padding of the last two dims.
    sub = 8 * (4 // max(itemsize, 1))
    return bh * Hs * bw * _round_up(Ws, sub) * _round_up(C, 128) * itemsize


def _choose_window_batch(B, nWh, nWw, Hs, Ws, C, itemsize):
    """Windows per grid step along the larger window axis: largest divisor that
    fits the VMEM budget, keeps >= 4 grid steps (>= 2 per TensorCore on v7x)
    and a bounded unroll."""
    budget, vmem_limit = _vmem_budget()
    total = B * nWh * nWw
    axis = 0 if nWh >= nWw else 1
    count = nWh if axis == 0 else nWw
    min_steps = min(4, total)
    S = Hs * Ws
    best = 1
    for tw in range(1, min(count, 8) + 1):
        if count % tw:
            continue        # TODO(synk): ragged tail via BoundedSlice for prime counts
        if total // tw < min_steps:
            continue
        bh, bw = (tw, 1) if axis == 0 else (1, tw)
        io = 4 * 2 * _block_bytes(bh, Hs, bw, Ws, C, itemsize)   # q,k,v,o dbl-buffered
        tmp = 6 * _block_bytes(bh, Hs, bw, Ws, C, 4)             # f32/bf16 temporaries
        attn = 3 * _round_up(S, 8) * _round_up(S, 128) * 4       # per-head s / p
        if io + tmp + attn <= budget:
            best = tw
    bh, bw = (best, 1) if axis == 0 else (1, best)
    return bh, bw, vmem_limit


# ----------------------------- kernel wrapper --------------------------------

def lepe_window_attention(q, k, v, conv_w_hwc, conv_b, *, resolution, H_sp, W_sp,
                          num_heads, scale):
    """q, k, v: (B, H*W, C) -> LePE windowed attention output (B, H*W, C)."""
    B, L, C = q.shape
    H = W = resolution
    assert L == H * W and C % num_heads == 0
    nWh, nWw = H // H_sp, W // W_sp

    # Free (row-major) reshape: windows become rectangular BlockSpec tiles, so
    # no img2windows / windows2img HBM transpose passes are needed.
    shape5 = (B * nWh, H_sp, nWw, W_sp, C)
    q5, k5, v5 = q.reshape(shape5), k.reshape(shape5), v.reshape(shape5)

    itemsize = jnp.dtype(q.dtype).itemsize
    bh, bw, vmem_limit = _choose_window_batch(B, nWh, nWw, H_sp, W_sp, C, itemsize)
    grid = ((B * nWh) // bh, nWw // bw)

    x_spec = pl.BlockSpec((bh, H_sp, bw, W_sp, C), lambda i, j: (i, 0, j, 0, 0))
    w_spec = pl.BlockSpec((3, 3, C), lambda i, j: (0, 0, 0))
    b_spec = pl.BlockSpec((1, C), lambda i, j: (0, 0))

    kern = functools.partial(_lepe_attn_kernel, scale=scale, num_heads=num_heads)

    S = H_sp * W_sp
    nW = B * nWh * nWw
    D = C // num_heads
    cost = pl.CostEstimate(
        flops=int(4 * nW * num_heads * S * S * D + 18 * nW * S * C),
        transcendentals=int(nW * num_heads * S * S),
        bytes_accessed=int(4 * nW * S * C * itemsize + 10 * C * 4),
    )

    cp = dict(dimension_semantics=("parallel", "parallel"))
    if vmem_limit is not None:
        cp["vmem_limit_bytes"] = int(vmem_limit)

    out5 = pl.pallas_call(
        kern,
        out_shape=jax.ShapeDtypeStruct(shape5, q.dtype),
        grid=grid,
        in_specs=[x_spec, x_spec, x_spec, w_spec, b_spec],
        out_specs=x_spec,
        compiler_params=pltpu.CompilerParams(**cp),
        cost_estimate=cost,
    )(q5, k5, v5, conv_w_hwc, conv_b.reshape(1, C))
    return out5.reshape(B, L, C)


# ----------------------------- module (glue) --------------------------------

class LePEAttentionPallas:
    def __init__(self, dim, resolution, idx, split_size=7, dim_out=None,
                 num_heads=8, qk_scale=None, param_key=42):
        self.dim = dim
        self.dim_out = dim_out or dim
        self.resolution = resolution
        self.split_size = split_size
        self.num_heads = num_heads
        head_dim = dim // num_heads
        self.scale = qk_scale or head_dim ** (-0.5)
        if idx == -1:
            H_sp, W_sp = resolution, resolution
        elif idx == 0:
            H_sp, W_sp = resolution, split_size
        elif idx == 1:
            W_sp, H_sp = resolution, split_size
        else:
            raise ValueError("ERROR MODE %d" % idx)
        self.H_sp, self.W_sp = H_sp, W_sp

        # Depthwise conv params: nn.Conv2d(dim, dim, 3, 1, 1, groups=dim).
        # PyTorch weight shape is (dim, 1, 3, 3); stored here as (dim, 3, 3).
        kw, kb = jax.random.split(jax.random.PRNGKey(param_key))
        bound = 1.0 / np.sqrt(1 * 3 * 3)   # kaiming-uniform-style bound (fan_in=9)
        self.conv_w = jax.random.uniform(kw, (dim, 3, 3), jnp.float32, -bound, bound)
        self.conv_b = jax.random.uniform(kb, (dim,), jnp.float32, -bound, bound)

    def __call__(self, qkv):
        q, k, v = qkv[0], qkv[1], qkv[2]
        B, L, C = q.shape
        assert L == self.resolution ** 2, "flatten img_tokens has wrong size"
        weight_hwc = jnp.transpose(self.conv_w, (1, 2, 0))   # (3, 3, C) -- tiny
        return lepe_window_attention(
            q, k, v, weight_hwc, self.conv_b,
            resolution=self.resolution, H_sp=self.H_sp, W_sp=self.W_sp,
            num_heads=self.num_heads, scale=self.scale)


# ----------------------------- pure-JAX reference ---------------------------

def reference_forward(mod, qkv):
    q, k, v = qkv[0], qkv[1], qkv[2]
    H = W = mod.resolution
    B, L, C = q.shape
    Hs, Ws = mod.H_sp, mod.W_sp
    nh, D = mod.num_heads, C // mod.num_heads
    S = Hs * Ws

    def im2cswin(x):
        x = x.reshape(B, H, W, C).reshape(B, H // Hs, Hs, W // Ws, Ws, C)
        x = x.transpose(0, 1, 3, 2, 4, 5).reshape(-1, S, C)
        return x.reshape(-1, S, nh, D).transpose(0, 2, 1, 3)

    qh, kh, vh = im2cswin(q), im2cswin(k), im2cswin(v)

    # v windows in NCHW for an independent conv check via lax.conv
    v_chw = v.reshape(B, H, W, C).reshape(B, H // Hs, Hs, W // Ws, Ws, C)
    v_chw = v_chw.transpose(0, 1, 3, 5, 2, 4).reshape(-1, C, Hs, Ws)
    w = mod.conv_w[:, None, :, :]                                   # (C,1,3,3)
    lepe_chw = jax.lax.conv_general_dilated(
        v_chw, w, window_strides=(1, 1), padding=((1, 1), (1, 1)),
        dimension_numbers=("NCHW", "OIHW", "NCHW"), feature_group_count=C)
    lepe_chw = lepe_chw + mod.conv_b[None, :, None, None]
    lepe = lepe_chw.reshape(-1, nh, D, S).transpose(0, 1, 3, 2)

    attn = jnp.einsum("whsd,whtd->whst", qh * mod.scale, kh)
    attn = jax.nn.softmax(attn, axis=-1)
    xh = jnp.einsum("whst,whtd->whsd", attn, vh) + lepe

    x = xh.transpose(0, 2, 1, 3).reshape(-1, S, C)
    x = x.reshape(B, H // Hs, W // Ws, Hs, Ws, C)
    x = x.transpose(0, 1, 3, 2, 4, 5).reshape(B, H * W, C)
    return x


# --------------------------------- main --------------------------------------

if __name__ == "__main__":
    # Small shapes consistent with the module:
    #   dim=32, num_heads=4 (head_dim=8), resolution=8 (L=64), split_size=2, idx=0
    B, dim, resolution, split_size, num_heads, idx = 2, 32, 8, 2, 4, 0
    L = resolution * resolution

    key = jax.random.PRNGKey(0)
    qkv = jax.random.normal(key, (3, B, L, dim), dtype=jnp.float32)

    mod = LePEAttentionPallas(dim=dim, resolution=resolution, idx=idx,
                              split_size=split_size, num_heads=num_heads)

    out = jax.block_until_ready(mod(qkv))
    ref = jax.block_until_ready(reference_forward(mod, qkv))

    assert out.shape == (B, L, dim), out.shape
    # Tolerance sized for bf16 MXU operands (q/k/p/v) vs. the f32 reference,
    # plus the approximate (EUP) reciprocal + Newton step in the softmax denom.
    np.testing.assert_allclose(np.asarray(out), np.asarray(ref),
                               rtol=2e-2, atol=5e-2)
    print("KERNEL_OK")
</pallas_src>

<mosaic_0001>
module attributes {stable_mosaic.version = 11 : i64} {
  func.func @_lepe_attn_kernel(%arg0: i32, %arg1: i32, %arg2: memref<1x8x2x2x32xf32, #tpu.memory_space<vmem>>, %arg3: memref<1x8x2x2x32xf32, #tpu.memory_space<vmem>>, %arg4: memref<1x8x2x2x32xf32, #tpu.memory_space<vmem>>, %arg5: memref<3x3x32xf32, #tpu.memory_space<vmem>>, %arg6: memref<1x32xf32, #tpu.memory_space<vmem>>, %arg7: memref<1x8x2x2x32xf32, #tpu.memory_space<vmem>>) attributes {dimension_semantics = [#tpu.dimension_semantics<parallel>, #tpu.dimension_semantics<parallel>], iteration_bounds = array<i64: 2, 2>, scalar_prefetch = 0 : i64, scratch_operands = 0 : i64, tpu.core_type = #tpu.core_type<tc>, window_params = [{transform_indices = @transform_0, window_bounds = array<i64: 1, 8, 2, 2, 32>}, {transform_indices = @transform_1, window_bounds = array<i64: 1, 8, 2, 2, 32>}, {transform_indices = @transform_2, window_bounds = array<i64: 1, 8, 2, 2, 32>}, {pipeline_mode = #tpu.pipeline_mode<synchronous>, transform_indices = @transform_3, window_bounds = array<i64: 3, 3, 32>}, {pipeline_mode = #tpu.pipeline_mode<synchronous>, transform_indices = @transform_4, window_bounds = array<i64: 1, 32>}, {transform_indices = @transform_5, window_bounds = array<i64: 1, 8, 2, 2, 32>}]} {
    %c0 = arith.constant 0 : index
    %c0_0 = arith.constant 0 : index
    %c0_1 = arith.constant 0 : index
    %c0_2 = arith.constant 0 : index
    %c0_3 = arith.constant 0 : index
    %0 = vector.load %arg4[%c0, %c0_0, %c0_1, %c0_2, %c0_3] : memref<1x8x2x2x32xf32, #tpu.memory_space<vmem>>, vector<1x8x2x2x32xf32>
    %c0_4 = arith.constant 0 : index
    %c0_5 = arith.constant 0 : index
    %c0_6 = arith.constant 0 : index
    %1 = vector.load %arg5[%c0_4, %c0_5, %c0_6] : memref<3x3x32xf32, #tpu.memory_space<vmem>>, vector<3x3x32xf32>
    %c0_7 = arith.constant 0 : index
    %c0_8 = arith.constant 0 : index
    %2 = vector.load %arg6[%c0_7, %c0_8] : memref<1x32xf32, #tpu.memory_space<vmem>>, vector<1x32xf32>
    %3 = vector.shape_cast %2 : vector<1x32xf32> to vector<32xf32>
    %4 = vector.extract_strided_slice %1 {offsets = [1, 1, 0], sizes = [1, 1, 32], strides = [1, 1, 1]} : vector<3x3x32xf32> to vector<1x1x32xf32>
    %5 = vector.shape_cast %4 : vector<1x1x32xf32> to vector<32xf32>
    %6 = vector.shape_cast %5 : vector<32xf32> to vector<1x1x1x1x32xf32>
    %7 = vector.broadcast %6 : vector<1x1x1x1x32xf32> to vector<1x8x2x2x32xf32>
    %8 = arith.mulf %0, %7 : vector<1x8x2x2x32xf32>
    %cst = arith.constant 0.000000e+00 : f32
    %9 = vector.broadcast %cst : f32 to vector<1x1x2x2x32xf32>
    %10 = vector.extract_strided_slice %0 {offsets = [0, 0, 0, 0, 0], sizes = [1, 7, 2, 2, 32], strides = [1, 1, 1, 1, 1]} : vector<1x8x2x2x32xf32> to vector<1x7x2x2x32xf32>
    %11 = tpu.concatenate %9, %10 in 1 : vector<1x1x2x2x32xf32>, vector<1x7x2x2x32xf32> -> vector<1x8x2x2x32xf32>
    %cst_9 = arith.constant 0.000000e+00 : f32
    %12 = vector.broadcast %cst_9 : f32 to vector<1x8x2x1x32xf32>
    %13 = vector.extract_strided_slice %11 {offsets = [0, 0, 0, 0, 0], sizes = [1, 8, 2, 1, 32], strides = [1, 1, 1, 1, 1]} : vector<1x8x2x2x32xf32> to vector<1x8x2x1x32xf32>
    %14 = tpu.concatenate %12, %13 in 3 : vector<1x8x2x1x32xf32>, vector<1x8x2x1x32xf32> -> vector<1x8x2x2x32xf32>
    %15 = vector.extract_strided_slice %1 {offsets = [0, 0, 0], sizes = [1, 1, 32], strides = [1, 1, 1]} : vector<3x3x32xf32> to vector<1x1x32xf32>
    %16 = vector.shape_cast %15 : vector<1x1x32xf32> to vector<32xf32>
    %17 = vector.shape_cast %16 : vector<32xf32> to vector<1x1x1x1x32xf32>
    %18 = vector.broadcast %17 : vector<1x1x1x1x32xf32> to vector<1x8x2x2x32xf32>
    %19 = arith.mulf %14, %18 : vector<1x8x2x2x32xf32>
    %20 = arith.addf %8, %19 : vector<1x8x2x2x32xf32>
    %21 = vector.extract_strided_slice %1 {offsets = [0, 1, 0], sizes = [1, 1, 32], strides = [1, 1, 1]} : vector<3x3x32xf32> to vector<1x1x32xf32>
    %22 = vector.shape_cast %21 : vector<1x1x32xf32> to vector<32xf32>
    %23 = vector.shape_cast %22 : vector<32xf32> to vector<1x1x1x1x32xf32>
    %24 = vector.broadcast %23 : vector<1x1x1x1x32xf32> to vector<1x8x2x2x32xf32>
    %25 = arith.mulf %11, %24 : vector<1x8x2x2x32xf32>
    %26 = arith.addf %20, %25 : vector<1x8x2x2x32xf32>
    %cst_10 = arith.constant 0.000000e+00 : f32
    %27 = vector.broadcast %cst_10 : f32 to vector<1x8x2x1x32xf32>
    %28 = vector.extract_strided_slice %11 {offsets = [0, 0, 0, 1, 0], sizes = [1, 8, 2, 1, 32], strides = [1, 1, 1, 1, 1]} : vector<1x8x2x2x32xf32> to vector<1x8x2x1x32xf32>
    %29 = tpu.concatenate %28, %27 in 3 : vector<1x8x2x1x32xf32>, vector<1x8x2x1x32xf32> -> vector<1x8x2x2x32xf32>
    %30 = vector.extract_strided_slice %1 {offsets = [0, 2, 0], sizes = [1, 1, 32], strides = [1, 1, 1]} : vector<3x3x32xf32> to vector<1x1x32xf32>
    %31 = vector.shape_cast %30 : vector<1x1x32xf32> to vector<32xf32>
    %32 = vector.shape_cast %31 : vector<32xf32> to vector<1x1x1x1x32xf32>
    %33 = vector.broadcast %32 : vector<1x1x1x1x32xf32> to vector<1x8x2x2x32xf32>
    %34 = arith.mulf %29, %33 : vector<1x8x2x2x32xf32>
    %35 = arith.addf %26, %34 : vector<1x8x2x2x32xf32>
    %cst_11 = arith.constant 0.000000e+00 : f32
    %36 = vector.broadcast %cst_11 : f32 to vector<1x8x2x1x32xf32>
    %37 = vector.extract_strided_slice %0 {offsets = [0, 0, 0, 0, 0], sizes = [1, 8, 2, 1, 32], strides = [1, 1, 1, 1, 1]} : vector<1x8x2x2x32xf32> to vector<1x8x2x1x32xf32>
    %38 = tpu.concatenate %36, %37 in 3 : vector<1x8x2x1x32xf32>, vector<1x8x2x1x32xf32> -> vector<1x8x2x2x32xf32>
    %39 = vector.extract_strided_slice %1 {offsets = [1, 0, 0], sizes = [1, 1, 32], strides = [1, 1, 1]} : vector<3x3x32xf32> to vector<1x1x32xf32>
    %40 = vector.shape_cast %39 : vector<1x1x32xf32> to vector<32xf32>
    %41 = vector.shape_cast %40 : vector<32xf32> to vector<1x1x1x1x32xf32>
    %42 = vector.broadcast %41 : vector<1x1x1x1x32xf32> to vector<1x8x2x2x32xf32>
    %43 = arith.mulf %38, %42 : vector<1x8x2x2x32xf32>
    %44 = arith.addf %35, %43 : vector<1x8x2x2x32xf32>
    %cst_12 = arith.constant 0.000000e+00 : f32
    %45 = vector.broadcast %cst_12 : f32 to vector<1x8x2x1x32xf32>
    %46 = vector.extract_strided_slice %0 {offsets = [0, 0, 0, 1, 0], sizes = [1, 8, 2, 1, 32], strides = [1, 1, 1, 1, 1]} : vector<1x8x2x2x32xf32> to vector<1x8x2x1x32xf32>
    %47 = tpu.concatenate %46, %45 in 3 : vector<1x8x2x1x32xf32>, vector<1x8x2x1x32xf32> -> vector<1x8x2x2x32xf32>
    %48 = vector.extract_strided_slice %1 {offsets = [1, 2, 0], sizes = [1, 1, 32], strides = [1, 1, 1]} : vector<3x3x32xf32> to vector<1x1x32xf32>
    %49 = vector.shape_cast %48 : vector<1x1x32xf32> to vector<32xf32>
    %50 = vector.shape_cast %49 : vector<32xf32> to vector<1x1x1x1x32xf32>
    %51 = vector.broadcast %50 : vector<1x1x1x1x32xf32> to vector<1x8x2x2x32xf32>
    %52 = arith.mulf %47, %51 : vector<1x8x2x2x32xf32>
    %53 = arith.addf %44, %52 : vector<1x8x2x2x32xf32>
    %cst_13 = arith.constant 0.000000e+00 : f32
    %54 = vector.broadcast %cst_13 : f32 to vector<1x1x2x2x32xf32>
    %55 = vector.extract_strided_slice %0 {offsets = [0, 1, 0, 0, 0], sizes = [1, 7, 2, 2, 32], strides = [1, 1, 1, 1, 1]} : vector<1x8x2x2x32xf32> to vector<1x7x2x2x32xf32>
    %56 = tpu.concatenate %55, %54 in 1 : vector<1x7x2x2x32xf32>, vector<1x1x2x2x32xf32> -> vector<1x8x2x2x32xf32>
    %cst_14 = arith.constant 0.000000e+00 : f32
    %57 = vector.broadcast %cst_14 : f32 to vector<1x8x2x1x32xf32>
    %58 = vector.extract_strided_slice %56 {offsets = [0, 0, 0, 0, 0], sizes = [1, 8, 2, 1, 32], strides = [1, 1, 1, 1, 1]} : vector<1x8x2x2x32xf32> to vector<1x8x2x1x32xf32>
    %59 = tpu.concatenate %57, %58 in 3 : vector<1x8x2x1x32xf32>, vector<1x8x2x1x32xf32> -> vector<1x8x2x2x32xf32>
    %60 = vector.extract_strided_slice %1 {offsets = [2, 0, 0], sizes = [1, 1, 32], strides = [1, 1, 1]} : vector<3x3x32xf32> to vector<1x1x32xf32>
    %61 = vector.shape_cast %60 : vector<1x1x32xf32> to vector<32xf32>
    %62 = vector.shape_cast %61 : vector<32xf32> to vector<1x1x1x1x32xf32>
    %63 = vector.broadcast %62 : vector<1x1x1x1x32xf32> to vector<1x8x2x2x32xf32>
    %64 = arith.mulf %59, %63 : vector<1x8x2x2x32xf32>
    %65 = arith.addf %53, %64 : vector<1x8x2x2x32xf32>
    %66 = vector.extract_strided_slice %1 {offsets = [2, 1, 0], sizes = [1, 1, 32], strides = [1, 1, 1]} : vector<3x3x32xf32> to vector<1x1x32xf32>
    %67 = vector.shape_cast %66 : vector<1x1x32xf32> to vector<32xf32>
    %68 = vector.shape_cast %67 : vector<32xf32> to vector<1x1x1x1x32xf32>
    %69 = vector.broadcast %68 : vector<1x1x1x1x32xf32> to vector<1x8x2x2x32xf32>
    %70 = arith.mulf %56, %69 : vector<1x8x2x2x32xf32>
    %71 = arith.addf %65, %70 : vector<1x8x2x2x32xf32>
    %cst_15 = arith.constant 0.000000e+00 : f32
    %72 = vector.broadcast %cst_15 : f32 to vector<1x8x2x1x32xf32>
    %73 = vector.extract_strided_slice %56 {offsets = [0, 0, 0, 1, 0], sizes = [1, 8, 2, 1, 32], strides = [1, 1, 1, 1, 1]} : vector<1x8x2x2x32xf32> to vector<1x8x2x1x32xf32>
    %74 = tpu.concatenate %73, %72 in 3 : vector<1x8x2x1x32xf32>, vector<1x8x2x1x32xf32> -> vector<1x8x2x2x32xf32>
    %75 = vector.extract_strided_slice %1 {offsets = [2, 2, 0], sizes = [1, 1, 32], strides = [1, 1, 1]} : vector<3x3x32xf32> to vector<1x1x32xf32>
    %76 = vector.shape_cast %75 : vector<1x1x32xf32> to vector<32xf32>
    %77 = vector.shape_cast %76 : vector<32xf32> to vector<1x1x1x1x32xf32>
    %78 = vector.broadcast %77 : vector<1x1x1x1x32xf32> to vector<1x8x2x2x32xf32>
    %79 = arith.mulf %74, %78 : vector<1x8x2x2x32xf32>
    %80 = arith.addf %71, %79 : vector<1x8x2x2x32xf32>
    %81 = vector.shape_cast %3 : vector<32xf32> to vector<1x1x1x1x32xf32>
    %82 = vector.broadcast %81 : vector<1x1x1x1x32xf32> to vector<1x8x2x2x32xf32>
    %83 = arith.addf %80, %82 : vector<1x8x2x2x32xf32>
    %c0_16 = arith.constant 0 : index
    %c0_17 = arith.constant 0 : index
    %c0_18 = arith.constant 0 : index
    %c0_19 = arith.constant 0 : index
    %c0_20 = arith.constant 0 : index
    %84 = vector.load %arg2[%c0_16, %c0_17, %c0_18, %c0_19, %c0_20] : memref<1x8x2x2x32xf32, #tpu.memory_space<vmem>>, vector<1x8x2x2x32xf32>
    %cst_21 = arith.constant 0.353553385 : f32
    %85 = vector.broadcast %cst_21 : f32 to vector<1x8x2x2x32xf32>
    %86 = arith.mulf %84, %85 : vector<1x8x2x2x32xf32>
    %87 = arith.truncf %86 : vector<1x8x2x2x32xf32> to vector<1x8x2x2x32xbf16>
    %c0_22 = arith.constant 0 : index
    %c0_23 = arith.constant 0 : index
    %c0_24 = arith.constant 0 : index
    %c0_25 = arith.constant 0 : index
    %c0_26 = arith.constant 0 : index
    %88 = vector.load %arg3[%c0_22, %c0_23, %c0_24, %c0_25, %c0_26] : memref<1x8x2x2x32xf32, #tpu.memory_space<vmem>>, vector<1x8x2x2x32xf32>
    %89 = arith.truncf %88 : vector<1x8x2x2x32xf32> to vector<1x8x2x2x32xbf16>
    %c0_27 = arith.constant 0 : index
    %c0_28 = arith.constant 0 : index
    %c0_29 = arith.constant 0 : index
    %c0_30 = arith.constant 0 : index
    %c0_31 = arith.constant 0 : index
    %90 = vector.load %arg4[%c0_27, %c0_28, %c0_29, %c0_30, %c0_31] : memref<1x8x2x2x32xf32, #tpu.memory_space<vmem>>, vector<1x8x2x2x32xf32>
    %91 = arith.truncf %90 : vector<1x8x2x2x32xf32> to vector<1x8x2x2x32xbf16>
    %92 = vector.extract_strided_slice %87 {offsets = [0, 0, 0, 0, 0], sizes = [1, 8, 1, 2, 32], strides = [1, 1, 1, 1, 1]} : vector<1x8x2x2x32xbf16> to vector<1x8x1x2x32xbf16>
    %93 = vector.shape_cast %92 : vector<1x8x1x2x32xbf16> to vector<8x2x32xbf16>
    %94 = vector.shape_cast %93 : vector<8x2x32xbf16> to vector<16x32xbf16>
    %95 = vector.extract_strided_slice %89 {offsets = [0, 0, 0, 0, 0], sizes = [1, 8, 1, 2, 32], strides = [1, 1, 1, 1, 1]} : vector<1x8x2x2x32xbf16> to vector<1x8x1x2x32xbf16>
    %96 = vector.shape_cast %95 : vector<1x8x1x2x32xbf16> to vector<8x2x32xbf16>
    %97 = vector.shape_cast %96 : vector<8x2x32xbf16> to vector<16x32xbf16>
    %98 = vector.extract_strided_slice %91 {offsets = [0, 0, 0, 0, 0], sizes = [1, 8, 1, 2, 32], strides = [1, 1, 1, 1, 1]} : vector<1x8x2x2x32xbf16> to vector<1x8x1x2x32xbf16>
    %99 = vector.shape_cast %98 : vector<1x8x1x2x32xbf16> to vector<8x2x32xbf16>
    %100 = vector.shape_cast %99 : vector<8x2x32xbf16> to vector<16x32xbf16>
    %101 = vector.extract_strided_slice %94 {offsets = [0, 0], sizes = [16, 8], strides = [1, 1]} : vector<16x32xbf16> to vector<16x8xbf16>
    %102 = vector.extract_strided_slice %97 {offsets = [0, 0], sizes = [16, 8], strides = [1, 1]} : vector<16x32xbf16> to vector<16x8xbf16>
    "tpu.trace_start"() <{level = 10 : i32, message = "sd,td->st"}> : () -> ()
    %cst_32 = arith.constant dense<0.000000e+00> : vector<16x16xf32>
    %103 = tpu.matmul %101, %102, %cst_32 {dimension_numbers = #tpu.dot_dimension_numbers<[1], [1], [0], [0], [0, 0, 1, 0], [], []>} : vector<16x8xbf16>, vector<16x8xbf16>, vector<16x16xf32> -> vector<16x16xf32>
    "tpu.trace_stop"() : () -> ()
    %cst_33 = arith.constant dense<0xFF800000> : vector<16xf32>
    %104 = vector.multi_reduction <maximumf>, %103, %cst_33 [1] : vector<16x16xf32> to vector<16xf32>
    %105 = vector.shape_cast %104 : vector<16xf32> to vector<16x1xf32>
    %106 = vector.broadcast %105 : vector<16x1xf32> to vector<16x16xf32>
    %107 = arith.subf %103, %106 : vector<16x16xf32>
    %108 = math.exp %107 : vector<16x16xf32>
    %cst_34 = arith.constant dense<0.000000e+00> : vector<16xf32>
    %109 = vector.multi_reduction <add>, %108, %cst_34 [1] : vector<16x16xf32> to vector<16xf32>
    %110 = vector.shape_cast %109 : vector<16xf32> to vector<16x1xf32>
    %111 = tpu.reciprocal %110 {approx = true} : vector<16x1xf32> -> vector<16x1xf32>
    %112 = arith.mulf %110, %111 : vector<16x1xf32>
    %cst_35 = arith.constant 2.000000e+00 : f32
    %113 = vector.broadcast %cst_35 : f32 to vector<16x1xf32>
    %114 = arith.subf %113, %112 : vector<16x1xf32>
    %115 = arith.mulf %111, %114 : vector<16x1xf32>
    %116 = vector.broadcast %115 : vector<16x1xf32> to vector<16x16xf32>
    %117 = arith.mulf %108, %116 : vector<16x16xf32>
    %118 = arith.truncf %117 : vector<16x16xf32> to vector<16x16xbf16>
    %119 = vector.extract_strided_slice %100 {offsets = [0, 0], sizes = [16, 8], strides = [1, 1]} : vector<16x32xbf16> to vector<16x8xbf16>
    "tpu.trace_start"() <{level = 10 : i32, message = "st,td->sd"}> : () -> ()
    %cst_36 = arith.constant dense<0.000000e+00> : vector<16x8xf32>
    %120 = tpu.matmul %118, %119, %cst_36 {dimension_numbers = #tpu.dot_dimension_numbers<[1], [0], [0], [1], [0, 0, 1, 1], [], []>} : vector<16x16xbf16>, vector<16x8xbf16>, vector<16x8xf32> -> vector<16x8xf32>
    "tpu.trace_stop"() : () -> ()
    %121 = vector.extract_strided_slice %94 {offsets = [0, 8], sizes = [16, 8], strides = [1, 1]} : vector<16x32xbf16> to vector<16x8xbf16>
    %122 = vector.extract_strided_slice %97 {offsets = [0, 8], sizes = [16, 8], strides = [1, 1]} : vector<16x32xbf16> to vector<16x8xbf16>
    "tpu.trace_start"() <{level = 10 : i32, message = "sd,td->st"}> : () -> ()
    %cst_37 = arith.constant dense<0.000000e+00> : vector<16x16xf32>
    %123 = tpu.matmul %121, %122, %cst_37 {dimension_numbers = #tpu.dot_dimension_numbers<[1], [1], [0], [0], [0, 0, 1, 0], [], []>} : vector<16x8xbf16>, vector<16x8xbf16>, vector<16x16xf32> -> vector<16x16xf32>
    "tpu.trace_stop"() : () -> ()
    %cst_38 = arith.constant dense<0xFF800000> : vector<16xf32>
    %124 = vector.multi_reduction <maximumf>, %123, %cst_38 [1] : vector<16x16xf32> to vector<16xf32>
    %125 = vector.shape_cast %124 : vector<16xf32> to vector<16x1xf32>
    %126 = vector.broadcast %125 : vector<16x1xf32> to vector<16x16xf32>
    %127 = arith.subf %123, %126 : vector<16x16xf32>
    %128 = math.exp %127 : vector<16x16xf32>
    %cst_39 = arith.constant dense<0.000000e+00> : vector<16xf32>
    %129 = vector.multi_reduction <add>, %128, %cst_39 [1] : vector<16x16xf32> to vector<16xf32>
    %130 = vector.shape_cast %129 : vector<16xf32> to vector<16x1xf32>
    %131 = tpu.reciprocal %130 {approx = true} : vector<16x1xf32> -> vector<16x1xf32>
    %132 = arith.mulf %130, %131 : vector<16x1xf32>
    %cst_40 = arith.constant 2.000000e+00 : f32
    %133 = vector.broadcast %cst_40 : f32 to vector<16x1xf32>
    %134 = arith.subf %133, %132 : vector<16x1xf32>
    %135 = arith.mulf %131, %134 : vector<16x1xf32>
    %136 = vector.broadcast %135 : vector<16x1xf32> to vector<16x16xf32>
    %137 = arith.mulf %128, %136 : vector<16x16xf32>
    %138 = arith.truncf %137 : vector<16x16xf32> to vector<16x16xbf16>
    %139 = vector.extract_strided_slice %100 {offsets = [0, 8], sizes = [16, 8], strides = [1, 1]} : vector<16x32xbf16> to vector<16x8xbf16>
    "tpu.trace_start"() <{level = 10 : i32, message = "st,td->sd"}> : () -> ()
    %cst_41 = arith.constant dense<0.000000e+00> : vector<16x8xf32>
    %140 = tpu.matmul %138, %139, %cst_41 {dimension_numbers = #tpu.dot_dimension_numbers<[1], [0], [0], [1], [0, 0, 1, 1], [], []>} : vector<16x16xbf16>, vector<16x8xbf16>, vector<16x8xf32> -> vector<16x8xf32>
    "tpu.trace_stop"() : () -> ()
    %141 = vector.extract_strided_slice %94 {offsets = [0, 16], sizes = [16, 8], strides = [1, 1]} : vector<16x32xbf16> to vector<16x8xbf16>
    %142 = vector.extract_strided_slice %97 {offsets = [0, 16], sizes = [16, 8], strides = [1, 1]} : vector<16x32xbf16> to vector<16x8xbf16>
    "tpu.trace_start"() <{level = 10 : i32, message = "sd,td->st"}> : () -> ()
    %cst_42 = arith.constant dense<0.000000e+00> : vector<16x16xf32>
    %143 = tpu.matmul %141, %142, %cst_42 {dimension_numbers = #tpu.dot_dimension_numbers<[1], [1], [0], [0], [0, 0, 1, 0], [], []>} : vector<16x8xbf16>, vector<16x8xbf16>, vector<16x16xf32> -> vector<16x16xf32>
    "tpu.trace_stop"() : () -> ()
    %cst_43 = arith.constant dense<0xFF800000> : vector<16xf32>
    %144 = vector.multi_reduction <maximumf>, %143, %cst_43 [1] : vector<16x16xf32> to vector<16xf32>
    %145 = vector.shape_cast %144 : vector<16xf32> to vector<16x1xf32>
    %146 = vector.broadcast %145 : vector<16x1xf32> to vector<16x16xf32>
    %147 = arith.subf %143, %146 : vector<16x16xf32>
    %148 = math.exp %147 : vector<16x16xf32>
    %cst_44 = arith.constant dense<0.000000e+00> : vector<16xf32>
    %149 = vector.multi_reduction <add>, %148, %cst_44 [1] : vector<16x16xf32> to vector<16xf32>
    %150 = vector.shape_cast %149 : vector<16xf32> to vector<16x1xf32>
    %151 = tpu.reciprocal %150 {approx = true} : vector<16x1xf32> -> vector<16x1xf32>
    %152 = arith.mulf %150, %151 : vector<16x1xf32>
    %cst_45 = arith.constant 2.000000e+00 : f32
    %153 = vector.broadcast %cst_45 : f32 to vector<16x1xf32>
    %154 = arith.subf %153, %152 : vector<16x1xf32>
    %155 = arith.mulf %151, %154 : vector<16x1xf32>
    %156 = vector.broadcast %155 : vector<16x1xf32> to vector<16x16xf32>
    %157 = arith.mulf %148, %156 : vector<16x16xf32>
    %158 = arith.truncf %157 : vector<16x16xf32> to vector<16x16xbf16>
    %159 = vector.extract_strided_slice %100 {offsets = [0, 16], sizes = [16, 8], strides = [1, 1]} : vector<16x32xbf16> to vector<16x8xbf16>
    "tpu.trace_start"() <{level = 10 : i32, message = "st,td->sd"}> : () -> ()
    %cst_46 = arith.constant dense<0.000000e+00> : vector<16x8xf32>
    %160 = tpu.matmul %158, %159, %cst_46 {dimension_numbers = #tpu.dot_dimension_numbers<[1], [0], [0], [1], [0, 0, 1, 1], [], []>} : vector<16x16xbf16>, vector<16x8xbf16>, vector<16x8xf32> -> vector<16x8xf32>
    "tpu.trace_stop"() : () -> ()
    %161 = vector.extract_strided_slice %94 {offsets = [0, 24], sizes = [16, 8], strides = [1, 1]} : vector<16x32xbf16> to vector<16x8xbf16>
    %162 = vector.extract_strided_slice %97 {offsets = [0, 24], sizes = [16, 8], strides = [1, 1]} : vector<16x32xbf16> to vector<16x8xbf16>
    "tpu.trace_start"() <{level = 10 : i32, message = "sd,td->st"}> : () -> ()
    %cst_47 = arith.constant dense<0.000000e+00> : vector<16x16xf32>
    %163 = tpu.matmul %161, %162, %cst_47 {dimension_numbers = #tpu.dot_dimension_numbers<[1], [1], [0], [0], [0, 0, 1, 0], [], []>} : vector<16x8xbf16>, vector<16x8xbf16>, vector<16x16xf32> -> vector<16x16xf32>
    "tpu.trace_stop"() : () -> ()
    %cst_48 = arith.constant dense<0xFF800000> : vector<16xf32>
    %164 = vector.multi_reduction <maximumf>, %163, %cst_48 [1] : vector<16x16xf32> to vector<16xf32>
    %165 = vector.shape_cast %164 : vector<16xf32> to vector<16x1xf32>
    %166 = vector.broadcast %165 : vector<16x1xf32> to vector<16x16xf32>
    %167 = arith.subf %163, %166 : vector<16x16xf32>
    %168 = math.exp %167 : vector<16x16xf32>
    %cst_49 = arith.constant dense<0.000000e+00> : vector<16xf32>
    %169 = vector.multi_reduction <add>, %168, %cst_49 [1] : vector<16x16xf32> to vector<16xf32>
    %170 = vector.shape_cast %169 : vector<16xf32> to vector<16x1xf32>
    %171 = tpu.reciprocal %170 {approx = true} : vector<16x1xf32> -> vector<16x1xf32>
    %172 = arith.mulf %170, %171 : vector<16x1xf32>
    %cst_50 = arith.constant 2.000000e+00 : f32
    %173 = vector.broadcast %cst_50 : f32 to vector<16x1xf32>
    %174 = arith.subf %173, %172 : vector<16x1xf32>
    %175 = arith.mulf %171, %174 : vector<16x1xf32>
    %176 = vector.broadcast %175 : vector<16x1xf32> to vector<16x16xf32>
    %177 = arith.mulf %168, %176 : vector<16x16xf32>
    %178 = arith.truncf %177 : vector<16x16xf32> to vector<16x16xbf16>
    %179 = vector.extract_strided_slice %100 {offsets = [0, 24], sizes = [16, 8], strides = [1, 1]} : vector<16x32xbf16> to vector<16x8xbf16>
    "tpu.trace_start"() <{level = 10 : i32, message = "st,td->sd"}> : () -> ()
    %cst_51 = arith.constant dense<0.000000e+00> : vector<16x8xf32>
    %180 = tpu.matmul %178, %179, %cst_51 {dimension_numbers = #tpu.dot_dimension_numbers<[1], [0], [0], [1], [0, 0, 1, 1], [], []>} : vector<16x16xbf16>, vector<16x8xbf16>, vector<16x8xf32> -> vector<16x8xf32>
    "tpu.trace_stop"() : () -> ()
    %181 = tpu.concatenate %120, %140, %160, %180 in 1 : vector<16x8xf32>, vector<16x8xf32>, vector<16x8xf32>, vector<16x8xf32> -> vector<16x32xf32>
    %182 = vector.shape_cast %181 : vector<16x32xf32> to vector<8x2x32xf32>
    %183 = vector.extract_strided_slice %83 {offsets = [0, 0, 0, 0, 0], sizes = [1, 8, 1, 2, 32], strides = [1, 1, 1, 1, 1]} : vector<1x8x2x2x32xf32> to vector<1x8x1x2x32xf32>
    %184 = vector.shape_cast %183 : vector<1x8x1x2x32xf32> to vector<8x2x32xf32>
    %185 = arith.addf %182, %184 : vector<8x2x32xf32>
    %c0_52 = arith.constant 0 : index
    %c0_53 = arith.constant 0 : index
    %c0_54 = arith.constant 0 : index
    %c0_55 = arith.constant 0 : index
    %c0_56 = arith.constant 0 : index
    %186 = vector.load %arg7[%c0_52, %c0_53, %c0_54, %c0_55, %c0_56] : memref<1x8x2x2x32xf32, #tpu.memory_space<vmem>>, vector<1x8x1x2x32xf32>
    %187 = vector.shape_cast %186 : vector<1x8x1x2x32xf32> to vector<8x2x32xf32>
    %188 = vector.shape_cast %185 : vector<8x2x32xf32> to vector<1x8x1x2x32xf32>
    tpu.vector_store %arg7[%c0_52, %c0_53, %c0_54, %c0_55, %c0_56], %188 {strides = array<i32>} : memref<1x8x2x2x32xf32, #tpu.memory_space<vmem>>, vector<1x8x1x2x32xf32>,
    %189 = vector.extract_strided_slice %87 {offsets = [0, 0, 1, 0, 0], sizes = [1, 8, 1, 2, 32], strides = [1, 1, 1, 1, 1]} : vector<1x8x2x2x32xbf16> to vector<1x8x1x2x32xbf16>
    %190 = vector.shape_cast %189 : vector<1x8x1x2x32xbf16> to vector<8x2x32xbf16>
    %191 = vector.shape_cast %190 : vector<8x2x32xbf16> to vector<16x32xbf16>
    %192 = vector.extract_strided_slice %89 {offsets = [0, 0, 1, 0, 0], sizes = [1, 8, 1, 2, 32], strides = [1, 1, 1, 1, 1]} : vector<1x8x2x2x32xbf16> to vector<1x8x1x2x32xbf16>
    %193 = vector.shape_cast %192 : vector<1x8x1x2x32xbf16> to vector<8x2x32xbf16>
    %194 = vector.shape_cast %193 : vector<8x2x32xbf16> to vector<16x32xbf16>
    %195 = vector.extract_strided_slice %91 {offsets = [0, 0, 1, 0, 0], sizes = [1, 8, 1, 2, 32], strides = [1, 1, 1, 1, 1]} : vector<1x8x2x2x32xbf16> to vector<1x8x1x2x32xbf16>
    %196 = vector.shape_cast %195 : vector<1x8x1x2x32xbf16> to vector<8x2x32xbf16>
    %197 = vector.shape_cast %196 : vector<8x2x32xbf16> to vector<16x32xbf16>
    %198 = vector.extract_strided_slice %191 {offsets = [0, 0], sizes = [16, 8], strides = [1, 1]} : vector<16x32xbf16> to vector<16x8xbf16>
    %199 = vector.extract_strided_slice %194 {offsets = [0, 0], sizes = [16, 8], strides = [1, 1]} : vector<16x32xbf16> to vector<16x8xbf16>
    "tpu.trace_start"() <{level = 10 : i32, message = "sd,td->st"}> : () -> ()
    %cst_57 = arith.constant dense<0.000000e+00> : vector<16x16xf32>
    %200 = tpu.matmul %198, %199, %cst_57 {dimension_numbers = #tpu.dot_dimension_numbers<[1], [1], [0], [0], [0, 0, 1, 0], [], []>} : vector<16x8xbf16>, vector<16x8xbf16>, vector<16x16xf32> -> vector<16x16xf32>
    "tpu.trace_stop"() : () -> ()
    %cst_58 = arith.constant dense<0xFF800000> : vector<16xf32>
    %201 = vector.multi_reduction <maximumf>, %200, %cst_58 [1] : vector<16x16xf32> to vector<16xf32>
    %202 = vector.shape_cast %201 : vector<16xf32> to vector<16x1xf32>
    %203 = vector.broadcast %202 : vector<16x1xf32> to vector<16x16xf32>
    %204 = arith.subf %200, %203 : vector<16x16xf32>
    %205 = math.exp %204 : vector<16x16xf32>
    %cst_59 = arith.constant dense<0.000000e+00> : vector<16xf32>
    %206 = vector.multi_reduction <add>, %205, %cst_59 [1] : vector<16x16xf32> to vector<16xf32>
    %207 = vector.shape_cast %206 : vector<16xf32> to vector<16x1xf32>
    %208 = tpu.reciprocal %207 {approx = true} : vector<16x1xf32> -> vector<16x1xf32>
    %209 = arith.mulf %207, %208 : vector<16x1xf32>
    %cst_60 = arith.constant 2.000000e+00 : f32
    %210 = vector.broadcast %cst_60 : f32 to vector<16x1xf32>
    %211 = arith.subf %210, %209 : vector<16x1xf32>
    %212 = arith.mulf %208, %211 : vector<16x1xf32>
    %213 = vector.broadcast %212 : vector<16x1xf32> to vector<16x16xf32>
    %214 = arith.mulf %205, %213 : vector<16x16xf32>
    %215 = arith.truncf %214 : vector<16x16xf32> to vector<16x16xbf16>
    %216 = vector.extract_strided_slice %197 {offsets = [0, 0], sizes = [16, 8], strides = [1, 1]} : vector<16x32xbf16> to vector<16x8xbf16>
    "tpu.trace_start"() <{level = 10 : i32, message = "st,td->sd"}> : () -> ()
    %cst_61 = arith.constant dense<0.000000e+00> : vector<16x8xf32>
    %217 = tpu.matmul %215, %216, %cst_61 {dimension_numbers = #tpu.dot_dimension_numbers<[1], [0], [0], [1], [0, 0, 1, 1], [], []>} : vector<16x16xbf16>, vector<16x8xbf16>, vector<16x8xf32> -> vector<16x8xf32>
    "tpu.trace_stop"() : () -> ()
    %218 = vector.extract_strided_slice %191 {offsets = [0, 8], sizes = [16, 8], strides = [1, 1]} : vector<16x32xbf16> to vector<16x8xbf16>
    %219 = vector.extract_strided_slice %194 {offsets = [0, 8], sizes = [16, 8], strides = [1, 1]} : vector<16x32xbf16> to vector<16x8xbf16>
    "tpu.trace_start"() <{level = 10 : i32, message = "sd,td->st"}> : () -> ()
    %cst_62 = arith.constant dense<0.000000e+00> : vector<16x16xf32>
    %220 = tpu.matmul %218, %219, %cst_62 {dimension_numbers = #tpu.dot_dimension_numbers<[1], [1], [0], [0], [0, 0, 1, 0], [], []>} : vector<16x8xbf16>, vector<16x8xbf16>, vector<16x16xf32> -> vector<16x16xf32>
    "tpu.trace_stop"() : () -> ()
    %cst_63 = arith.constant dense<0xFF800000> : vector<16xf32>
    %221 = vector.multi_reduction <maximumf>, %220, %cst_63 [1] : vector<16x16xf32> to vector<16xf32>
    %222 = vector.shape_cast %221 : vector<16xf32> to vector<16x1xf32>
    %223 = vector.broadcast %222 : vector<16x1xf32> to vector<16x16xf32>
    %224 = arith.subf %220, %223 : vector<16x16xf32>
    %225 = math.exp %224 : vector<16x16xf32>
    %cst_64 = arith.constant dense<0.000000e+00> : vector<16xf32>
    %226 = vector.multi_reduction <add>, %225, %cst_64 [1] : vector<16x16xf32> to vector<16xf32>
    %227 = vector.shape_cast %226 : vector<16xf32> to vector<16x1xf32>
    %228 = tpu.reciprocal %227 {approx = true} : vector<16x1xf32> -> vector<16x1xf32>
    %229 = arith.mulf %227, %228 : vector<16x1xf32>
    %cst_65 = arith.constant 2.000000e+00 : f32
    %230 = vector.broadcast %cst_65 : f32 to vector<16x1xf32>
    %231 = arith.subf %230, %229 : vector<16x1xf32>
    %232 = arith.mulf %228, %231 : vector<16x1xf32>
    %233 = vector.broadcast %232 : vector<16x1xf32> to vector<16x16xf32>
    %234 = arith.mulf %225, %233 : vector<16x16xf32>
    %235 = arith.truncf %234 : vector<16x16xf32> to vector<16x16xbf16>
    %236 = vector.extract_strided_slice %197 {offsets = [0, 8], sizes = [16, 8], strides = [1, 1]} : vector<16x32xbf16> to vector<16x8xbf16>
    "tpu.trace_start"() <{level = 10 : i32, message = "st,td->sd"}> : () -> ()
    %cst_66 = arith.constant dense<0.000000e+00> : vector<16x8xf32>
    %237 = tpu.matmul %235, %236, %cst_66 {dimension_numbers = #tpu.dot_dimension_numbers<[1], [0], [0], [1], [0, 0, 1, 1], [], []>} : vector<16x16xbf16>, vector<16x8xbf16>, vector<16x8xf32> -> vector<16x8xf32>
    "tpu.trace_stop"() : () -> ()
    %238 = vector.extract_strided_slice %191 {offsets = [0, 16], sizes = [16, 8], strides = [1, 1]} : vector<16x32xbf16> to vector<16x8xbf16>
    %239 = vector.extract_strided_slice %194 {offsets = [0, 16], sizes = [16, 8], strides = [1, 1]} : vector<16x32xbf16> to vector<16x8xbf16>
    "tpu.trace_start"() <{level = 10 : i32, message = "sd,td->st"}> : () -> ()
    %cst_67 = arith.constant dense<0.000000e+00> : vector<16x16xf32>
    %240 = tpu.matmul %238, %239, %cst_67 {dimension_numbers = #tpu.dot_dimension_numbers<[1], [1], [0], [0], [0, 0, 1, 0], [], []>} : vector<16x8xbf16>, vector<16x8xbf16>, vector<16x16xf32> -> vector<16x16xf32>
    "tpu.trace_stop"() : () -> ()
    %cst_68 = arith.constant dense<0xFF800000> : vector<16xf32>
    %241 = vector.multi_reduction <maximumf>, %240, %cst_68 [1] : vector<16x16xf32> to vector<16xf32>
    %242 = vector.shape_cast %241 : vector<16xf32> to vector<16x1xf32>
    %243 = vector.broadcast %242 : vector<16x1xf32> to vector<16x16xf32>
    %244 = arith.subf %240, %243 : vector<16x16xf32>
    %245 = math.exp %244 : vector<16x16xf32>
    %cst_69 = arith.constant dense<0.000000e+00> : vector<16xf32>
    %246 = vector.multi_reduction <add>, %245, %cst_69 [1] : vector<16x16xf32> to vector<16xf32>
    %247 = vector.shape_cast %246 : vector<16xf32> to vector<16x1xf32>
    %248 = tpu.reciprocal %247 {approx = true} : vector<16x1xf32> -> vector<16x1xf32>
    %249 = arith.mulf %247, %248 : vector<16x1xf32>
    %cst_70 = arith.constant 2.000000e+00 : f32
    %250 = vector.broadcast %cst_70 : f32 to vector<16x1xf32>
    %251 = arith.subf %250, %249 : vector<16x1xf32>
    %252 = arith.mulf %248, %251 : vector<16x1xf32>
    %253 = vector.broadcast %252 : vector<16x1xf32> to vector<16x16xf32>
    %254 = arith.mulf %245, %253 : vector<16x16xf32>
    %255 = arith.truncf %254 : vector<16x16xf32> to vector<16x16xbf16>
    %256 = vector.extract_strided_slice %197 {offsets = [0, 16], sizes = [16, 8], strides = [1, 1]} : vector<16x32xbf16> to vector<16x8xbf16>
    "tpu.trace_start"() <{level = 10 : i32, message = "st,td->sd"}> : () -> ()
    %cst_71 = arith.constant dense<0.000000e+00> : vector<16x8xf32>
    %257 = tpu.matmul %255, %256, %cst_71 {dimension_numbers = #tpu.dot_dimension_numbers<[1], [0], [0], [1], [0, 0, 1, 1], [], []>} : vector<16x16xbf16>, vector<16x8xbf16>, vector<16x8xf32> -> vector<16x8xf32>
    "tpu.trace_stop"() : () -> ()
    %258 = vector.extract_strided_slice %191 {offsets = [0, 24], sizes = [16, 8], strides = [1, 1]} : vector<16x32xbf16> to vector<16x8xbf16>
    %259 = vector.extract_strided_slice %194 {offsets = [0, 24], sizes = [16, 8], strides = [1, 1]} : vector<16x32xbf16> to vector<16x8xbf16>
    "tpu.trace_start"() <{level = 10 : i32, message = "sd,td->st"}> : () -> ()
    %cst_72 = arith.constant dense<0.000000e+00> : vector<16x16xf32>
    %260 = tpu.matmul %258, %259, %cst_72 {dimension_numbers = #tpu.dot_dimension_numbers<[1], [1], [0], [0], [0, 0, 1, 0], [], []>} : vector<16x8xbf16>, vector<16x8xbf16>, vector<16x16xf32> -> vector<16x16xf32>
    "tpu.trace_stop"() : () -> ()
    %cst_73 = arith.constant dense<0xFF800000> : vector<16xf32>
    %261 = vector.multi_reduction <maximumf>, %260, %cst_73 [1] : vector<16x16xf32> to vector<16xf32>
    %262 = vector.shape_cast %261 : vector<16xf32> to vector<16x1xf32>
    %263 = vector.broadcast %262 : vector<16x1xf32> to vector<16x16xf32>
    %264 = arith.subf %260, %263 : vector<16x16xf32>
    %265 = math.exp %264 : vector<16x16xf32>
    %cst_74 = arith.constant dense<0.000000e+00> : vector<16xf32>
    %266 = vector.multi_reduction <add>, %265, %cst_74 [1] : vector<16x16xf32> to vector<16xf32>
    %267 = vector.shape_cast %266 : vector<16xf32> to vector<16x1xf32>
    %268 = tpu.reciprocal %267 {approx = true} : vector<16x1xf32> -> vector<16x1xf32>
    %269 = arith.mulf %267, %268 : vector<16x1xf32>
    %cst_75 = arith.constant 2.000000e+00 : f32
    %270 = vector.broadcast %cst_75 : f32 to vector<16x1xf32>
    %271 = arith.subf %270, %269 : vector<16x1xf32>
    %272 = arith.mulf %268, %271 : vector<16x1xf32>
    %273 = vector.broadcast %272 : vector<16x1xf32> to vector<16x16xf32>
    %274 = arith.mulf %265, %273 : vector<16x16xf32>
    %275 = arith.truncf %274 : vector<16x16xf32> to vector<16x16xbf16>
    %276 = vector.extract_strided_slice %197 {offsets = [0, 24], sizes = [16, 8], strides = [1, 1]} : vector<16x32xbf16> to vector<16x8xbf16>
    "tpu.trace_start"() <{level = 10 : i32, message = "st,td->sd"}> : () -> ()
    %cst_76 = arith.constant dense<0.000000e+00> : vector<16x8xf32>
    %277 = tpu.matmul %275, %276, %cst_76 {dimension_numbers = #tpu.dot_dimension_numbers<[1], [0], [0], [1], [0, 0, 1, 1], [], []>} : vector<16x16xbf16>, vector<16x8xbf16>, vector<16x8xf32> -> vector<16x8xf32>
    "tpu.trace_stop"() : () -> ()
    %278 = tpu.concatenate %217, %237, %257, %277 in 1 : vector<16x8xf32>, vector<16x8xf32>, vector<16x8xf32>, vector<16x8xf32> -> vector<16x32xf32>
    %279 = vector.shape_cast %278 : vector<16x32xf32> to vector<8x2x32xf32>
    %280 = vector.extract_strided_slice %83 {offsets = [0, 0, 1, 0, 0], sizes = [1, 8, 1, 2, 32], strides = [1, 1, 1, 1, 1]} : vector<1x8x2x2x32xf32> to vector<1x8x1x2x32xf32>
    %281 = vector.shape_cast %280 : vector<1x8x1x2x32xf32> to vector<8x2x32xf32>
    %282 = arith.addf %279, %281 : vector<8x2x32xf32>
    %c0_77 = arith.constant 0 : index
    %c0_78 = arith.constant 0 : index
    %c1 = arith.constant 1 : index
    %c0_79 = arith.constant 0 : index
    %c0_80 = arith.constant 0 : index
    %283 = vector.load %arg7[%c0_77, %c0_78, %c1, %c0_79, %c0_80] : memref<1x8x2x2x32xf32, #tpu.memory_space<vmem>>, vector<1x8x1x2x32xf32>
    %284 = vector.shape_cast %283 : vector<1x8x1x2x32xf32> to vector<8x2x32xf32>
    %285 = vector.shape_cast %282 : vector<8x2x32xf32> to vector<1x8x1x2x32xf32>
    tpu.vector_store %arg7[%c0_77, %c0_78, %c1, %c0_79, %c0_80], %285 {strides = array<i32>} : memref<1x8x2x2x32xf32, #tpu.memory_space<vmem>>, vector<1x8x1x2x32xf32>,
    return
  }
  func.func @transform_0(%arg0: i32, %arg1: i32) -> (i32, i32, i32, i32, i32) {
    %c0_i32 = arith.constant 0 : i32
    %c0_i32_0 = arith.constant 0 : i32
    %c0_i32_1 = arith.constant 0 : i32
    %c0_i32_2 = arith.constant 0 : i32
    return %arg0, %c0_i32, %arg1, %c0_i32_0, %c0_i32_1 : i32, i32, i32, i32, i32
  }
  func.func @transform_1(%arg0: i32, %arg1: i32) -> (i32, i32, i32, i32, i32) {
    %c0_i32 = arith.constant 0 : i32
    %c0_i32_0 = arith.constant 0 : i32
    %c0_i32_1 = arith.constant 0 : i32
    %c0_i32_2 = arith.constant 0 : i32
    return %arg0, %c0_i32, %arg1, %c0_i32_0, %c0_i32_1 : i32, i32, i32, i32, i32
  }
  func.func @transform_2(%arg0: i32, %arg1: i32) -> (i32, i32, i32, i32, i32) {
    %c0_i32 = arith.constant 0 : i32
    %c0_i32_0 = arith.constant 0 : i32
    %c0_i32_1 = arith.constant 0 : i32
    %c0_i32_2 = arith.constant 0 : i32
    return %arg0, %c0_i32, %arg1, %c0_i32_0, %c0_i32_1 : i32, i32, i32, i32, i32
  }
  func.func @transform_3(%arg0: i32, %arg1: i32) -> (i32, i32, i32) {
    %c0_i32 = arith.constant 0 : i32
    %c0_i32_0 = arith.constant 0 : i32
    %c0_i32_1 = arith.constant 0 : i32
    %c0_i32_2 = arith.constant 0 : i32
    return %c0_i32, %c0_i32_0, %c0_i32_1 : i32, i32, i32
  }
  func.func @transform_4(%arg0: i32, %arg1: i32) -> (i32, i32) {
    %c0_i32 = arith.constant 0 : i32
    %c0_i32_0 = arith.constant 0 : i32
    %c0_i32_1 = arith.constant 0 : i32
    return %c0_i32, %c0_i32_0 : i32, i32
  }
  func.func @transform_5(%arg0: i32, %arg1: i32) -> (i32, i32, i32, i32, i32) {
    %c0_i32 = arith.constant 0 : i32
    %c0_i32_0 = arith.constant 0 : i32
    %c0_i32_1 = arith.constant 0 : i32
    %c0_i32_2 = arith.constant 0 : i32
    return %arg0, %c0_i32, %arg1, %c0_i32_0, %c0_i32_1 : i32, i32, i32, i32, i32
  }
}

</mosaic_0001>

<llo_original>
// kernel: tpu_custom_call.1
$region0: #{tpu_custom_call.1}
  #allocation0 [shape = 'u32[]', space=smem, size = 0x4, offset = 0x4, fixed_abs, tag = 'smem constant byte address 0x4 - core index']
  #allocation1 [shape = 'u32[144,128]{1,0:T(1,128)}', space=vmem, size = 0x12000, scoped, tag = 'internal scratch']
  #allocation11 [shape = 's32[]', space=sflag, size = 0x4, offset = 0, fixed_abs, tag = 'sflag constant byte address 0x0 - dummy sync flag']
  #allocation13 [shape = 's32[]', space=sflag, size = 0x4, offset = 0, fixed_abs, tag = 'sflag constant byte address 0x0 - dummy sync flag']
  #allocation15 [shape = 's32[]', space=sflag, size = 0x4, offset = 0, fixed_abs, tag = 'sflag constant byte address 0x0 - dummy sync flag']
  #allocation17 [shape = 's32[]', space=sflag, size = 0x4, offset = 0, fixed_abs, tag = 'sflag constant byte address 0x0 - dummy sync flag']
  %s0 = inlined_call_operand.hbm [shape: f32[2,8,4,2,32], index: 0, kind: input, shape index: {}]
  %s1 = inlined_call_operand.hbm [shape: f32[2,8,4,2,32], index: 1, kind: input, shape index: {}]
  %s2 = inlined_call_operand.hbm [shape: f32[2,8,4,2,32], index: 2, kind: input, shape index: {}]
  %s3 = inlined_call_operand.hbm [shape: f32[3,3,32], index: 3, kind: input, shape index: {}]
  %s4 = inlined_call_operand.vmem [shape: f32[1,32], index: 4, kind: input, shape index: {}]
  %s5 = inlined_call_operand.hbm [shape: f32[2,8,4,2,32], index: 5, kind: output, shape index: {}]
  %s6 = sld [smem:[#allocation0]]
  $region69: #{tpu_custom_call.1} parent=0
    _
  %s8 = ssub.s32 1, %s6
  %s9 = scalar_select 0, %s8, %s6
  $region1: #{tpu_custom_call.1} parent=0
    #allocation2 [shape = 'u8[32768]{0}', space=vmem, size = 0x8000, scoped, tag = 'input window, operand 0']
    #allocation3 [shape = 's32[2]{0}', space=sflag, size = 0x8, scoped, tag = 'scoped memory for tpu_custom_call.1']
    #allocation4 [shape = 's32[2]{0}', space=sflag, size = 0x8, scoped, tag = 'scoped memory for tpu_custom_call.1']
    #allocation5 [shape = 'u8[32768]{0}', space=vmem, size = 0x8000, scoped, tag = 'input window, operand 1']
    #allocation6 [shape = 's32[2]{0}', space=sflag, size = 0x8, scoped, tag = 'scoped memory for tpu_custom_call.1']
    #allocation7 [shape = 'u8[32768]{0}', space=vmem, size = 0x8000, scoped, tag = 'input window, operand 2']
    #allocation8 [shape = 'u8[6144]{0}', space=vmem, size = 0x1800, scoped, tag = 'input window, operand 3, single buffered']
    #allocation9 [shape = 's32[1]{0}', space=sflag, size = 0x4, scoped, tag = 'scoped memory for tpu_custom_call.1']
    #allocation10 [shape = 'u8[32768]{0}', space=vmem, size = 0x8000, scoped, tag = 'output window, operand 0']
    %10 = vsyncpa [#allocation3], 0
    %s11 = scalar_lea.sflag [#allocation3], 1
    %12 = vsyncpa %s11, 0
    %13 = vsyncpa [#allocation6], 0
    %s14 = scalar_lea.sflag [#allocation6], 1
    %15 = vsyncpa %s14, 0
    %16 = vsyncpa [#allocation9], 0
    %17 = vsyncpa [#allocation4], 0
    %s18 = scalar_lea.sflag [#allocation4], 1
    %19 = vsyncpa %s18, 0
    loop: start=0, step=1, limit=6
    $region2: #{tpu_custom_call.1} parent=1 // loop_pre_header
      _
    $region3: #{tpu_custom_call.1} parent=1 // loop_header
      %s21 = sphi 0, %s25
      %p22 = scmp.ge.s32.totalorder %s21, 6
      %s28 = sphi 0, %s40
      %s29 = sphi 0, %s36
      %s30 = sphi 0, %s28
      %s31 = sphi 0, %s29
      %s32 = sphi 0, %s30
      %s33 = sphi 0, %s31
      %s45 = sphi 0, %s47
      %s48 = sphi 0, %s45
      %s49 = sphi 0, %s48
      %s65 = sphi 0, %s49
      %s73 = sphi 0, %s75
      %s76 = sphi 0, %s73
      %s77 = sphi 0, %s76
      %s93 = sphi 0, %s77
      %s101 = sphi 0, %s103
      %s104 = sphi 0, %s101
      %s105 = sphi 0, %s104
      %s121 = sphi 0, %s105
      %s125 = sphi 0, %s125
      %s127 = sphi 0, %s125
      %s128 = sphi 0, %s127
      %s142 = sphi 0, %s128
      %s146 = sphi 0, %s146
      %s148 = sphi 0, %s146
      %s149 = sphi 0, %s148
      %s163 = sphi 0, %s149
      %s171 = sphi 0, %s173
      %s174 = sphi 0, %s171
      %s175 = sphi 0, %s174
      %s191 = sphi 0, %s175
    $region4: #{tpu_custom_call.1} parent=1 // loop_header_branch
      %24 = sbr.rel (%p22) target = $region8
    $region5: #{tpu_custom_call.1} parent=1 // loop_body
      %s26 = ssub.s32 %s21, 1
      %s27 = ssub.s32 %s21, 2
      %s34 = sadd.s32 1, %s29
      %p35 = scmp.ge.s32.totalorder %s34, 2
      %s36 = scalar_select %p35, 0, %s34
      %s37 = sadd.s32 1, %s28
      %s38 = scalar_select %p35, %s37, %s28
      %p39 = scmp.ge.s32.totalorder %s38, 2
      %s40 = scalar_select %p39, 0, %s38
      %s41 = ssub.s32 %s28, %s40
      %s42 = ssub.s32 %s29, %s36
      %s43 = sor.u32 %s41, %s42
      %p44 = scmp.eq.s32.totalorder %s43, 0
      %s46 = sadd.s32 %s45, 1
      %s47 = scalar_select %p44, %s45, %s46
      %p50 = pneg %p44
      %p51 = scmp.eq.s32.totalorder %s21, 3
      %p52 = por %p50, %p51
      %p53 = scmp.ne.s32.totalorder %s45, %s48
      %p54 = scmp.eq.s32.totalorder %s21, 0
      %p55 = por %p53, %p54
      %p56 = scmp.ne.s32.totalorder %s45, %s48
      %p57 = scmp.eq.s32.totalorder %s26, 3
      %p58 = por %p56, %p57
      %p59 = scmp.ne.s32.totalorder %s48, %s49
      %p60 = scmp.eq.s32.totalorder %s26, 0
      %p61 = por %p59, %p60
      %p62 = scmp.ne.s32.totalorder %s48, %s49
      %p63 = scmp.eq.s32.totalorder %s27, 3
      %p64 = por %p62, %p63
      %p66 = scmp.ne.s32.totalorder %s49, %s65
      %p67 = scmp.eq.s32.totalorder %s27, 0
      %p68 = por %p66, %p67
      %s69 = ssub.s32 %s28, %s40
      %s70 = ssub.s32 %s29, %s36
      %s71 = sor.u32 %s69, %s70
      %p72 = scmp.eq.s32.totalorder %s71, 0
      %s74 = sadd.s32 %s73, 1
      %s75 = scalar_select %p72, %s73, %s74
      %p78 = pneg %p72
      %p79 = scmp.eq.s32.totalorder %s21, 3
      %p80 = por %p78, %p79
      %p81 = scmp.ne.s32.totalorder %s73, %s76
      %p82 = scmp.eq.s32.totalorder %s21, 0
      %p83 = por %p81, %p82
      %p84 = scmp.ne.s32.totalorder %s73, %s76
      %p85 = scmp.eq.s32.totalorder %s26, 3
      %p86 = por %p84, %p85
      %p87 = scmp.ne.s32.totalorder %s76, %s77
      %p88 = scmp.eq.s32.totalorder %s26, 0
      %p89 = por %p87, %p88
      %p90 = scmp.ne.s32.totalorder %s76, %s77
      %p91 = scmp.eq.s32.totalorder %s27, 3
      %p92 = por %p90, %p91
      %p94 = scmp.ne.s32.totalorder %s77, %s93
      %p95 = scmp.eq.s32.totalorder %s27, 0
      %p96 = por %p94, %p95
      %s97 = ssub.s32 %s28, %s40
      %s98 = ssub.s32 %s29, %s36
      %s99 = sor.u32 %s97, %s98
      %p100 = scmp.eq.s32.totalorder %s99, 0
      %s102 = sadd.s32 %s101, 1
      %s103 = scalar_select %p100, %s101, %s102
      %p106 = pneg %p100
      %p107 = scmp.eq.s32.totalorder %s21, 3
      %p108 = por %p106, %p107
      %p109 = scmp.ne.s32.totalorder %s101, %s104
      %p110 = scmp.eq.s32.totalorder %s21, 0
      %p111 = por %p109, %p110
      %p112 = scmp.ne.s32.totalorder %s101, %s104
      %p113 = scmp.eq.s32.totalorder %s26, 3
      %p114 = por %p112, %p113
      %p115 = scmp.ne.s32.totalorder %s104, %s105
      %p116 = scmp.eq.s32.totalorder %s26, 0
      %p117 = por %p115, %p116
      %p118 = scmp.ne.s32.totalorder %s104, %s105
      %p119 = scmp.eq.s32.totalorder %s27, 3
      %p120 = por %p118, %p119
      %p122 = scmp.ne.s32.totalorder %s105, %s121
      %p123 = scmp.eq.s32.totalorder %s27, 0
      %p124 = por %p122, %p123
      %s126 = sadd.s32 %s125, 1
      %p129 = scmp.eq.s32.totalorder %s21, 3
      %p130 = scmp.ne.s32.totalorder %s125, %s127
      %p131 = scmp.eq.s32.totalorder %s21, 0
      %p132 = por %p130, %p131
      %p133 = scmp.ne.s32.totalorder %s125, %s127
      %p134 = scmp.eq.s32.totalorder %s26, 3
      %p135 = por %p133, %p134
      %p136 = scmp.ne.s32.totalorder %s127, %s128
      %p137 = scmp.eq.s32.totalorder %s26, 0
      %p138 = por %p136, %p137
      %p139 = scmp.ne.s32.totalorder %s127, %s128
      %p140 = scmp.eq.s32.totalorder %s27, 3
      %p141 = por %p139, %p140
      %p143 = scmp.ne.s32.totalorder %s128, %s142
      %p144 = scmp.eq.s32.totalorder %s27, 0
      %p145 = por %p143, %p144
      %s147 = sadd.s32 %s146, 1
      %p150 = scmp.eq.s32.totalorder %s21, 3
      %p151 = scmp.ne.s32.totalorder %s146, %s148
      %p152 = scmp.eq.s32.totalorder %s21, 0
      %p153 = por %p151, %p152
      %p154 = scmp.ne.s32.totalorder %s146, %s148
      %p155 = scmp.eq.s32.totalorder %s26, 3
      %p156 = por %p154, %p155
      %p157 = scmp.ne.s32.totalorder %s148, %s149
      %p158 = scmp.eq.s32.totalorder %s26, 0
      %p159 = por %p157, %p158
      %p160 = scmp.ne.s32.totalorder %s148, %s149
      %p161 = scmp.eq.s32.totalorder %s27, 3
      %p162 = por %p160, %p161
      %p164 = scmp.ne.s32.totalorder %s149, %s163
      %p165 = scmp.eq.s32.totalorder %s27, 0
      %p166 = por %p164, %p165
      %s167 = ssub.s32 %s28, %s40
      %s168 = ssub.s32 %s29, %s36
      %s169 = sor.u32 %s167, %s168
      %p170 = scmp.eq.s32.totalorder %s169, 0
      %s172 = sadd.s32 %s171, 1
      %s173 = scalar_select %p170, %s171, %s172
      %p176 = pneg %p170
      %p177 = scmp.eq.s32.totalorder %s21, 3
      %p178 = por %p176, %p177
      %p179 = scmp.ne.s32.totalorder %s171, %s174
      %p180 = scmp.eq.s32.totalorder %s21, 0
      %p181 = por %p179, %p180
      %p182 = scmp.ne.s32.totalorder %s171, %s174
      %p183 = scmp.eq.s32.totalorder %s26, 3
      %p184 = por %p182, %p183
      %p185 = scmp.ne.s32.totalorder %s174, %s175
      %p186 = scmp.eq.s32.totalorder %s26, 0
      %p187 = por %p185, %p186
      %p188 = scmp.ne.s32.totalorder %s174, %s175
      %p189 = scmp.eq.s32.totalorder %s27, 3
      %p190 = por %p188, %p189
      %p192 = scmp.ne.s32.totalorder %s175, %s191
      %p193 = scmp.eq.s32.totalorder %s27, 0
      %p194 = por %p192, %p193
      %p195 = scmp.le.s32.totalorder 1, %s21
      %p196 = scmp.lt.s32.totalorder %s21, 5
      %p197 = pnand %p195, %p196
      %p198 = pneg %p197
      // Predicated region
      $region9: #{tpu_custom_call.1} parent=5 // pred_check
        _
      $region10: #{tpu_custom_call.1} parent=5 // pred_check_branch
        %200 = sbr.rel (%p197) target = $region12
      $region11: #{tpu_custom_call.1} parent=5 // pred_region
        %s201 = ssub.s32 %s21, 1
        // Predicated region
        $region13: #{tpu_custom_call.1} parent=11 // pred_check
          %p202 = pneg %p138
        $region14: #{tpu_custom_call.1} parent=11 // pred_check_branch
          %204 = sbr.rel (%p202) target = $region16
        $region15: #{tpu_custom_call.1} parent=11 // pred_region
          %s206 = ssub.s32 192, 192
          %207 = vsyncadd [#allocation9], %s206
          %s208 = sshll.u32 [#allocation8], 4
          %s209 = int_to_ptr.vmem [resolvable:$true] %s208
          %214 = dma.hbm_to_vmem [thread:$0]  %s3, 192, %s209, [#allocation9], 64, 64, 4
        $region16: #{tpu_custom_call.1} parent=11 // pred_fallthru
          _
        // Predicated region
        $region17: #{tpu_custom_call.1} parent=11 // pred_check
          %p215 = pneg %p159
        $region18: #{tpu_custom_call.1} parent=11 // pred_check_branch
          %217 = sbr.rel (%p215) target = $region20
        $region19: #{tpu_custom_call.1} parent=11 // pred_region
          _
        $region20: #{tpu_custom_call.1} parent=11 // pred_fallthru
          _
      $region12: #{tpu_custom_call.1} parent=5 // pred_fallthru
        _
      %p218 = scmp.lt.s32.totalorder %s21, 4
      // Predicated region
      $region21: #{tpu_custom_call.1} parent=5 // pred_check
        %p219 = pneg %p218
      $region22: #{tpu_custom_call.1} parent=5 // pred_check_branch
        %221 = sbr.rel (%p219) target = $region24
      $region23: #{tpu_custom_call.1} parent=5 // pred_region
        // Predicated region
        $region25: #{tpu_custom_call.1} parent=23 // pred_check
          %p222 = pneg %p55
        $region26: #{tpu_custom_call.1} parent=23 // pred_check_branch
          %224 = sbr.rel (%p222) target = $region28
        $region27: #{tpu_custom_call.1} parent=23 // pred_region
          #allocation12 [shape = 'u32[6]{0}', space=smem, size = 0x18, scoped, tag = 'DMA stride descriptor']
          %s225 = sand.u32 %s45, 1
          %s226 = scalar_lea.sflag [#allocation3], %s225
          %s227 = sand.u32 %s45, 1
          %s228 = smul.addr %s227, 32
          %s229 = scalar_lea.vmem [#allocation2], %s228
          %s230 = smul.u32 2, %s29
          %s232 = ssub.s32 512, 512
          %233 = vsyncadd %s226, %s232
          %s234 = smul.addr %s28, 32
          %s235 = sadd.s32 %s230, %s234
          %s236 = smul.addr %s235, 32
          %s237 = scalar_lea.hbm %s0, %s236
          %s239 = sshll.u32 1, 14
          %s240 = sxor.u32 4294967295, %s239
          %s242 = sld [smem:[#allocation0]]
          %s243 = sadd.s32 2, %s242
          %s245 = sshll.u32 7, 26
          %s246 = sxor.u32 4294967295, %s245
          %s247 = sand.u32 0, %s246
          %s248 = sshll.u32 %s243, 26
          %s249 = sor.u32 %s247, %s248
          %s250 = sshll.u32 %s229, 4
          %s251 = int_to_ptr.vmem [resolvable:$true] %s250
          %257 = sst [smem:[#allocation12]] 128
          %s258 = scalar_lea.smem [#allocation12], 1
          %259 = sst [smem:[%s258]] 64
          %s260 = scalar_lea.smem [#allocation12], 2
          %261 = sst [smem:[%s260]] 2
          %s262 = scalar_lea.smem [#allocation12], 3
          %263 = sst [smem:[%s262]] 32
          %s264 = scalar_lea.smem [#allocation12], 4
          %265 = sst [smem:[%s264]] 32
          %s266 = scalar_lea.smem [#allocation12], 5
          %267 = sst [smem:[%s266]] 2
          %269 = dma.general %s237, 512, %s251, %s226, [#allocation11], [#allocation12], %s249, 0
        $region28: #{tpu_custom_call.1} parent=23 // pred_fallthru
          _
        // Predicated region
        $region29: #{tpu_custom_call.1} parent=23 // pred_check
          %p270 = pneg %p83
        $region30: #{tpu_custom_call.1} parent=23 // pred_check_branch
          %272 = sbr.rel (%p270) target = $region32
        $region31: #{tpu_custom_call.1} parent=23 // pred_region
          #allocation14 [shape = 'u32[6]{0}', space=smem, size = 0x18, scoped, tag = 'DMA stride descriptor']
          %s273 = sand.u32 %s21, 1
          %s274 = scalar_lea.sflag [#allocation6], %s273
          %s275 = sand.u32 %s73, 1
          %s276 = smul.addr %s275, 32
          %s277 = scalar_lea.vmem [#allocation5], %s276
          %s278 = smul.u32 2, %s29
          %s280 = ssub.s32 512, 512
          %281 = vsyncadd %s274, %s280
          %s282 = smul.addr %s28, 32
          %s283 = sadd.s32 %s278, %s282
          %s284 = smul.addr %s283, 32
          %s285 = scalar_lea.hbm %s1, %s284
          %s287 = sshll.u32 1, 14
          %s288 = sxor.u32 4294967295, %s287
          %s290 = sld [smem:[#allocation0]]
          %s291 = sadd.s32 2, %s290
          %s293 = sshll.u32 7, 26
          %s294 = sxor.u32 4294967295, %s293
          %s295 = sand.u32 0, %s294
          %s296 = sshll.u32 %s291, 26
          %s297 = sor.u32 %s295, %s296
          %s298 = sshll.u32 %s277, 4
          %s299 = int_to_ptr.vmem [resolvable:$true] %s298
          %305 = sst [smem:[#allocation14]] 128
          %s306 = scalar_lea.smem [#allocation14], 1
          %307 = sst [smem:[%s306]] 64
          %s308 = scalar_lea.smem [#allocation14], 2
          %309 = sst [smem:[%s308]] 2
          %s310 = scalar_lea.smem [#allocation14], 3
          %311 = sst [smem:[%s310]] 32
          %s312 = scalar_lea.smem [#allocation14], 4
          %313 = sst [smem:[%s312]] 32
          %s314 = scalar_lea.smem [#allocation14], 5
          %315 = sst [smem:[%s314]] 2
          %317 = dma.general %s285, 512, %s299, %s274, [#allocation13], [#allocation14], %s297, 0
        $region32: #{tpu_custom_call.1} parent=23 // pred_fallthru
          _
        // Predicated region
        $region33: #{tpu_custom_call.1} parent=23 // pred_check
          %p318 = pneg %p111
        $region34: #{tpu_custom_call.1} parent=23 // pred_check_branch
          %320 = sbr.rel (%p318) target = $region36
        $region35: #{tpu_custom_call.1} parent=23 // pred_region
          #allocation16 [shape = 'u32[6]{0}', space=smem, size = 0x18, scoped, tag = 'DMA stride descriptor']
          %s321 = sand.u32 %s21, 1
          %s322 = scalar_lea.sflag [#allocation6], %s321
          %s323 = sand.u32 %s101, 1
          %s324 = smul.addr %s323, 32
          %s325 = scalar_lea.vmem [#allocation7], %s324
          %s326 = smul.u32 2, %s29
          %s328 = ssub.s32 512, 512
          %329 = vsyncadd %s322, %s328
          %s330 = smul.addr %s28, 32
          %s331 = sadd.s32 %s326, %s330
          %s332 = smul.addr %s331, 32
          %s333 = scalar_lea.hbm %s2, %s332
          %s335 = sshll.u32 1, 14
          %s336 = sxor.u32 4294967295, %s335
          %s338 = sld [smem:[#allocation0]]
          %s339 = sadd.s32 2, %s338
          %s341 = sshll.u32 7, 26
          %s342 = sxor.u32 4294967295, %s341
          %s343 = sand.u32 0, %s342
          %s344 = sshll.u32 %s339, 26
          %s345 = sor.u32 %s343, %s344
          %s346 = sshll.u32 %s325, 4
          %s347 = int_to_ptr.vmem [resolvable:$true] %s346
          %353 = sst [smem:[#allocation16]] 128
          %s354 = scalar_lea.smem [#allocation16], 1
          %355 = sst [smem:[%s354]] 64
          %s356 = scalar_lea.smem [#allocation16], 2
          %357 = sst [smem:[%s356]] 2
          %s358 = scalar_lea.smem [#allocation16], 3
          %359 = sst [smem:[%s358]] 32
          %s360 = scalar_lea.smem [#allocation16], 4
          %361 = sst [smem:[%s360]] 32
          %s362 = scalar_lea.smem [#allocation16], 5
          %363 = sst [smem:[%s362]] 2
          %365 = dma.general %s333, 512, %s347, %s322, [#allocation15], [#allocation16], %s345, 0
        $region36: #{tpu_custom_call.1} parent=23 // pred_fallthru
          _
      $region24: #{tpu_custom_call.1} parent=5 // pred_fallthru
        _
      %p366 = scmp.le.s32.totalorder 1, %s21
      %p367 = scmp.lt.s32.totalorder %s21, 5
      %p368 = pnand %p366, %p367
      %p369 = pneg %p368
      // Predicated region
      $region37: #{tpu_custom_call.1} parent=5 // pred_check
        _
      $region38: #{tpu_custom_call.1} parent=5 // pred_check_branch
        %371 = sbr.rel (%p368) target = $region40
      $region39: #{tpu_custom_call.1} parent=5 // pred_region
        %s372 = ssub.s32 %s21, 1
        %s373 = sand.u32 %s48, 1
        %s374 = scalar_lea.sflag [#allocation3], %s373
        %s375 = sand.u32 %s48, 1
        %s376 = smul.addr %s375, 32
        %s377 = scalar_lea.vmem [#allocation2], %s376
        // Predicated region
        $region41: #{tpu_custom_call.1} parent=39 // pred_check
          %p378 = pneg %p61
        $region42: #{tpu_custom_call.1} parent=39 // pred_check_branch
          %380 = sbr.rel (%p378) target = $region44
        $region43: #{tpu_custom_call.1} parent=39 // pred_region
          %381 = dma.done %s374, 512
        $region44: #{tpu_custom_call.1} parent=39 // pred_fallthru
          _
        %s382 = sand.u32 %s26, 1
        %s383 = scalar_lea.sflag [#allocation6], %s382
        %s384 = sand.u32 %s76, 1
        %s385 = smul.addr %s384, 32
        %s386 = scalar_lea.vmem [#allocation5], %s385
        // Predicated region
        $region45: #{tpu_custom_call.1} parent=39 // pred_check
          %p387 = pneg %p89
        $region46: #{tpu_custom_call.1} parent=39 // pred_check_branch
          %389 = sbr.rel (%p387) target = $region48
        $region47: #{tpu_custom_call.1} parent=39 // pred_region
          %390 = dma.done %s383, 512
        $region48: #{tpu_custom_call.1} parent=39 // pred_fallthru
          _
        %s391 = sand.u32 %s26, 1
        %s392 = scalar_lea.sflag [#allocation6], %s391
        %s393 = sand.u32 %s104, 1
        %s394 = smul.addr %s393, 32
        %s395 = scalar_lea.vmem [#allocation7], %s394
        // Predicated region
        $region49: #{tpu_custom_call.1} parent=39 // pred_check
          %p396 = pneg %p117
        $region50: #{tpu_custom_call.1} parent=39 // pred_check_branch
          %398 = sbr.rel (%p396) target = $region52
        $region51: #{tpu_custom_call.1} parent=39 // pred_region
          %399 = dma.done %s392, 512
        $region52: #{tpu_custom_call.1} parent=39 // pred_fallthru
          _
        // Predicated region
        $region53: #{tpu_custom_call.1} parent=39 // pred_check
          %p400 = pneg %p138
        $region54: #{tpu_custom_call.1} parent=39 // pred_check_branch
          %402 = sbr.rel (%p400) target = $region56
        $region55: #{tpu_custom_call.1} parent=39 // pred_region
          %403 = dma.done [#allocation9], 192
        $region56: #{tpu_custom_call.1} parent=39 // pred_fallthru
          _
        %s404 = sand.u32 %s48, 1
        %s405 = scalar_lea.sflag [#allocation3], %s404
        %s406 = sand.u32 %s48, 1
        %s407 = smul.addr %s406, 32
        %s408 = scalar_lea.vmem [#allocation2], %s407
        %p409 = pneg %p61
        %p410 = pneg %p58
        %s411 = sand.u32 %s26, 1
        %s412 = scalar_lea.sflag [#allocation6], %s411
        %s413 = sand.u32 %s76, 1
        %s414 = smul.addr %s413, 32
        %s415 = scalar_lea.vmem [#allocation5], %s414
        %p416 = pneg %p89
        %p417 = pneg %p86
        %s418 = sand.u32 %s26, 1
        %s419 = scalar_lea.sflag [#allocation6], %s418
        %s420 = sand.u32 %s104, 1
        %s421 = smul.addr %s420, 32
        %s422 = scalar_lea.vmem [#allocation7], %s421
        %p423 = pneg %p117
        %p424 = pneg %p114
        %p425 = pneg %p138
        %p426 = pneg %p135
        %p427 = pneg %p159
        %p428 = pneg %p156
        %p429 = pneg %p187
        %p430 = pneg %p184
        %s431 = sand.u32 %s174, 1
        %s432 = scalar_lea.sflag [#allocation4], %s431
        %s433 = sand.u32 %s174, 1
        %s434 = smul.addr %s433, 32
        %s435 = scalar_lea.vmem [#allocation10], %s434
        %s436 = smul.u32 2, %s31
        %s437 = smul.u32 2, %s31
        %s438 = smul.u32 2, %s31
        %s439 = smul.u32 2, %s31
        %v441 = vld [vmem:[%s395] sm:$0x3]
        %v442 = vld [vmem:[%s395 + $0x2] sm:$0x3]
        %v443 = vld [vmem:[%s395 + $0x4] sm:$0x3]
        %v444 = vld [vmem:[%s395 + $0x6] sm:$0x3]
        %v445 = vld [vmem:[%s395 + $0x8] sm:$0x3]
        %v446 = vld [vmem:[%s395 + $0xa] sm:$0x3]
        %v447 = vld [vmem:[%s395 + $0xc] sm:$0x3]
        %v448 = vld [vmem:[%s395 + $0xe] sm:$0x3]
        %v449 = vld [vmem:[%s395 + $0x10] sm:$0x3]
        %v450 = vld [vmem:[%s395 + $0x12] sm:$0x3]
        %v451 = vld [vmem:[%s395 + $0x14] sm:$0x3]
        %v452 = vld [vmem:[%s395 + $0x16] sm:$0x3]
        %v453 = vld [vmem:[%s395 + $0x18] sm:$0x3]
        %v454 = vld [vmem:[%s395 + $0x1a] sm:$0x3]
        %v455 = vld [vmem:[%s395 + $0x1c] sm:$0x3]
        %v456 = vld [vmem:[%s395 + $0x1e] sm:$0x3]
        %v457 = vld [vmem:[#allocation8] sm:$0x7]
        %v458 = vld [vmem:[#allocation8 + $0x4] sm:$0x7]
        %v459 = vld [vmem:[#allocation8 + $0x8] sm:$0x7]
        %v460 = vld [vmem:[%s4] sm:$0x1]
        %v461 = vlaneseq
        %v462 = vshrl.u32 %v461, 7
        %v463 = vsub.s32 1, %v462
        %v464 = vrot.slane %v458, %v463
        %v465 = vmul.f32 %v441, %v464
        %v466 = vmul.f32 %v442, %v464
        %v467 = vmul.f32 %v443, %v464
        %v468 = vmul.f32 %v444, %v464
        %v469 = vmul.f32 %v445, %v464
        %v470 = vmul.f32 %v446, %v464
        %v471 = vmul.f32 %v447, %v464
        %v472 = vmul.f32 %v448, %v464
        %v473 = vmul.f32 %v449, %v464
        %v474 = vmul.f32 %v450, %v464
        %v475 = vmul.f32 %v451, %v464
        %v476 = vmul.f32 %v452, %v464
        %v477 = vmul.f32 %v453, %v464
        %v478 = vmul.f32 %v454, %v464
        %v479 = vmul.f32 %v455, %v464
        %v480 = vmul.f32 %v456, %v464
        %v496 = vrot.slane 0.0, 7
        %v497 = vrot.slane %v441, 7
        %v498 = vrot.slane %v442, 7
        %v499 = vrot.slane %v443, 7
        %v500 = vrot.slane %v444, 7
        %v501 = vrot.slane %v445, 7
        %v502 = vrot.slane %v446, 7
        %v503 = vrot.slane %v447, 7
        %v504 = vrot.slane %v448, 7
        %v505 = vrot.slane %v449, 7
        %v506 = vrot.slane %v450, 7
        %v507 = vrot.slane %v451, 7
        %v508 = vrot.slane %v452, 7
        %v509 = vrot.slane %v453, 7
        %v510 = vrot.slane %v454, 7
        %vm526 = vcmask 1040384
        %v527 = vsel %vm526, 0.0, %v496
        %v528 = vsel %vm526, 0.0, %v497
        %v529 = vsel %vm526, 0.0, %v498
        %v530 = vsel %vm526, 0.0, %v499
        %v531 = vsel %vm526, 0.0, %v500
        %v532 = vsel %vm526, 0.0, %v501
        %v533 = vsel %vm526, 0.0, %v502
        %v534 = vsel %vm526, 0.0, %v503
        %v535 = vsel %vm526, 0.0, %v504
        %v536 = vsel %vm526, 0.0, %v505
        %v537 = vsel %vm526, 0.0, %v506
        %v538 = vsel %vm526, 0.0, %v507
        %v539 = vsel %vm526, 0.0, %v508
        %v540 = vsel %vm526, 0.0, %v509
        %v541 = vsel %vm526, 0.0, %v510
        %v542 = vlaneseq
        %v543 = vshrl.u32 %v542, 7
        %v544 = vsub.s32 0, %v543
        %v545 = vrot.slane %v457, %v544
        %v546 = vmul.f32 %v527, %v545
        %v547 = vmul.f32 %v528, %v545
        %v548 = vmul.f32 %v529, %v545
        %v549 = vmul.f32 %v530, %v545
        %v550 = vmul.f32 %v531, %v545
        %v551 = vmul.f32 %v532, %v545
        %v552 = vmul.f32 %v533, %v545
        %v553 = vmul.f32 %v534, %v545
        %v554 = vmul.f32 %v535, %v545
        %v555 = vmul.f32 %v536, %v545
        %v556 = vmul.f32 %v537, %v545
        %v557 = vmul.f32 %v538, %v545
        %v558 = vmul.f32 %v539, %v545
        %v559 = vmul.f32 %v540, %v545
        %v560 = vmul.f32 %v541, %v545
        %v561 = vadd.f32 %v465, %v546
        %v562 = vadd.f32 %v466, %v546
        %v563 = vadd.f32 %v467, %v547
        %v564 = vadd.f32 %v468, %v548
        %v565 = vadd.f32 %v469, %v549
        %v566 = vadd.f32 %v470, %v550
        %v567 = vadd.f32 %v471, %v551
        %v568 = vadd.f32 %v472, %v552
        %v569 = vadd.f32 %v473, %v553
        %v570 = vadd.f32 %v474, %v554
        %v571 = vadd.f32 %v475, %v555
        %v572 = vadd.f32 %v476, %v556
        %v573 = vadd.f32 %v477, %v557
        %v574 = vadd.f32 %v478, %v558
        %v575 = vadd.f32 %v479, %v559
        %v576 = vadd.f32 %v480, %v560
        %v577 = vlaneseq
        %v578 = vshrl.u32 %v577, 7
        %v579 = vsub.s32 1, %v578
        %v580 = vrot.slane %v457, %v579
        %v581 = vmul.f32 %v580, 0.0
        %v582 = vmul.f32 %v441, %v580
        %v583 = vmul.f32 %v442, %v580
        %v584 = vmul.f32 %v443, %v580
        %v585 = vmul.f32 %v444, %v580
        %v586 = vmul.f32 %v445, %v580
        %v587 = vmul.f32 %v446, %v580
        %v588 = vmul.f32 %v447, %v580
        %v589 = vmul.f32 %v448, %v580
        %v590 = vmul.f32 %v449, %v580
        %v591 = vmul.f32 %v450, %v580
        %v592 = vmul.f32 %v451, %v580
        %v593 = vmul.f32 %v452, %v580
        %v594 = vmul.f32 %v453, %v580
        %v595 = vmul.f32 %v454, %v580
        %v596 = vadd.f32 %v561, %v581
        %v597 = vadd.f32 %v562, %v581
        %v598 = vadd.f32 %v563, %v582
        %v599 = vadd.f32 %v564, %v583
        %v600 = vadd.f32 %v565, %v584
        %v601 = vadd.f32 %v566, %v585
        %v602 = vadd.f32 %v567, %v586
        %v603 = vadd.f32 %v568, %v587
        %v604 = vadd.f32 %v569, %v588
        %v605 = vadd.f32 %v570, %v589
        %v606 = vadd.f32 %v571, %v590
        %v607 = vadd.f32 %v572, %v591
        %v608 = vadd.f32 %v573, %v592
        %v609 = vadd.f32 %v574, %v593
        %v610 = vadd.f32 %v575, %v594
        %v611 = vadd.f32 %v576, %v595
        %v612 = vrot.slane 0.0, 1
        %v613 = vrot.slane %v441, 1
        %v614 = vrot.slane %v442, 1
        %v615 = vrot.slane %v443, 1
        %v616 = vrot.slane %v444, 1
        %v617 = vrot.slane %v445, 1
        %v618 = vrot.slane %v446, 1
        %v619 = vrot.slane %v447, 1
        %v620 = vrot.slane %v448, 1
        %v621 = vrot.slane %v449, 1
        %v622 = vrot.slane %v450, 1
        %v623 = vrot.slane %v451, 1
        %v624 = vrot.slane %v452, 1
        %v625 = vrot.slane %v453, 1
        %v626 = vrot.slane %v454, 1
        %v642 = vsel %vm526, %v612, 0.0
        %v643 = vsel %vm526, %v613, 0.0
        %v644 = vsel %vm526, %v614, 0.0
        %v645 = vsel %vm526, %v615, 0.0
        %v646 = vsel %vm526, %v616, 0.0
        %v647 = vsel %vm526, %v617, 0.0
        %v648 = vsel %vm526, %v618, 0.0
        %v649 = vsel %vm526, %v619, 0.0
        %v650 = vsel %vm526, %v620, 0.0
        %v651 = vsel %vm526, %v621, 0.0
        %v652 = vsel %vm526, %v622, 0.0
        %v653 = vsel %vm526, %v623, 0.0
        %v654 = vsel %vm526, %v624, 0.0
        %v655 = vsel %vm526, %v625, 0.0
        %v656 = vsel %vm526, %v626, 0.0
        %v657 = vlaneseq
        %v658 = vshrl.u32 %v657, 7
        %v659 = vsub.s32 2, %v658
        %v660 = vrot.slane %v457, %v659
        %v661 = vmul.f32 %v642, %v660
        %v662 = vmul.f32 %v643, %v660
        %v663 = vmul.f32 %v644, %v660
        %v664 = vmul.f32 %v645, %v660
        %v665 = vmul.f32 %v646, %v660
        %v666 = vmul.f32 %v647, %v660
        %v667 = vmul.f32 %v648, %v660
        %v668 = vmul.f32 %v649, %v660
        %v669 = vmul.f32 %v650, %v660
        %v670 = vmul.f32 %v651, %v660
        %v671 = vmul.f32 %v652, %v660
        %v672 = vmul.f32 %v653, %v660
        %v673 = vmul.f32 %v654, %v660
        %v674 = vmul.f32 %v655, %v660
        %v675 = vmul.f32 %v656, %v660
        %v676 = vadd.f32 %v596, %v661
        %v677 = vadd.f32 %v597, %v661
        %v678 = vadd.f32 %v598, %v662
        %v679 = vadd.f32 %v599, %v663
        %v680 = vadd.f32 %v600, %v664
        %v681 = vadd.f32 %v601, %v665
        %v682 = vadd.f32 %v602, %v666
        %v683 = vadd.f32 %v603, %v667
        %v684 = vadd.f32 %v604, %v668
        %v685 = vadd.f32 %v605, %v669
        %v686 = vadd.f32 %v606, %v670
        %v687 = vadd.f32 %v607, %v671
        %v688 = vadd.f32 %v608, %v672
        %v689 = vadd.f32 %v609, %v673
        %v690 = vadd.f32 %v610, %v674
        %v691 = vadd.f32 %v611, %v675
        %v694 = vrot.slane %v455, 7
        %v695 = vrot.slane %v456, 7
        %v698 = vsel %vm526, 0.0, %v694
        %v699 = vsel %vm526, 0.0, %v695
        %v700 = vlaneseq
        %v701 = vshrl.u32 %v700, 7
        %v702 = vsub.s32 0, %v701
        %v703 = vrot.slane %v458, %v702
        %v704 = vmul.f32 %v528, %v703
        %v705 = vmul.f32 %v529, %v703
        %v706 = vmul.f32 %v530, %v703
        %v707 = vmul.f32 %v531, %v703
        %v708 = vmul.f32 %v532, %v703
        %v709 = vmul.f32 %v533, %v703
        %v710 = vmul.f32 %v534, %v703
        %v711 = vmul.f32 %v535, %v703
        %v712 = vmul.f32 %v536, %v703
        %v713 = vmul.f32 %v537, %v703
        %v714 = vmul.f32 %v538, %v703
        %v715 = vmul.f32 %v539, %v703
        %v716 = vmul.f32 %v540, %v703
        %v717 = vmul.f32 %v541, %v703
        %v718 = vmul.f32 %v698, %v703
        %v719 = vmul.f32 %v699, %v703
        %v720 = vadd.f32 %v676, %v704
        %v721 = vadd.f32 %v677, %v705
        %v722 = vadd.f32 %v678, %v706
        %v723 = vadd.f32 %v679, %v707
        %v724 = vadd.f32 %v680, %v708
        %v725 = vadd.f32 %v681, %v709
        %v726 = vadd.f32 %v682, %v710
        %v727 = vadd.f32 %v683, %v711
        %v728 = vadd.f32 %v684, %v712
        %v729 = vadd.f32 %v685, %v713
        %v730 = vadd.f32 %v686, %v714
        %v731 = vadd.f32 %v687, %v715
        %v732 = vadd.f32 %v688, %v716
        %v733 = vadd.f32 %v689, %v717
        %v734 = vadd.f32 %v690, %v718
        %v735 = vadd.f32 %v691, %v719
        %v736 = vrot.slane %v455, 1
        %v737 = vrot.slane %v456, 1
        %v740 = vsel %vm526, %v736, 0.0
        %v741 = vsel %vm526, %v737, 0.0
        %v742 = vlaneseq
        %v743 = vshrl.u32 %v742, 7
        %v744 = vsub.s32 2, %v743
        %v745 = vrot.slane %v458, %v744
        %v746 = vmul.f32 %v643, %v745
        %v747 = vmul.f32 %v644, %v745
        %v748 = vmul.f32 %v645, %v745
        %v749 = vmul.f32 %v646, %v745
        %v750 = vmul.f32 %v647, %v745
        %v751 = vmul.f32 %v648, %v745
        %v752 = vmul.f32 %v649, %v745
        %v753 = vmul.f32 %v650, %v745
        %v754 = vmul.f32 %v651, %v745
        %v755 = vmul.f32 %v652, %v745
        %v756 = vmul.f32 %v653, %v745
        %v757 = vmul.f32 %v654, %v745
        %v758 = vmul.f32 %v655, %v745
        %v759 = vmul.f32 %v656, %v745
        %v760 = vmul.f32 %v740, %v745
        %v761 = vmul.f32 %v741, %v745
        %v762 = vadd.f32 %v720, %v746
        %v763 = vadd.f32 %v721, %v747
        %v764 = vadd.f32 %v722, %v748
        %v765 = vadd.f32 %v723, %v749
        %v766 = vadd.f32 %v724, %v750
        %v767 = vadd.f32 %v725, %v751
        %v768 = vadd.f32 %v726, %v752
        %v769 = vadd.f32 %v727, %v753
        %v770 = vadd.f32 %v728, %v754
        %v771 = vadd.f32 %v729, %v755
        %v772 = vadd.f32 %v730, %v756
        %v773 = vadd.f32 %v731, %v757
        %v774 = vadd.f32 %v732, %v758
        %v775 = vadd.f32 %v733, %v759
        %v776 = vadd.f32 %v734, %v760
        %v777 = vadd.f32 %v735, %v761
        %v778 = vlaneseq
        %v779 = vshrl.u32 %v778, 7
        %v780 = vsub.s32 0, %v779
        %v781 = vrot.slane %v459, %v780
        %v782 = vmul.f32 %v530, %v781
        %v783 = vmul.f32 %v531, %v781
        %v784 = vmul.f32 %v532, %v781
        %v785 = vmul.f32 %v533, %v781
        %v786 = vmul.f32 %v534, %v781
        %v787 = vmul.f32 %v535, %v781
        %v788 = vmul.f32 %v536, %v781
        %v789 = vmul.f32 %v537, %v781
        %v790 = vmul.f32 %v538, %v781
        %v791 = vmul.f32 %v539, %v781
        %v792 = vmul.f32 %v540, %v781
        %v793 = vmul.f32 %v541, %v781
        %v794 = vmul.f32 %v698, %v781
        %v795 = vmul.f32 %v699, %v781
        %v796 = vmul.f32 %v527, %v781
        %v797 = vadd.f32 %v762, %v782
        %v798 = vadd.f32 %v763, %v783
        %v799 = vadd.f32 %v764, %v784
        %v800 = vadd.f32 %v765, %v785
        %v801 = vadd.f32 %v766, %v786
        %v802 = vadd.f32 %v767, %v787
        %v803 = vadd.f32 %v768, %v788
        %v804 = vadd.f32 %v769, %v789
        %v805 = vadd.f32 %v770, %v790
        %v806 = vadd.f32 %v771, %v791
        %v807 = vadd.f32 %v772, %v792
        %v808 = vadd.f32 %v773, %v793
        %v809 = vadd.f32 %v774, %v794
        %v810 = vadd.f32 %v775, %v795
        %v811 = vadd.f32 %v776, %v796
        %v812 = vadd.f32 %v777, %v796
        %v813 = vlaneseq
        %v814 = vshrl.u32 %v813, 7
        %v815 = vsub.s32 1, %v814
        %v816 = vrot.slane %v459, %v815
        %v817 = vmul.f32 %v443, %v816
        %v818 = vmul.f32 %v444, %v816
        %v819 = vmul.f32 %v445, %v816
        %v820 = vmul.f32 %v446, %v816
        %v821 = vmul.f32 %v447, %v816
        %v822 = vmul.f32 %v448, %v816
        %v823 = vmul.f32 %v449, %v816
        %v824 = vmul.f32 %v450, %v816
        %v825 = vmul.f32 %v451, %v816
        %v826 = vmul.f32 %v452, %v816
        %v827 = vmul.f32 %v453, %v816
        %v828 = vmul.f32 %v454, %v816
        %v829 = vmul.f32 %v455, %v816
        %v830 = vmul.f32 %v456, %v816
        %v831 = vmul.f32 %v816, 0.0
        %v832 = vadd.f32 %v797, %v817
        %v833 = vadd.f32 %v798, %v818
        %v834 = vadd.f32 %v799, %v819
        %v835 = vadd.f32 %v800, %v820
        %v836 = vadd.f32 %v801, %v821
        %v837 = vadd.f32 %v802, %v822
        %v838 = vadd.f32 %v803, %v823
        %v839 = vadd.f32 %v804, %v824
        %v840 = vadd.f32 %v805, %v825
        %v841 = vadd.f32 %v806, %v826
        %v842 = vadd.f32 %v807, %v827
        %v843 = vadd.f32 %v808, %v828
        %v844 = vadd.f32 %v809, %v829
        %v845 = vadd.f32 %v810, %v830
        %v846 = vadd.f32 %v811, %v831
        %v847 = vadd.f32 %v812, %v831
        %v848 = vlaneseq
        %v849 = vshrl.u32 %v848, 7
        %v850 = vsub.s32 2, %v849
        %v851 = vrot.slane %v459, %v850
        %v852 = vmul.f32 %v645, %v851
        %v853 = vmul.f32 %v646, %v851
        %v854 = vmul.f32 %v647, %v851
        %v855 = vmul.f32 %v648, %v851
        %v856 = vmul.f32 %v649, %v851
        %v857 = vmul.f32 %v650, %v851
        %v858 = vmul.f32 %v651, %v851
        %v859 = vmul.f32 %v652, %v851
        %v860 = vmul.f32 %v653, %v851
        %v861 = vmul.f32 %v654, %v851
        %v862 = vmul.f32 %v655, %v851
        %v863 = vmul.f32 %v656, %v851
        %v864 = vmul.f32 %v740, %v851
        %v865 = vmul.f32 %v741, %v851
        %v866 = vmul.f32 %v642, %v851
        %v867 = vadd.f32 %v832, %v852
        %v868 = vadd.f32 %v833, %v853
        %v869 = vadd.f32 %v834, %v854
        %v870 = vadd.f32 %v835, %v855
        %v871 = vadd.f32 %v836, %v856
        %v872 = vadd.f32 %v837, %v857
        %v873 = vadd.f32 %v838, %v858
        %v874 = vadd.f32 %v839, %v859
        %v875 = vadd.f32 %v840, %v860
        %v876 = vadd.f32 %v841, %v861
        %v877 = vadd.f32 %v842, %v862
        %v878 = vadd.f32 %v843, %v863
        %v879 = vadd.f32 %v844, %v864
        %v880 = vadd.f32 %v845, %v865
        %v881 = vadd.f32 %v846, %v866
        %v882 = vadd.f32 %v847, %v866
        %v884 = vlaneseq
        %v885 = vshrl.u32 %v884, 7
        %v886 = vsub.s32 0, %v885
        %v887 = vrot.slane %v460, %v886
        %v889 = vadd.f32 %v867, %v887
        %v890 = vadd.f32 %v868, %v887
        %v891 = vadd.f32 %v869, %v887
        %v892 = vadd.f32 %v870, %v887
        %v893 = vadd.f32 %v871, %v887
        %v894 = vadd.f32 %v872, %v887
        %v895 = vadd.f32 %v873, %v887
        %v896 = vadd.f32 %v874, %v887
        %v897 = vadd.f32 %v875, %v887
        %v898 = vadd.f32 %v876, %v887
        %v899 = vadd.f32 %v877, %v887
        %v900 = vadd.f32 %v878, %v887
        %v901 = vadd.f32 %v879, %v887
        %v902 = vadd.f32 %v880, %v887
        %v903 = vadd.f32 %v881, %v887
        %v904 = vadd.f32 %v882, %v887
        %v905 = vld [vmem:[%s377] sm:$0x3]
        %v906 = vld [vmem:[%s377 + $0x2] sm:$0x3]
        %v907 = vld [vmem:[%s377 + $0x4] sm:$0x3]
        %v908 = vld [vmem:[%s377 + $0x6] sm:$0x3]
        %v909 = vld [vmem:[%s377 + $0x8] sm:$0x3]
        %v910 = vld [vmem:[%s377 + $0xa] sm:$0x3]
        %v911 = vld [vmem:[%s377 + $0xc] sm:$0x3]
        %v912 = vld [vmem:[%s377 + $0xe] sm:$0x3]
        %v913 = vld [vmem:[%s377 + $0x10] sm:$0x3]
        %v914 = vld [vmem:[%s377 + $0x12] sm:$0x3]
        %v915 = vld [vmem:[%s377 + $0x14] sm:$0x3]
        %v916 = vld [vmem:[%s377 + $0x16] sm:$0x3]
        %v917 = vld [vmem:[%s377 + $0x18] sm:$0x3]
        %v918 = vld [vmem:[%s377 + $0x1a] sm:$0x3]
        %v919 = vld [vmem:[%s377 + $0x1c] sm:$0x3]
        %v920 = vld [vmem:[%s377 + $0x1e] sm:$0x3]
        %v921 = vmul.f32 %v905, 0.35355338
        %v922 = vmul.f32 %v906, 0.35355338
        %v923 = vmul.f32 %v907, 0.35355338
        %v924 = vmul.f32 %v908, 0.35355338
        %v925 = vmul.f32 %v909, 0.35355338
        %v926 = vmul.f32 %v910, 0.35355338
        %v927 = vmul.f32 %v911, 0.35355338
        %v928 = vmul.f32 %v912, 0.35355338
        %v929 = vmul.f32 %v913, 0.35355338
        %v930 = vmul.f32 %v914, 0.35355338
        %v931 = vmul.f32 %v915, 0.35355338
        %v932 = vmul.f32 %v916, 0.35355338
        %v933 = vmul.f32 %v917, 0.35355338
        %v934 = vmul.f32 %v918, 0.35355338
        %v935 = vmul.f32 %v919, 0.35355338
        %v936 = vmul.f32 %v920, 0.35355338
        %v937 = vpack.c.bf16 %v921, %v921
        %v938 = vpack.c.bf16 %v922, %v922
        %v939 = vpack.c.bf16 %v923, %v923
        %v940 = vpack.c.bf16 %v924, %v924
        %v941 = vpack.c.bf16 %v925, %v925
        %v942 = vpack.c.bf16 %v926, %v926
        %v943 = vpack.c.bf16 %v927, %v927
        %v944 = vpack.c.bf16 %v928, %v928
        %v945 = vpack.c.bf16 %v929, %v929
        %v946 = vpack.c.bf16 %v930, %v930
        %v947 = vpack.c.bf16 %v931, %v931
        %v948 = vpack.c.bf16 %v932, %v932
        %v949 = vpack.c.bf16 %v933, %v933
        %v950 = vpack.c.bf16 %v934, %v934
        %v951 = vpack.c.bf16 %v935, %v935
        %v952 = vpack.c.bf16 %v936, %v936
        %v953 = vld [vmem:[%s386] sm:$0x3]
        %v954 = vld [vmem:[%s386 + $0x2] sm:$0x3]
        %v955 = vld [vmem:[%s386 + $0x4] sm:$0x3]
        %v956 = vld [vmem:[%s386 + $0x6] sm:$0x3]
        %v957 = vld [vmem:[%s386 + $0x8] sm:$0x3]
        %v958 = vld [vmem:[%s386 + $0xa] sm:$0x3]
        %v959 = vld [vmem:[%s386 + $0xc] sm:$0x3]
        %v960 = vld [vmem:[%s386 + $0xe] sm:$0x3]
        %v961 = vld [vmem:[%s386 + $0x10] sm:$0x3]
        %v962 = vld [vmem:[%s386 + $0x12] sm:$0x3]
        %v963 = vld [vmem:[%s386 + $0x14] sm:$0x3]
        %v964 = vld [vmem:[%s386 + $0x16] sm:$0x3]
        %v965 = vld [vmem:[%s386 + $0x18] sm:$0x3]
        %v966 = vld [vmem:[%s386 + $0x1a] sm:$0x3]
        %v967 = vld [vmem:[%s386 + $0x1c] sm:$0x3]
        %v968 = vld [vmem:[%s386 + $0x1e] sm:$0x3]
        %v969 = vpack.c.bf16 %v953, %v953
        %v970 = vpack.c.bf16 %v954, %v954
        %v971 = vpack.c.bf16 %v955, %v955
        %v972 = vpack.c.bf16 %v956, %v956
        %v973 = vpack.c.bf16 %v957, %v957
        %v974 = vpack.c.bf16 %v958, %v958
        %v975 = vpack.c.bf16 %v959, %v959
        %v976 = vpack.c.bf16 %v960, %v960
        %v977 = vpack.c.bf16 %v961, %v961
        %v978 = vpack.c.bf16 %v962, %v962
        %v979 = vpack.c.bf16 %v963, %v963
        %v980 = vpack.c.bf16 %v964, %v964
        %v981 = vpack.c.bf16 %v965, %v965
        %v982 = vpack.c.bf16 %v966, %v966
        %v983 = vpack.c.bf16 %v967, %v967
        %v984 = vpack.c.bf16 %v968, %v968
        %v985 = vpack.c.bf16 %v441, %v441
        %v986 = vpack.c.bf16 %v442, %v442
        %v987 = vpack.c.bf16 %v443, %v443
        %v988 = vpack.c.bf16 %v444, %v444
        %v989 = vpack.c.bf16 %v445, %v445
        %v990 = vpack.c.bf16 %v446, %v446
        %v991 = vpack.c.bf16 %v447, %v447
        %v992 = vpack.c.bf16 %v448, %v448
        %v993 = vpack.c.bf16 %v449, %v449
        %v994 = vpack.c.bf16 %v450, %v450
        %v995 = vpack.c.bf16 %v451, %v451
        %v996 = vpack.c.bf16 %v452, %v452
        %v997 = vpack.c.bf16 %v453, %v453
        %v998 = vpack.c.bf16 %v454, %v454
        %v999 = vpack.c.bf16 %v455, %v455
        %v1000 = vpack.c.bf16 %v456, %v456
        %v1009 = vcombine.low %v937, %v939
        %v1010 = vcombine.low %v941, %v943
        %v1011 = vcombine.low %v945, %v947
        %v1012 = vcombine.low %v949, %v951
        %v1014 = vunpack.c.l.s4 1966171168
        %v1015 = vunpack.c.0.s8 %v1014
        %v1016 = vlaneseq
        %v1017 = vshrl.u32 %v1016, 7
        %v1018 = vsub.s32 %v1015, %v1017
        %v1019 = vrot.slane %v1009, %v1018
        %v1021 = vunpack.c.l.s4 1966171168
        %v1022 = vunpack.c.0.s8 %v1021
        %v1023 = vlaneseq
        %v1024 = vshrl.u32 %v1023, 7
        %v1025 = vsub.s32 %v1022, %v1024
        %v1026 = vrot.slane %v1010, %v1025
        %v1028 = vunpack.c.l.s4 1966171168
        %v1029 = vunpack.c.0.s8 %v1028
        %v1030 = vlaneseq
        %v1031 = vshrl.u32 %v1030, 7
        %v1032 = vsub.s32 %v1029, %v1031
        %v1033 = vrot.slane %v1011, %v1032
        %v1035 = vunpack.c.l.s4 1966171168
        %v1036 = vunpack.c.0.s8 %v1035
        %v1037 = vlaneseq
        %v1038 = vshrl.u32 %v1037, 7
        %v1039 = vsub.s32 %v1036, %v1038
        %v1040 = vrot.slane %v1012, %v1039
        %v1041 = vcombine.low %v1019, %v1026
        %v1042 = vcombine.low %v1033, %v1040
        %v1044 = vunpack.c.l.s4 1966171168
        %v1045 = vunpack.c.0.s8 %v1044
        %v1046 = vlaneseq
        %v1047 = vshrl.u32 %v1046, 7
        %v1048 = vsub.s32 %v1045, %v1047
        %v1049 = vrot.slane %v1041, %v1048
        %v1051 = vunpack.c.l.s4 1966171168
        %v1052 = vunpack.c.0.s8 %v1051
        %v1053 = vlaneseq
        %v1054 = vshrl.u32 %v1053, 7
        %v1055 = vsub.s32 %v1052, %v1054
        %v1056 = vrot.slane %v1042, %v1055
        %v1057 = vcombine.low %v1049, %v1056
        %v1066 = vcombine.low %v969, %v971
        %v1067 = vcombine.low %v973, %v975
        %v1068 = vcombine.low %v977, %v979
        %v1069 = vcombine.low %v981, %v983
        %v1071 = vunpack.c.l.s4 1966171168
        %v1072 = vunpack.c.0.s8 %v1071
        %v1073 = vlaneseq
        %v1074 = vshrl.u32 %v1073, 7
        %v1075 = vsub.s32 %v1072, %v1074
        %v1076 = vrot.slane %v1066, %v1075
        %v1078 = vunpack.c.l.s4 1966171168
        %v1079 = vunpack.c.0.s8 %v1078
        %v1080 = vlaneseq
        %v1081 = vshrl.u32 %v1080, 7
        %v1082 = vsub.s32 %v1079, %v1081
        %v1083 = vrot.slane %v1067, %v1082
        %v1085 = vunpack.c.l.s4 1966171168
        %v1086 = vunpack.c.0.s8 %v1085
        %v1087 = vlaneseq
        %v1088 = vshrl.u32 %v1087, 7
        %v1089 = vsub.s32 %v1086, %v1088
        %v1090 = vrot.slane %v1068, %v1089
        %v1092 = vunpack.c.l.s4 1966171168
        %v1093 = vunpack.c.0.s8 %v1092
        %v1094 = vlaneseq
        %v1095 = vshrl.u32 %v1094, 7
        %v1096 = vsub.s32 %v1093, %v1095
        %v1097 = vrot.slane %v1069, %v1096
        %v1098 = vcombine.low %v1076, %v1083
        %v1099 = vcombine.low %v1090, %v1097
        %v1101 = vunpack.c.l.s4 1966171168
        %v1102 = vunpack.c.0.s8 %v1101
        %v1103 = vlaneseq
        %v1104 = vshrl.u32 %v1103, 7
        %v1105 = vsub.s32 %v1102, %v1104
        %v1106 = vrot.slane %v1098, %v1105
        %v1108 = vunpack.c.l.s4 1966171168
        %v1109 = vunpack.c.0.s8 %v1108
        %v1110 = vlaneseq
        %v1111 = vshrl.u32 %v1110, 7
        %v1112 = vsub.s32 %v1109, %v1111
        %v1113 = vrot.slane %v1099, %v1112
        %v1114 = vcombine.low %v1106, %v1113
        %vm1115 = vcmask 64512
        %v1117 = vsel %vm1115, %v1057, 0
        %v1120 = vsel %vm1115, %v1114, 0
        %1122 = vmatprep.subr.bf16.mxu0 0
        %1123 = vmatpush1.bf16.xpose.msra.mxu0 %v1120
        %1124 = vmatprep.subr.bf16.mxu0 0
        %1125 = vmatpush1.bf16.xpose.msra.mxu0 0
        %1126 = vmatprep.subr.bf16.mxu0 0
        %1127 = vmatpush1.bf16.xpose.msra.mxu0 0
        %1128 = vmatprep.subr.bf16.mxu0 0
        %1129 = vmatpush1.bf16.xpose.msra.mxu0 0
        %1130 = vmatprep.subr.bf16.mxu0 0
        %1131 = vmatpush1.bf16.xpose.msra.mxu0 0
        %1132 = vmatprep.subr.bf16.mxu0 0
        %1133 = vmatpush1.bf16.xpose.msra.mxu0 0
        %1134 = vmatprep.subr.bf16.mxu0 0
        %1135 = vmatpush1.bf16.xpose.msra.mxu0 0
        %1136 = vmatprep.subr.bf16.mxu0 0
        %1137 = vmatpush1.bf16.xpose.msra.mxu0 0
        %1138 = vmatprep.subr.bf16.mxu0 0
        %1139 = vmatpush1.bf16.xpose.msra.mxu0 0
        %1140 = vmatprep.subr.bf16.mxu0 0
        %1141 = vmatpush1.bf16.xpose.msra.mxu0 0
        %1142 = vmatprep.subr.bf16.mxu0 0
        %1143 = vmatpush1.bf16.xpose.msra.mxu0 0
        %1144 = vmatprep.subr.bf16.mxu0 0
        %1145 = vmatpush1.bf16.xpose.msra.mxu0 0
        %1146 = vmatprep.subr.bf16.mxu0 0
        %1147 = vmatpush1.bf16.xpose.msra.mxu0 0
        %1148 = vmatprep.subr.bf16.mxu0 0
        %1149 = vmatpush1.bf16.xpose.msra.mxu0 0
        %1150 = vmatprep.subr.bf16.mxu0 0
        %1151 = vmatpush1.bf16.xpose.msra.mxu0 0
        %1152 = vmatprep.subr.bf16.mxu0 0
        %1153 = vmatpush1.bf16.xpose.msra.mxu0 0
        %1154 = vmatprep.mubr.bf16.mxu0 0
        %1155 = vmatmul.mubr.bf16.gmra.mrb[0].mxu0 %v1117
        %v1156 = vpop.f32.mrb[0].mxu0
        %v1157 = vadd.f32 0.0, %v1156
        %v1158 = vpop.f32.mrb[0].mxu0
        %v1159 = vpop.f32.mrb[0].mxu0
        %v1160 = vadd.f32 0.0, %v1159
        %v1161 = vpop.f32.mrb[0].mxu0
        %1162 = vdwg.mxu0
        %vm1163 = vcmask 130048
        %v1164 = vsel %vm1163, %v1157, -inf
        %1165 = vmax.xlane.f32.xlu0 %v1164
        %v1166 = vpop.xlane.xlu0 %1165
        %v1167 = vsel %vm1163, %v1160, -inf
        %1168 = vmax.xlane.f32.xlu0 %v1167
        %v1169 = vpop.xlane.xlu0 %1168
        %v1170 = vsub.f32 %v1157, %v1166
        %v1171 = vsub.f32 %v1160, %v1169
        %v1172 = vmul.f32 %v1170, 1.442695
        %v1173 = vpow.pop %v1172
        %v1174 = vmul.f32 %v1171, 1.442695
        %v1175 = vpow.pop %v1174
        %v1176 = vsel %vm1163, %v1173, 0.0
        %1177 = vadd.xlane.f32.xlu0 %v1176
        %v1178 = vpop.xlane.xlu0 %1177
        %v1179 = vsel %vm1163, %v1175, 0.0
        %1180 = vadd.xlane.f32.xlu0 %v1179
        %v1181 = vpop.xlane.xlu0 %1180
        %v1182 = vrcp.pop %v1178
        %v1183 = vrcp.pop %v1181
        %v1184 = vmul.f32 %v1178, %v1182
        %v1185 = vmul.f32 %v1181, %v1183
        %v1186 = vsub.f32 2.0, %v1184
        %v1187 = vsub.f32 2.0, %v1185
        %v1188 = vmul.f32 %v1182, %v1186
        %v1189 = vmul.f32 %v1183, %v1187
        %v1190 = vmul.f32 %v1173, %v1188
        %v1191 = vmul.f32 %v1175, %v1189
        %v1192 = vpack.c.bf16 %v1191, %v1190
        %v1201 = vcombine.low %v985, %v987
        %v1202 = vcombine.low %v989, %v991
        %v1203 = vcombine.low %v993, %v995
        %v1204 = vcombine.low %v997, %v999
        %v1206 = vunpack.c.l.s4 1966171168
        %v1207 = vunpack.c.0.s8 %v1206
        %v1208 = vlaneseq
        %v1209 = vshrl.u32 %v1208, 7
        %v1210 = vsub.s32 %v1207, %v1209
        %v1211 = vrot.slane %v1201, %v1210
        %v1213 = vunpack.c.l.s4 1966171168
        %v1214 = vunpack.c.0.s8 %v1213
        %v1215 = vlaneseq
        %v1216 = vshrl.u32 %v1215, 7
        %v1217 = vsub.s32 %v1214, %v1216
        %v1218 = vrot.slane %v1202, %v1217
        %v1220 = vunpack.c.l.s4 1966171168
        %v1221 = vunpack.c.0.s8 %v1220
        %v1222 = vlaneseq
        %v1223 = vshrl.u32 %v1222, 7
        %v1224 = vsub.s32 %v1221, %v1223
        %v1225 = vrot.slane %v1203, %v1224
        %v1227 = vunpack.c.l.s4 1966171168
        %v1228 = vunpack.c.0.s8 %v1227
        %v1229 = vlaneseq
        %v1230 = vshrl.u32 %v1229, 7
        %v1231 = vsub.s32 %v1228, %v1230
        %v1232 = vrot.slane %v1204, %v1231
        %v1233 = vcombine.low %v1211, %v1218
        %v1234 = vcombine.low %v1225, %v1232
        %v1236 = vunpack.c.l.s4 1966171168
        %v1237 = vunpack.c.0.s8 %v1236
        %v1238 = vlaneseq
        %v1239 = vshrl.u32 %v1238, 7
        %v1240 = vsub.s32 %v1237, %v1239
        %v1241 = vrot.slane %v1233, %v1240
        %v1243 = vunpack.c.l.s4 1966171168
        %v1244 = vunpack.c.0.s8 %v1243
        %v1245 = vlaneseq
        %v1246 = vshrl.u32 %v1245, 7
        %v1247 = vsub.s32 %v1244, %v1246
        %v1248 = vrot.slane %v1234, %v1247
        %v1249 = vcombine.low %v1241, %v1248
        %v1252 = vsel %vm1163, %v1192, 0
        %1254 = vmatprep.subr.bf16.mxu0 0
        %1255 = vmatpush1.bf16.msra.mxu0 %v1249
        %1256 = vmatprep.subr.bf16.mxu0 0
        %1257 = vmatpush1.bf16.msra.mxu0 0
        %1258 = vmatprep.subr.bf16.mxu0 0
        %1259 = vmatpush1.bf16.msra.mxu0 0
        %1260 = vmatprep.subr.bf16.mxu0 0
        %1261 = vmatpush1.bf16.msra.mxu0 0
        %1262 = vmatprep.subr.bf16.mxu0 0
        %1263 = vmatpush1.bf16.msra.mxu0 0
        %1264 = vmatprep.subr.bf16.mxu0 0
        %1265 = vmatpush1.bf16.msra.mxu0 0
        %1266 = vmatprep.subr.bf16.mxu0 0
        %1267 = vmatpush1.bf16.msra.mxu0 0
        %1268 = vmatprep.subr.bf16.mxu0 0
        %1269 = vmatpush1.bf16.msra.mxu0 0
        %1270 = vmatprep.subr.bf16.mxu0 0
        %1271 = vmatpush1.bf16.msra.mxu0 0
        %1272 = vmatprep.subr.bf16.mxu0 0
        %1273 = vmatpush1.bf16.msra.mxu0 0
        %1274 = vmatprep.subr.bf16.mxu0 0
        %1275 = vmatpush1.bf16.msra.mxu0 0
        %1276 = vmatprep.subr.bf16.mxu0 0
        %1277 = vmatpush1.bf16.msra.mxu0 0
        %1278 = vmatprep.subr.bf16.mxu0 0
        %1279 = vmatpush1.bf16.msra.mxu0 0
        %1280 = vmatprep.subr.bf16.mxu0 0
        %1281 = vmatpush1.bf16.msra.mxu0 0
        %1282 = vmatprep.subr.bf16.mxu0 0
        %1283 = vmatpush1.bf16.msra.mxu0 0
        %1284 = vmatprep.subr.bf16.mxu0 0
        %1285 = vmatpush1.bf16.msra.mxu0 0
        %1286 = vmatprep.mubr.bf16.mxu0 0
        %1287 = vmatmul.mubr.bf16.gmra.mrb[0].mxu0 %v1252
        %v1288 = vpop.f32.mrb[0].mxu0
        %v1289 = vadd.f32 0.0, %v1288
        %v1290 = vpop.f32.mrb[0].mxu0
        %v1291 = vpop.f32.mrb[0].mxu0
        %v1292 = vadd.f32 0.0, %v1291
        %v1293 = vpop.f32.mrb[0].mxu0
        %1294 = vdwg.mxu0
        %1295 = vrot.lane.b32.xlu0 %v1057, 120
        %v1296 = vpop.permute.xlu0 %1295
        %1297 = vrot.lane.b32.xlu0 %v1114, 120
        %v1298 = vpop.permute.xlu0 %1297
        %v1300 = vsel %vm1115, %v1296, 0
        %v1303 = vsel %vm1115, %v1298, 0
        %1305 = vmatprep.subr.bf16.mxu0 0
        %1306 = vmatpush1.bf16.xpose.msra.mxu0 %v1303
        %1307 = vmatprep.subr.bf16.mxu0 0
        %1308 = vmatpush1.bf16.xpose.msra.mxu0 0
        %1309 = vmatprep.subr.bf16.mxu0 0
        %1310 = vmatpush1.bf16.xpose.msra.mxu0 0
        %1311 = vmatprep.subr.bf16.mxu0 0
        %1312 = vmatpush1.bf16.xpose.msra.mxu0 0
        %1313 = vmatprep.subr.bf16.mxu0 0
        %1314 = vmatpush1.bf16.xpose.msra.mxu0 0
        %1315 = vmatprep.subr.bf16.mxu0 0
        %1316 = vmatpush1.bf16.xpose.msra.mxu0 0
        %1317 = vmatprep.subr.bf16.mxu0 0
        %1318 = vmatpush1.bf16.xpose.msra.mxu0 0
        %1319 = vmatprep.subr.bf16.mxu0 0
        %1320 = vmatpush1.bf16.xpose.msra.mxu0 0
        %1321 = vmatprep.subr.bf16.mxu0 0
        %1322 = vmatpush1.bf16.xpose.msra.mxu0 0
        %1323 = vmatprep.subr.bf16.mxu0 0
        %1324 = vmatpush1.bf16.xpose.msra.mxu0 0
        %1325 = vmatprep.subr.bf16.mxu0 0
        %1326 = vmatpush1.bf16.xpose.msra.mxu0 0
        %1327 = vmatprep.subr.bf16.mxu0 0
        %1328 = vmatpush1.bf16.xpose.msra.mxu0 0
        %1329 = vmatprep.subr.bf16.mxu0 0
        %1330 = vmatpush1.bf16.xpose.msra.mxu0 0
        %1331 = vmatprep.subr.bf16.mxu0 0
        %1332 = vmatpush1.bf16.xpose.msra.mxu0 0
        %1333 = vmatprep.subr.bf16.mxu0 0
        %1334 = vmatpush1.bf16.xpose.msra.mxu0 0
        %1335 = vmatprep.subr.bf16.mxu0 0
        %1336 = vmatpush1.bf16.xpose.msra.mxu0 0
        %1337 = vmatprep.mubr.bf16.mxu0 0
        %1338 = vmatmul.mubr.bf16.gmra.mrb[0].mxu0 %v1300
        %v1339 = vpop.f32.mrb[0].mxu0
        %v1340 = vadd.f32 0.0, %v1339
        %v1341 = vpop.f32.mrb[0].mxu0
        %v1342 = vpop.f32.mrb[0].mxu0
        %v1343 = vadd.f32 0.0, %v1342
        %v1344 = vpop.f32.mrb[0].mxu0
        %1345 = vdwg.mxu0
        %v1346 = vsel %vm1163, %v1340, -inf
        %1347 = vmax.xlane.f32.xlu0 %v1346
        %v1348 = vpop.xlane.xlu0 %1347
        %v1349 = vsel %vm1163, %v1343, -inf
        %1350 = vmax.xlane.f32.xlu0 %v1349
        %v1351 = vpop.xlane.xlu0 %1350
        %v1352 = vsub.f32 %v1340, %v1348
        %v1353 = vsub.f32 %v1343, %v1351
        %v1354 = vmul.f32 %v1352, 1.442695
        %v1355 = vpow.pop %v1354
        %v1356 = vmul.f32 %v1353, 1.442695
        %v1357 = vpow.pop %v1356
        %v1358 = vsel %vm1163, %v1355, 0.0
        %1359 = vadd.xlane.f32.xlu0 %v1358
        %v1360 = vpop.xlane.xlu0 %1359
        %v1361 = vsel %vm1163, %v1357, 0.0
        %1362 = vadd.xlane.f32.xlu0 %v1361
        %v1363 = vpop.xlane.xlu0 %1362
        %v1364 = vrcp.pop %v1360
        %v1365 = vrcp.pop %v1363
        %v1366 = vmul.f32 %v1360, %v1364
        %v1367 = vmul.f32 %v1363, %v1365
        %v1368 = vsub.f32 2.0, %v1366
        %v1369 = vsub.f32 2.0, %v1367
        %v1370 = vmul.f32 %v1364, %v1368
        %v1371 = vmul.f32 %v1365, %v1369
        %v1372 = vmul.f32 %v1355, %v1370
        %v1373 = vmul.f32 %v1357, %v1371
        %v1374 = vpack.c.bf16 %v1373, %v1372
        %1375 = vrot.lane.b32.xlu0 %v1249, 120
        %v1376 = vpop.permute.xlu0 %1375
        %v1379 = vsel %vm1163, %v1374, 0
        %1381 = vmatprep.subr.bf16.mxu0 0
        %1382 = vmatpush1.bf16.msra.mxu0 %v1376
        %1383 = vmatprep.subr.bf16.mxu0 0
        %1384 = vmatpush1.bf16.msra.mxu0 0
        %1385 = vmatprep.subr.bf16.mxu0 0
        %1386 = vmatpush1.bf16.msra.mxu0 0
        %1387 = vmatprep.subr.bf16.mxu0 0
        %1388 = vmatpush1.bf16.msra.mxu0 0
        %1389 = vmatprep.subr.bf16.mxu0 0
        %1390 = vmatpush1.bf16.msra.mxu0 0
        %1391 = vmatprep.subr.bf16.mxu0 0
        %1392 = vmatpush1.bf16.msra.mxu0 0
        %1393 = vmatprep.subr.bf16.mxu0 0
        %1394 = vmatpush1.bf16.msra.mxu0 0
        %1395 = vmatprep.subr.bf16.mxu0 0
        %1396 = vmatpush1.bf16.msra.mxu0 0
        %1397 = vmatprep.subr.bf16.mxu0 0
        %1398 = vmatpush1.bf16.msra.mxu0 0
        %1399 = vmatprep.subr.bf16.mxu0 0
        %1400 = vmatpush1.bf16.msra.mxu0 0
        %1401 = vmatprep.subr.bf16.mxu0 0
        %1402 = vmatpush1.bf16.msra.mxu0 0
        %1403 = vmatprep.subr.bf16.mxu0 0
        %1404 = vmatpush1.bf16.msra.mxu0 0
        %1405 = vmatprep.subr.bf16.mxu0 0
        %1406 = vmatpush1.bf16.msra.mxu0 0
        %1407 = vmatprep.subr.bf16.mxu0 0
        %1408 = vmatpush1.bf16.msra.mxu0 0
        %1409 = vmatprep.subr.bf16.mxu0 0
        %1410 = vmatpush1.bf16.msra.mxu0 0
        %1411 = vmatprep.subr.bf16.mxu0 0
        %1412 = vmatpush1.bf16.msra.mxu0 0
        %1413 = vmatprep.mubr.bf16.mxu0 0
        %1414 = vmatmul.mubr.bf16.gmra.mrb[0].mxu0 %v1379
        %v1415 = vpop.f32.mrb[0].mxu0
        %v1416 = vadd.f32 0.0, %v1415
        %v1417 = vpop.f32.mrb[0].mxu0
        %v1418 = vpop.f32.mrb[0].mxu0
        %v1419 = vadd.f32 0.0, %v1418
        %v1420 = vpop.f32.mrb[0].mxu0
        %1421 = vdwg.mxu0
        %1422 = vrot.lane.b32.xlu0 %v1057, 112
        %v1423 = vpop.permute.xlu0 %1422
        %1424 = vrot.lane.b32.xlu0 %v1114, 112
        %v1425 = vpop.permute.xlu0 %1424
        %v1427 = vsel %vm1115, %v1423, 0
        %v1430 = vsel %vm1115, %v1425, 0
        %1432 = vmatprep.subr.bf16.mxu0 0
        %1433 = vmatpush1.bf16.xpose.msra.mxu0 %v1430
        %1434 = vmatprep.subr.bf16.mxu0 0
        %1435 = vmatpush1.bf16.xpose.msra.mxu0 0
        %1436 = vmatprep.subr.bf16.mxu0 0
        %1437 = vmatpush1.bf16.xpose.msra.mxu0 0
        %1438 = vmatprep.subr.bf16.mxu0 0
        %1439 = vmatpush1.bf16.xpose.msra.mxu0 0
        %1440 = vmatprep.subr.bf16.mxu0 0
        %1441 = vmatpush1.bf16.xpose.msra.mxu0 0
        %1442 = vmatprep.subr.bf16.mxu0 0
        %1443 = vmatpush1.bf16.xpose.msra.mxu0 0
        %1444 = vmatprep.subr.bf16.mxu0 0
        %1445 = vmatpush1.bf16.xpose.msra.mxu0 0
        %1446 = vmatprep.subr.bf16.mxu0 0
        %1447 = vmatpush1.bf16.xpose.msra.mxu0 0
        %1448 = vmatprep.subr.bf16.mxu0 0
        %1449 = vmatpush1.bf16.xpose.msra.mxu0 0
        %1450 = vmatprep.subr.bf16.mxu0 0
        %1451 = vmatpush1.bf16.xpose.msra.mxu0 0
        %1452 = vmatprep.subr.bf16.mxu0 0
        %1453 = vmatpush1.bf16.xpose.msra.mxu0 0
        %1454 = vmatprep.subr.bf16.mxu0 0
        %1455 = vmatpush1.bf16.xpose.msra.mxu0 0
        %1456 = vmatprep.subr.bf16.mxu0 0
        %1457 = vmatpush1.bf16.xpose.msra.mxu0 0
        %1458 = vmatprep.subr.bf16.mxu0 0
        %1459 = vmatpush1.bf16.xpose.msra.mxu0 0
        %1460 = vmatprep.subr.bf16.mxu0 0
        %1461 = vmatpush1.bf16.xpose.msra.mxu0 0
        %1462 = vmatprep.subr.bf16.mxu0 0
        %1463 = vmatpush1.bf16.xpose.msra.mxu0 0
        %1464 = vmatprep.mubr.bf16.mxu0 0
        %1465 = vmatmul.mubr.bf16.gmra.mrb[0].mxu0 %v1427
        %v1466 = vpop.f32.mrb[0].mxu0
        %v1467 = vadd.f32 0.0, %v1466
        %v1468 = vpop.f32.mrb[0].mxu0
        %v1469 = vpop.f32.mrb[0].mxu0
        %v1470 = vadd.f32 0.0, %v1469
        %v1471 = vpop.f32.mrb[0].mxu0
        %1472 = vdwg.mxu0
        %v1473 = vsel %vm1163, %v1467, -inf
        %1474 = vmax.xlane.f32.xlu0 %v1473
        %v1475 = vpop.xlane.xlu0 %1474
        %v1476 = vsel %vm1163, %v1470, -inf
        %1477 = vmax.xlane.f32.xlu0 %v1476
        %v1478 = vpop.xlane.xlu0 %1477
        %v1479 = vsub.f32 %v1467, %v1475
        %v1480 = vsub.f32 %v1470, %v1478
        %v1481 = vmul.f32 %v1479, 1.442695
        %v1482 = vpow.pop %v1481
        %v1483 = vmul.f32 %v1480, 1.442695
        %v1484 = vpow.pop %v1483
        %v1485 = vsel %vm1163, %v1482, 0.0
        %1486 = vadd.xlane.f32.xlu0 %v1485
        %v1487 = vpop.xlane.xlu0 %1486
        %v1488 = vsel %vm1163, %v1484, 0.0
        %1489 = vadd.xlane.f32.xlu0 %v1488
        %v1490 = vpop.xlane.xlu0 %1489
        %v1491 = vrcp.pop %v1487
        %v1492 = vrcp.pop %v1490
        %v1493 = vmul.f32 %v1487, %v1491
        %v1494 = vmul.f32 %v1490, %v1492
        %v1495 = vsub.f32 2.0, %v1493
        %v1496 = vsub.f32 2.0, %v1494
        %v1497 = vmul.f32 %v1491, %v1495
        %v1498 = vmul.f32 %v1492, %v1496
        %v1499 = vmul.f32 %v1482, %v1497
        %v1500 = vmul.f32 %v1484, %v1498
        %v1501 = vpack.c.bf16 %v1500, %v1499
        %1502 = vrot.lane.b32.xlu0 %v1249, 112
        %v1503 = vpop.permute.xlu0 %1502
        %v1506 = vsel %vm1163, %v1501, 0
        %1508 = vmatprep.subr.bf16.mxu0 0
        %1509 = vmatpush1.bf16.msra.mxu0 %v1503
        %1510 = vmatprep.subr.bf16.mxu0 0
        %1511 = vmatpush1.bf16.msra.mxu0 0
        %1512 = vmatprep.subr.bf16.mxu0 0
        %1513 = vmatpush1.bf16.msra.mxu0 0
        %1514 = vmatprep.subr.bf16.mxu0 0
        %1515 = vmatpush1.bf16.msra.mxu0 0
        %1516 = vmatprep.subr.bf16.mxu0 0
        %1517 = vmatpush1.bf16.msra.mxu0 0
        %1518 = vmatprep.subr.bf16.mxu0 0
        %1519 = vmatpush1.bf16.msra.mxu0 0
        %1520 = vmatprep.subr.bf16.mxu0 0
        %1521 = vmatpush1.bf16.msra.mxu0 0
        %1522 = vmatprep.subr.bf16.mxu0 0
        %1523 = vmatpush1.bf16.msra.mxu0 0
        %1524 = vmatprep.subr.bf16.mxu0 0
        %1525 = vmatpush1.bf16.msra.mxu0 0
        %1526 = vmatprep.subr.bf16.mxu0 0
        %1527 = vmatpush1.bf16.msra.mxu0 0
        %1528 = vmatprep.subr.bf16.mxu0 0
        %1529 = vmatpush1.bf16.msra.mxu0 0
        %1530 = vmatprep.subr.bf16.mxu0 0
        %1531 = vmatpush1.bf16.msra.mxu0 0
        %1532 = vmatprep.subr.bf16.mxu0 0
        %1533 = vmatpush1.bf16.msra.mxu0 0
        %1534 = vmatprep.subr.bf16.mxu0 0
        %1535 = vmatpush1.bf16.msra.mxu0 0
        %1536 = vmatprep.subr.bf16.mxu0 0
        %1537 = vmatpush1.bf16.msra.mxu0 0
        %1538 = vmatprep.subr.bf16.mxu0 0
        %1539 = vmatpush1.bf16.msra.mxu0 0
        %1540 = vmatprep.mubr.bf16.mxu0 0
        %1541 = vmatmul.mubr.bf16.gmra.mrb[0].mxu0 %v1506
        %v1542 = vpop.f32.mrb[0].mxu0
        %v1543 = vadd.f32 0.0, %v1542
        %v1544 = vpop.f32.mrb[0].mxu0
        %v1545 = vpop.f32.mrb[0].mxu0
        %v1546 = vadd.f32 0.0, %v1545
        %v1547 = vpop.f32.mrb[0].mxu0
        %1548 = vdwg.mxu0
        %1549 = vrot.lane.b32.xlu0 %v1057, 104
        %v1550 = vpop.permute.xlu0 %1549
        %1551 = vrot.lane.b32.xlu0 %v1114, 104
        %v1552 = vpop.permute.xlu0 %1551
        %v1554 = vsel %vm1115, %v1550, 0
        %v1557 = vsel %vm1115, %v1552, 0
        %1559 = vmatprep.subr.bf16.mxu0 0
        %1560 = vmatpush1.bf16.xpose.msra.mxu0 %v1557
        %1561 = vmatprep.subr.bf16.mxu0 0
        %1562 = vmatpush1.bf16.xpose.msra.mxu0 0
        %1563 = vmatprep.subr.bf16.mxu0 0
        %1564 = vmatpush1.bf16.xpose.msra.mxu0 0
        %1565 = vmatprep.subr.bf16.mxu0 0
        %1566 = vmatpush1.bf16.xpose.msra.mxu0 0
        %1567 = vmatprep.subr.bf16.mxu0 0
        %1568 = vmatpush1.bf16.xpose.msra.mxu0 0
        %1569 = vmatprep.subr.bf16.mxu0 0
        %1570 = vmatpush1.bf16.xpose.msra.mxu0 0
        %1571 = vmatprep.subr.bf16.mxu0 0
        %1572 = vmatpush1.bf16.xpose.msra.mxu0 0
        %1573 = vmatprep.subr.bf16.mxu0 0
        %1574 = vmatpush1.bf16.xpose.msra.mxu0 0
        %1575 = vmatprep.subr.bf16.mxu0 0
        %1576 = vmatpush1.bf16.xpose.msra.mxu0 0
        %1577 = vmatprep.subr.bf16.mxu0 0
        %1578 = vmatpush1.bf16.xpose.msra.mxu0 0
        %1579 = vmatprep.subr.bf16.mxu0 0
        %1580 = vmatpush1.bf16.xpose.msra.mxu0 0
        %1581 = vmatprep.subr.bf16.mxu0 0
        %1582 = vmatpush1.bf16.xpose.msra.mxu0 0
        %1583 = vmatprep.subr.bf16.mxu0 0
        %1584 = vmatpush1.bf16.xpose.msra.mxu0 0
        %1585 = vmatprep.subr.bf16.mxu0 0
        %1586 = vmatpush1.bf16.xpose.msra.mxu0 0
        %1587 = vmatprep.subr.bf16.mxu0 0
        %1588 = vmatpush1.bf16.xpose.msra.mxu0 0
        %1589 = vmatprep.subr.bf16.mxu0 0
        %1590 = vmatpush1.bf16.xpose.msra.mxu0 0
        %1591 = vmatprep.mubr.bf16.mxu0 0
        %1592 = vmatmul.mubr.bf16.gmra.mrb[0].mxu0 %v1554
        %v1593 = vpop.f32.mrb[0].mxu0
        %v1594 = vadd.f32 0.0, %v1593
        %v1595 = vpop.f32.mrb[0].mxu0
        %v1596 = vpop.f32.mrb[0].mxu0
        %v1597 = vadd.f32 0.0, %v1596
        %v1598 = vpop.f32.mrb[0].mxu0
        %1599 = vdwg.mxu0
        %v1600 = vsel %vm1163, %v1594, -inf
        %1601 = vmax.xlane.f32.xlu0 %v1600
        %v1602 = vpop.xlane.xlu0 %1601
        %v1603 = vsel %vm1163, %v1597, -inf
        %1604 = vmax.xlane.f32.xlu0 %v1603
        %v1605 = vpop.xlane.xlu0 %1604
        %v1606 = vsub.f32 %v1594, %v1602
        %v1607 = vsub.f32 %v1597, %v1605
        %v1608 = vmul.f32 %v1606, 1.442695
        %v1609 = vpow.pop %v1608
        %v1610 = vmul.f32 %v1607, 1.442695
        %v1611 = vpow.pop %v1610
        %v1612 = vsel %vm1163, %v1609, 0.0
        %1613 = vadd.xlane.f32.xlu0 %v1612
        %v1614 = vpop.xlane.xlu0 %1613
        %v1615 = vsel %vm1163, %v1611, 0.0
        %1616 = vadd.xlane.f32.xlu0 %v1615
        %v1617 = vpop.xlane.xlu0 %1616
        %v1618 = vrcp.pop %v1614
        %v1619 = vrcp.pop %v1617
        %v1620 = vmul.f32 %v1614, %v1618
        %v1621 = vmul.f32 %v1617, %v1619
        %v1622 = vsub.f32 2.0, %v1620
        %v1623 = vsub.f32 2.0, %v1621
        %v1624 = vmul.f32 %v1618, %v1622
        %v1625 = vmul.f32 %v1619, %v1623
        %v1626 = vmul.f32 %v1609, %v1624
        %v1627 = vmul.f32 %v1611, %v1625
        %v1628 = vpack.c.bf16 %v1627, %v1626
        %1629 = vrot.lane.b32.xlu0 %v1249, 104
        %v1630 = vpop.permute.xlu0 %1629
        %v1633 = vsel %vm1163, %v1628, 0
        %1635 = vmatprep.subr.bf16.mxu0 0
        %1636 = vmatpush1.bf16.msra.mxu0 %v1630
        %1637 = vmatprep.subr.bf16.mxu0 0
        %1638 = vmatpush1.bf16.msra.mxu0 0
        %1639 = vmatprep.subr.bf16.mxu0 0
        %1640 = vmatpush1.bf16.msra.mxu0 0
        %1641 = vmatprep.subr.bf16.mxu0 0
        %1642 = vmatpush1.bf16.msra.mxu0 0
        %1643 = vmatprep.subr.bf16.mxu0 0
        %1644 = vmatpush1.bf16.msra.mxu0 0
        %1645 = vmatprep.subr.bf16.mxu0 0
        %1646 = vmatpush1.bf16.msra.mxu0 0
        %1647 = vmatprep.subr.bf16.mxu0 0
        %1648 = vmatpush1.bf16.msra.mxu0 0
        %1649 = vmatprep.subr.bf16.mxu0 0
        %1650 = vmatpush1.bf16.msra.mxu0 0
        %1651 = vmatprep.subr.bf16.mxu0 0
        %1652 = vmatpush1.bf16.msra.mxu0 0
        %1653 = vmatprep.subr.bf16.mxu0 0
        %1654 = vmatpush1.bf16.msra.mxu0 0
        %1655 = vmatprep.subr.bf16.mxu0 0
        %1656 = vmatpush1.bf16.msra.mxu0 0
        %1657 = vmatprep.subr.bf16.mxu0 0
        %1658 = vmatpush1.bf16.msra.mxu0 0
        %1659 = vmatprep.subr.bf16.mxu0 0
        %1660 = vmatpush1.bf16.msra.mxu0 0
        %1661 = vmatprep.subr.bf16.mxu0 0
        %1662 = vmatpush1.bf16.msra.mxu0 0
        %1663 = vmatprep.subr.bf16.mxu0 0
        %1664 = vmatpush1.bf16.msra.mxu0 0
        %1665 = vmatprep.subr.bf16.mxu0 0
        %1666 = vmatpush1.bf16.msra.mxu0 0
        %1667 = vmatprep.mubr.bf16.mxu0 0
        %1668 = vmatmul.mubr.bf16.gmra.mrb[0].mxu0 %v1633
        %v1669 = vpop.f32.mrb[0].mxu0
        %v1670 = vadd.f32 0.0, %v1669
        %v1671 = vpop.f32.mrb[0].mxu0
        %v1672 = vpop.f32.mrb[0].mxu0
        %v1673 = vadd.f32 0.0, %v1672
        %v1674 = vpop.f32.mrb[0].mxu0
        %1675 = vdwg.mxu0
        %1678 = vrot.lane.b32.xlu0 %v1416, 8
        %v1679 = vpop.permute.xlu0 %1678
        %1680 = vrot.lane.b32.xlu0 %v1419, 8
        %v1681 = vpop.permute.xlu0 %1680
        %1686 = vrot.lane.b32.xlu0 %v1543, 16
        %v1687 = vpop.permute.xlu0 %1686
        %1688 = vrot.lane.b32.xlu0 %v1546, 16
        %v1689 = vpop.permute.xlu0 %1688
        %1694 = vrot.lane.b32.xlu0 %v1670, 24
        %v1695 = vpop.permute.xlu0 %1694
        %1696 = vrot.lane.b32.xlu0 %v1673, 24
        %v1697 = vpop.permute.xlu0 %1696
        %v1700 = vsel %vm1115, %v1289, %v1679
        %v1701 = vsel %vm1115, %v1292, %v1681
        %v1702 = vsel %vm1163, %v1700, %v1687
        %v1703 = vsel %vm1163, %v1701, %v1689
        %vm1704 = vcmask 195584
        %v1705 = vsel %vm1704, %v1702, %v1695
        %v1706 = vsel %vm1704, %v1703, %v1697
        %v1709 = vcombine.high %v1705, %v1705
        %v1711 = vunpack.c.l.s4 1983009808
        %v1712 = vunpack.c.0.s8 %v1711
        %v1713 = vlaneseq
        %v1714 = vshrl.u32 %v1713, 7
        %v1715 = vsub.s32 %v1712, %v1714
        %v1716 = vrot.slane %v1705, %v1715
        %v1718 = vunpack.c.l.s4 1983009808
        %v1719 = vunpack.c.0.s8 %v1718
        %v1720 = vlaneseq
        %v1721 = vshrl.u32 %v1720, 7
        %v1722 = vsub.s32 %v1719, %v1721
        %v1723 = vrot.slane %v1709, %v1722
        %v1724 = vcombine.high %v1716, %v1716
        %v1725 = vcombine.high %v1723, %v1723
        %v1726 = vcombine.high %v1706, %v1706
        %v1728 = vunpack.c.l.s4 1983009808
        %v1729 = vunpack.c.0.s8 %v1728
        %v1730 = vlaneseq
        %v1731 = vshrl.u32 %v1730, 7
        %v1732 = vsub.s32 %v1729, %v1731
        %v1733 = vrot.slane %v1706, %v1732
        %v1735 = vunpack.c.l.s4 1983009808
        %v1736 = vunpack.c.0.s8 %v1735
        %v1737 = vlaneseq
        %v1738 = vshrl.u32 %v1737, 7
        %v1739 = vsub.s32 %v1736, %v1738
        %v1740 = vrot.slane %v1726, %v1739
        %v1741 = vcombine.high %v1733, %v1733
        %v1742 = vcombine.high %v1740, %v1740
        %v1751 = vadd.f32 %v1716, %v889
        %v1752 = vadd.f32 %v1724, %v891
        %v1753 = vadd.f32 %v1723, %v893
        %v1754 = vadd.f32 %v1725, %v895
        %v1755 = vadd.f32 %v1733, %v897
        %v1756 = vadd.f32 %v1741, %v899
        %v1757 = vadd.f32 %v1740, %v901
        %v1758 = vadd.f32 %v1742, %v903
        %vm1759 = vcmask 254976
        %1760 = vst.msk [vmem:[%s435] sm:$0x3] %vm1759, %v1751
        %1761 = vst.msk [vmem:[%s435 + $0x4] sm:$0x3] %vm1759, %v1752
        %1762 = vst.msk [vmem:[%s435 + $0x8] sm:$0x3] %vm1759, %v1753
        %1763 = vst.msk [vmem:[%s435 + $0xc] sm:$0x3] %vm1759, %v1754
        %1764 = vst.msk [vmem:[%s435 + $0x10] sm:$0x3] %vm1759, %v1755
        %1765 = vst.msk [vmem:[%s435 + $0x14] sm:$0x3] %vm1759, %v1756
        %1766 = vst.msk [vmem:[%s435 + $0x18] sm:$0x3] %vm1759, %v1757
        %1767 = vst.msk [vmem:[%s435 + $0x1c] sm:$0x3] %vm1759, %v1758
        %v1776 = vcombine.low %v938, %v940
        %v1777 = vcombine.low %v942, %v944
        %v1778 = vcombine.low %v946, %v948
        %v1779 = vcombine.low %v950, %v952
        %v1781 = vunpack.c.l.s4 1966171168
        %v1782 = vunpack.c.0.s8 %v1781
        %v1783 = vlaneseq
        %v1784 = vshrl.u32 %v1783, 7
        %v1785 = vsub.s32 %v1782, %v1784
        %v1786 = vrot.slane %v1776, %v1785
        %v1788 = vunpack.c.l.s4 1966171168
        %v1789 = vunpack.c.0.s8 %v1788
        %v1790 = vlaneseq
        %v1791 = vshrl.u32 %v1790, 7
        %v1792 = vsub.s32 %v1789, %v1791
        %v1793 = vrot.slane %v1777, %v1792
        %v1795 = vunpack.c.l.s4 1966171168
        %v1796 = vunpack.c.0.s8 %v1795
        %v1797 = vlaneseq
        %v1798 = vshrl.u32 %v1797, 7
        %v1799 = vsub.s32 %v1796, %v1798
        %v1800 = vrot.slane %v1778, %v1799
        %v1802 = vunpack.c.l.s4 1966171168
        %v1803 = vunpack.c.0.s8 %v1802
        %v1804 = vlaneseq
        %v1805 = vshrl.u32 %v1804, 7
        %v1806 = vsub.s32 %v1803, %v1805
        %v1807 = vrot.slane %v1779, %v1806
        %v1808 = vcombine.low %v1786, %v1793
        %v1809 = vcombine.low %v1800, %v1807
        %v1811 = vunpack.c.l.s4 1966171168
        %v1812 = vunpack.c.0.s8 %v1811
        %v1813 = vlaneseq
        %v1814 = vshrl.u32 %v1813, 7
        %v1815 = vsub.s32 %v1812, %v1814
        %v1816 = vrot.slane %v1808, %v1815
        %v1818 = vunpack.c.l.s4 1966171168
        %v1819 = vunpack.c.0.s8 %v1818
        %v1820 = vlaneseq
        %v1821 = vshrl.u32 %v1820, 7
        %v1822 = vsub.s32 %v1819, %v1821
        %v1823 = vrot.slane %v1809, %v1822
        %v1824 = vcombine.low %v1816, %v1823
        %v1833 = vcombine.low %v970, %v972
        %v1834 = vcombine.low %v974, %v976
        %v1835 = vcombine.low %v978, %v980
        %v1836 = vcombine.low %v982, %v984
        %v1838 = vunpack.c.l.s4 1966171168
        %v1839 = vunpack.c.0.s8 %v1838
        %v1840 = vlaneseq
        %v1841 = vshrl.u32 %v1840, 7
        %v1842 = vsub.s32 %v1839, %v1841
        %v1843 = vrot.slane %v1833, %v1842
        %v1845 = vunpack.c.l.s4 1966171168
        %v1846 = vunpack.c.0.s8 %v1845
        %v1847 = vlaneseq
        %v1848 = vshrl.u32 %v1847, 7
        %v1849 = vsub.s32 %v1846, %v1848
        %v1850 = vrot.slane %v1834, %v1849
        %v1852 = vunpack.c.l.s4 1966171168
        %v1853 = vunpack.c.0.s8 %v1852
        %v1854 = vlaneseq
        %v1855 = vshrl.u32 %v1854, 7
        %v1856 = vsub.s32 %v1853, %v1855
        %v1857 = vrot.slane %v1835, %v1856
        %v1859 = vunpack.c.l.s4 1966171168
        %v1860 = vunpack.c.0.s8 %v1859
        %v1861 = vlaneseq
        %v1862 = vshrl.u32 %v1861, 7
        %v1863 = vsub.s32 %v1860, %v1862
        %v1864 = vrot.slane %v1836, %v1863
        %v1865 = vcombine.low %v1843, %v1850
        %v1866 = vcombine.low %v1857, %v1864
        %v1868 = vunpack.c.l.s4 1966171168
        %v1869 = vunpack.c.0.s8 %v1868
        %v1870 = vlaneseq
        %v1871 = vshrl.u32 %v1870, 7
        %v1872 = vsub.s32 %v1869, %v1871
        %v1873 = vrot.slane %v1865, %v1872
        %v1875 = vunpack.c.l.s4 1966171168
        %v1876 = vunpack.c.0.s8 %v1875
        %v1877 = vlaneseq
        %v1878 = vshrl.u32 %v1877, 7
        %v1879 = vsub.s32 %v1876, %v1878
        %v1880 = vrot.slane %v1866, %v1879
        %v1881 = vcombine.low %v1873, %v1880
        %v1883 = vsel %vm1115, %v1824, 0
        %v1886 = vsel %vm1115, %v1881, 0
        %1888 = vmatprep.subr.bf16.mxu0 0
        %1889 = vmatpush1.bf16.xpose.msra.mxu0 %v1886
        %1890 = vmatprep.subr.bf16.mxu0 0
        %1891 = vmatpush1.bf16.xpose.msra.mxu0 0
        %1892 = vmatprep.subr.bf16.mxu0 0
        %1893 = vmatpush1.bf16.xpose.msra.mxu0 0
        %1894 = vmatprep.subr.bf16.mxu0 0
        %1895 = vmatpush1.bf16.xpose.msra.mxu0 0
        %1896 = vmatprep.subr.bf16.mxu0 0
        %1897 = vmatpush1.bf16.xpose.msra.mxu0 0
        %1898 = vmatprep.subr.bf16.mxu0 0
        %1899 = vmatpush1.bf16.xpose.msra.mxu0 0
        %1900 = vmatprep.subr.bf16.mxu0 0
        %1901 = vmatpush1.bf16.xpose.msra.mxu0 0
        %1902 = vmatprep.subr.bf16.mxu0 0
        %1903 = vmatpush1.bf16.xpose.msra.mxu0 0
        %1904 = vmatprep.subr.bf16.mxu0 0
        %1905 = vmatpush1.bf16.xpose.msra.mxu0 0
        %1906 = vmatprep.subr.bf16.mxu0 0
        %1907 = vmatpush1.bf16.xpose.msra.mxu0 0
        %1908 = vmatprep.subr.bf16.mxu0 0
        %1909 = vmatpush1.bf16.xpose.msra.mxu0 0
        %1910 = vmatprep.subr.bf16.mxu0 0
        %1911 = vmatpush1.bf16.xpose.msra.mxu0 0
        %1912 = vmatprep.subr.bf16.mxu0 0
        %1913 = vmatpush1.bf16.xpose.msra.mxu0 0
        %1914 = vmatprep.subr.bf16.mxu0 0
        %1915 = vmatpush1.bf16.xpose.msra.mxu0 0
        %1916 = vmatprep.subr.bf16.mxu0 0
        %1917 = vmatpush1.bf16.xpose.msra.mxu0 0
        %1918 = vmatprep.subr.bf16.mxu0 0
        %1919 = vmatpush1.bf16.xpose.msra.mxu0 0
        %1920 = vmatprep.mubr.bf16.mxu0 0
        %1921 = vmatmul.mubr.bf16.gmra.mrb[0].mxu0 %v1883
        %v1922 = vpop.f32.mrb[0].mxu0
        %v1923 = vadd.f32 0.0, %v1922
        %v1924 = vpop.f32.mrb[0].mxu0
        %v1925 = vpop.f32.mrb[0].mxu0
        %v1926 = vadd.f32 0.0, %v1925
        %v1927 = vpop.f32.mrb[0].mxu0
        %1928 = vdwg.mxu0
        %v1929 = vsel %vm1163, %v1923, -inf
        %1930 = vmax.xlane.f32.xlu0 %v1929
        %v1931 = vpop.xlane.xlu0 %1930
        %v1932 = vsel %vm1163, %v1926, -inf
        %1933 = vmax.xlane.f32.xlu0 %v1932
        %v1934 = vpop.xlane.xlu0 %1933
        %v1935 = vsub.f32 %v1923, %v1931
        %v1936 = vsub.f32 %v1926, %v1934
        %v1937 = vmul.f32 %v1935, 1.442695
        %v1938 = vpow.pop %v1937
        %v1939 = vmul.f32 %v1936, 1.442695
        %v1940 = vpow.pop %v1939
        %v1941 = vsel %vm1163, %v1938, 0.0
        %1942 = vadd.xlane.f32.xlu0 %v1941
        %v1943 = vpop.xlane.xlu0 %1942
        %v1944 = vsel %vm1163, %v1940, 0.0
        %1945 = vadd.xlane.f32.xlu0 %v1944
        %v1946 = vpop.xlane.xlu0 %1945
        %v1947 = vrcp.pop %v1943
        %v1948 = vrcp.pop %v1946
        %v1949 = vmul.f32 %v1943, %v1947
        %v1950 = vmul.f32 %v1946, %v1948
        %v1951 = vsub.f32 2.0, %v1949
        %v1952 = vsub.f32 2.0, %v1950
        %v1953 = vmul.f32 %v1947, %v1951
        %v1954 = vmul.f32 %v1948, %v1952
        %v1955 = vmul.f32 %v1938, %v1953
        %v1956 = vmul.f32 %v1940, %v1954
        %v1957 = vpack.c.bf16 %v1956, %v1955
        %v1966 = vcombine.low %v986, %v988
        %v1967 = vcombine.low %v990, %v992
        %v1968 = vcombine.low %v994, %v996
        %v1969 = vcombine.low %v998, %v1000
        %v1971 = vunpack.c.l.s4 1966171168
        %v1972 = vunpack.c.0.s8 %v1971
        %v1973 = vlaneseq
        %v1974 = vshrl.u32 %v1973, 7
        %v1975 = vsub.s32 %v1972, %v1974
        %v1976 = vrot.slane %v1966, %v1975
        %v1978 = vunpack.c.l.s4 1966171168
        %v1979 = vunpack.c.0.s8 %v1978
        %v1980 = vlaneseq
        %v1981 = vshrl.u32 %v1980, 7
        %v1982 = vsub.s32 %v1979, %v1981
        %v1983 = vrot.slane %v1967, %v1982
        %v1985 = vunpack.c.l.s4 1966171168
        %v1986 = vunpack.c.0.s8 %v1985
        %v1987 = vlaneseq
        %v1988 = vshrl.u32 %v1987, 7
        %v1989 = vsub.s32 %v1986, %v1988
        %v1990 = vrot.slane %v1968, %v1989
        %v1992 = vunpack.c.l.s4 1966171168
        %v1993 = vunpack.c.0.s8 %v1992
        %v1994 = vlaneseq
        %v1995 = vshrl.u32 %v1994, 7
        %v1996 = vsub.s32 %v1993, %v1995
        %v1997 = vrot.slane %v1969, %v1996
        %v1998 = vcombine.low %v1976, %v1983
        %v1999 = vcombine.low %v1990, %v1997
        %v2001 = vunpack.c.l.s4 1966171168
        %v2002 = vunpack.c.0.s8 %v2001
        %v2003 = vlaneseq
        %v2004 = vshrl.u32 %v2003, 7
        %v2005 = vsub.s32 %v2002, %v2004
        %v2006 = vrot.slane %v1998, %v2005
        %v2008 = vunpack.c.l.s4 1966171168
        %v2009 = vunpack.c.0.s8 %v2008
        %v2010 = vlaneseq
        %v2011 = vshrl.u32 %v2010, 7
        %v2012 = vsub.s32 %v2009, %v2011
        %v2013 = vrot.slane %v1999, %v2012
        %v2014 = vcombine.low %v2006, %v2013
        %v2017 = vsel %vm1163, %v1957, 0
        %2019 = vmatprep.subr.bf16.mxu0 0
        %2020 = vmatpush1.bf16.msra.mxu0 %v2014
        %2021 = vmatprep.subr.bf16.mxu0 0
        %2022 = vmatpush1.bf16.msra.mxu0 0
        %2023 = vmatprep.subr.bf16.mxu0 0
        %2024 = vmatpush1.bf16.msra.mxu0 0
        %2025 = vmatprep.subr.bf16.mxu0 0
        %2026 = vmatpush1.bf16.msra.mxu0 0
        %2027 = vmatprep.subr.bf16.mxu0 0
        %2028 = vmatpush1.bf16.msra.mxu0 0
        %2029 = vmatprep.subr.bf16.mxu0 0
        %2030 = vmatpush1.bf16.msra.mxu0 0
        %2031 = vmatprep.subr.bf16.mxu0 0
        %2032 = vmatpush1.bf16.msra.mxu0 0
        %2033 = vmatprep.subr.bf16.mxu0 0
        %2034 = vmatpush1.bf16.msra.mxu0 0
        %2035 = vmatprep.subr.bf16.mxu0 0
        %2036 = vmatpush1.bf16.msra.mxu0 0
        %2037 = vmatprep.subr.bf16.mxu0 0
        %2038 = vmatpush1.bf16.msra.mxu0 0
        %2039 = vmatprep.subr.bf16.mxu0 0
        %2040 = vmatpush1.bf16.msra.mxu0 0
        %2041 = vmatprep.subr.bf16.mxu0 0
        %2042 = vmatpush1.bf16.msra.mxu0 0
        %2043 = vmatprep.subr.bf16.mxu0 0
        %2044 = vmatpush1.bf16.msra.mxu0 0
        %2045 = vmatprep.subr.bf16.mxu0 0
        %2046 = vmatpush1.bf16.msra.mxu0 0
        %2047 = vmatprep.subr.bf16.mxu0 0
        %2048 = vmatpush1.bf16.msra.mxu0 0
        %2049 = vmatprep.subr.bf16.mxu0 0
        %2050 = vmatpush1.bf16.msra.mxu0 0
        %2051 = vmatprep.mubr.bf16.mxu0 0
        %2052 = vmatmul.mubr.bf16.gmra.mrb[0].mxu0 %v2017
        %v2053 = vpop.f32.mrb[0].mxu0
        %v2054 = vadd.f32 0.0, %v2053
        %v2055 = vpop.f32.mrb[0].mxu0
        %v2056 = vpop.f32.mrb[0].mxu0
        %v2057 = vadd.f32 0.0, %v2056
        %v2058 = vpop.f32.mrb[0].mxu0
        %2059 = vdwg.mxu0
        %2060 = vrot.lane.b32.xlu0 %v1824, 120
        %v2061 = vpop.permute.xlu0 %2060
        %2062 = vrot.lane.b32.xlu0 %v1881, 120
        %v2063 = vpop.permute.xlu0 %2062
        %v2065 = vsel %vm1115, %v2061, 0
        %v2068 = vsel %vm1115, %v2063, 0
        %2070 = vmatprep.subr.bf16.mxu0 0
        %2071 = vmatpush1.bf16.xpose.msra.mxu0 %v2068
        %2072 = vmatprep.subr.bf16.mxu0 0
        %2073 = vmatpush1.bf16.xpose.msra.mxu0 0
        %2074 = vmatprep.subr.bf16.mxu0 0
        %2075 = vmatpush1.bf16.xpose.msra.mxu0 0
        %2076 = vmatprep.subr.bf16.mxu0 0
        %2077 = vmatpush1.bf16.xpose.msra.mxu0 0
        %2078 = vmatprep.subr.bf16.mxu0 0
        %2079 = vmatpush1.bf16.xpose.msra.mxu0 0
        %2080 = vmatprep.subr.bf16.mxu0 0
        %2081 = vmatpush1.bf16.xpose.msra.mxu0 0
        %2082 = vmatprep.subr.bf16.mxu0 0
        %2083 = vmatpush1.bf16.xpose.msra.mxu0 0
        %2084 = vmatprep.subr.bf16.mxu0 0
        %2085 = vmatpush1.bf16.xpose.msra.mxu0 0
        %2086 = vmatprep.subr.bf16.mxu0 0
        %2087 = vmatpush1.bf16.xpose.msra.mxu0 0
        %2088 = vmatprep.subr.bf16.mxu0 0
        %2089 = vmatpush1.bf16.xpose.msra.mxu0 0
        %2090 = vmatprep.subr.bf16.mxu0 0
        %2091 = vmatpush1.bf16.xpose.msra.mxu0 0
        %2092 = vmatprep.subr.bf16.mxu0 0
        %2093 = vmatpush1.bf16.xpose.msra.mxu0 0
        %2094 = vmatprep.subr.bf16.mxu0 0
        %2095 = vmatpush1.bf16.xpose.msra.mxu0 0
        %2096 = vmatprep.subr.bf16.mxu0 0
        %2097 = vmatpush1.bf16.xpose.msra.mxu0 0
        %2098 = vmatprep.subr.bf16.mxu0 0
        %2099 = vmatpush1.bf16.xpose.msra.mxu0 0
        %2100 = vmatprep.subr.bf16.mxu0 0
        %2101 = vmatpush1.bf16.xpose.msra.mxu0 0
        %2102 = vmatprep.mubr.bf16.mxu0 0
        %2103 = vmatmul.mubr.bf16.gmra.mrb[0].mxu0 %v2065
        %v2104 = vpop.f32.mrb[0].mxu0
        %v2105 = vadd.f32 0.0, %v2104
        %v2106 = vpop.f32.mrb[0].mxu0
        %v2107 = vpop.f32.mrb[0].mxu0
        %v2108 = vadd.f32 0.0, %v2107
        %v2109 = vpop.f32.mrb[0].mxu0
        %2110 = vdwg.mxu0
        %v2111 = vsel %vm1163, %v2105, -inf
        %2112 = vmax.xlane.f32.xlu0 %v2111
        %v2113 = vpop.xlane.xlu0 %2112
        %v2114 = vsel %vm1163, %v2108, -inf
        %2115 = vmax.xlane.f32.xlu0 %v2114
        %v2116 = vpop.xlane.xlu0 %2115
        %v2117 = vsub.f32 %v2105, %v2113
        %v2118 = vsub.f32 %v2108, %v2116
        %v2119 = vmul.f32 %v2117, 1.442695
        %v2120 = vpow.pop %v2119
        %v2121 = vmul.f32 %v2118, 1.442695
        %v2122 = vpow.pop %v2121
        %v2123 = vsel %vm1163, %v2120, 0.0
        %2124 = vadd.xlane.f32.xlu0 %v2123
        %v2125 = vpop.xlane.xlu0 %2124
        %v2126 = vsel %vm1163, %v2122, 0.0
        %2127 = vadd.xlane.f32.xlu0 %v2126
        %v2128 = vpop.xlane.xlu0 %2127
        %v2129 = vrcp.pop %v2125
        %v2130 = vrcp.pop %v2128
        %v2131 = vmul.f32 %v2125, %v2129
        %v2132 = vmul.f32 %v2128, %v2130
        %v2133 = vsub.f32 2.0, %v2131
        %v2134 = vsub.f32 2.0, %v2132
        %v2135 = vmul.f32 %v2129, %v2133
        %v2136 = vmul.f32 %v2130, %v2134
        %v2137 = vmul.f32 %v2120, %v2135
        %v2138 = vmul.f32 %v2122, %v2136
        %v2139 = vpack.c.bf16 %v2138, %v2137
        %2140 = vrot.lane.b32.xlu0 %v2014, 120
        %v2141 = vpop.permute.xlu0 %2140
        %v2144 = vsel %vm1163, %v2139, 0
        %2146 = vmatprep.subr.bf16.mxu0 0
        %2147 = vmatpush1.bf16.msra.mxu0 %v2141
        %2148 = vmatprep.subr.bf16.mxu0 0
        %2149 = vmatpush1.bf16.msra.mxu0 0
        %2150 = vmatprep.subr.bf16.mxu0 0
        %2151 = vmatpush1.bf16.msra.mxu0 0
        %2152 = vmatprep.subr.bf16.mxu0 0
        %2153 = vmatpush1.bf16.msra.mxu0 0
        %2154 = vmatprep.subr.bf16.mxu0 0
        %2155 = vmatpush1.bf16.msra.mxu0 0
        %2156 = vmatprep.subr.bf16.mxu0 0
        %2157 = vmatpush1.bf16.msra.mxu0 0
        %2158 = vmatprep.subr.bf16.mxu0 0
        %2159 = vmatpush1.bf16.msra.mxu0 0
        %2160 = vmatprep.subr.bf16.mxu0 0
        %2161 = vmatpush1.bf16.msra.mxu0 0
        %2162 = vmatprep.subr.bf16.mxu0 0
        %2163 = vmatpush1.bf16.msra.mxu0 0
        %2164 = vmatprep.subr.bf16.mxu0 0
        %2165 = vmatpush1.bf16.msra.mxu0 0
        %2166 = vmatprep.subr.bf16.mxu0 0
        %2167 = vmatpush1.bf16.msra.mxu0 0
        %2168 = vmatprep.subr.bf16.mxu0 0
        %2169 = vmatpush1.bf16.msra.mxu0 0
        %2170 = vmatprep.subr.bf16.mxu0 0
        %2171 = vmatpush1.bf16.msra.mxu0 0
        %2172 = vmatprep.subr.bf16.mxu0 0
        %2173 = vmatpush1.bf16.msra.mxu0 0
        %2174 = vmatprep.subr.bf16.mxu0 0
        %2175 = vmatpush1.bf16.msra.mxu0 0
        %2176 = vmatprep.subr.bf16.mxu0 0
        %2177 = vmatpush1.bf16.msra.mxu0 0
        %2178 = vmatprep.mubr.bf16.mxu0 0
        %2179 = vmatmul.mubr.bf16.gmra.mrb[0].mxu0 %v2144
        %v2180 = vpop.f32.mrb[0].mxu0
        %v2181 = vadd.f32 0.0, %v2180
        %v2182 = vpop.f32.mrb[0].mxu0
        %v2183 = vpop.f32.mrb[0].mxu0
        %v2184 = vadd.f32 0.0, %v2183
        %v2185 = vpop.f32.mrb[0].mxu0
        %2186 = vdwg.mxu0
        %2187 = vrot.lane.b32.xlu0 %v1824, 112
        %v2188 = vpop.permute.xlu0 %2187
        %2189 = vrot.lane.b32.xlu0 %v1881, 112
        %v2190 = vpop.permute.xlu0 %2189
        %v2192 = vsel %vm1115, %v2188, 0
        %v2195 = vsel %vm1115, %v2190, 0
        %2197 = vmatprep.subr.bf16.mxu0 0
        %2198 = vmatpush1.bf16.xpose.msra.mxu0 %v2195
        %2199 = vmatprep.subr.bf16.mxu0 0
        %2200 = vmatpush1.bf16.xpose.msra.mxu0 0
        %2201 = vmatprep.subr.bf16.mxu0 0
        %2202 = vmatpush1.bf16.xpose.msra.mxu0 0
        %2203 = vmatprep.subr.bf16.mxu0 0
        %2204 = vmatpush1.bf16.xpose.msra.mxu0 0
        %2205 = vmatprep.subr.bf16.mxu0 0
        %2206 = vmatpush1.bf16.xpose.msra.mxu0 0
        %2207 = vmatprep.subr.bf16.mxu0 0
        %2208 = vmatpush1.bf16.xpose.msra.mxu0 0
        %2209 = vmatprep.subr.bf16.mxu0 0
        %2210 = vmatpush1.bf16.xpose.msra.mxu0 0
        %2211 = vmatprep.subr.bf16.mxu0 0
        %2212 = vmatpush1.bf16.xpose.msra.mxu0 0
        %2213 = vmatprep.subr.bf16.mxu0 0
        %2214 = vmatpush1.bf16.xpose.msra.mxu0 0
        %2215 = vmatprep.subr.bf16.mxu0 0
        %2216 = vmatpush1.bf16.xpose.msra.mxu0 0
        %2217 = vmatprep.subr.bf16.mxu0 0
        %2218 = vmatpush1.bf16.xpose.msra.mxu0 0
        %2219 = vmatprep.subr.bf16.mxu0 0
        %2220 = vmatpush1.bf16.xpose.msra.mxu0 0
        %2221 = vmatprep.subr.bf16.mxu0 0
        %2222 = vmatpush1.bf16.xpose.msra.mxu0 0
        %2223 = vmatprep.subr.bf16.mxu0 0
        %2224 = vmatpush1.bf16.xpose.msra.mxu0 0
        %2225 = vmatprep.subr.bf16.mxu0 0
        %2226 = vmatpush1.bf16.xpose.msra.mxu0 0
        %2227 = vmatprep.subr.bf16.mxu0 0
        %2228 = vmatpush1.bf16.xpose.msra.mxu0 0
        %2229 = vmatprep.mubr.bf16.mxu0 0
        %2230 = vmatmul.mubr.bf16.gmra.mrb[0].mxu0 %v2192
        %v2231 = vpop.f32.mrb[0].mxu0
        %v2232 = vadd.f32 0.0, %v2231
        %v2233 = vpop.f32.mrb[0].mxu0
        %v2234 = vpop.f32.mrb[0].mxu0
        %v2235 = vadd.f32 0.0, %v2234
        %v2236 = vpop.f32.mrb[0].mxu0
        %2237 = vdwg.mxu0
        %v2238 = vsel %vm1163, %v2232, -inf
        %2239 = vmax.xlane.f32.xlu0 %v2238
        %v2240 = vpop.xlane.xlu0 %2239
        %v2241 = vsel %vm1163, %v2235, -inf
        %2242 = vmax.xlane.f32.xlu0 %v2241
        %v2243 = vpop.xlane.xlu0 %2242
        %v2244 = vsub.f32 %v2232, %v2240
        %v2245 = vsub.f32 %v2235, %v2243
        %v2246 = vmul.f32 %v2244, 1.442695
        %v2247 = vpow.pop %v2246
        %v2248 = vmul.f32 %v2245, 1.442695
        %v2249 = vpow.pop %v2248
        %v2250 = vsel %vm1163, %v2247, 0.0
        %2251 = vadd.xlane.f32.xlu0 %v2250
        %v2252 = vpop.xlane.xlu0 %2251
        %v2253 = vsel %vm1163, %v2249, 0.0
        %2254 = vadd.xlane.f32.xlu0 %v2253
        %v2255 = vpop.xlane.xlu0 %2254
        %v2256 = vrcp.pop %v2252
        %v2257 = vrcp.pop %v2255
        %v2258 = vmul.f32 %v2252, %v2256
        %v2259 = vmul.f32 %v2255, %v2257
        %v2260 = vsub.f32 2.0, %v2258
        %v2261 = vsub.f32 2.0, %v2259
        %v2262 = vmul.f32 %v2256, %v2260
        %v2263 = vmul.f32 %v2257, %v2261
        %v2264 = vmul.f32 %v2247, %v2262
        %v2265 = vmul.f32 %v2249, %v2263
        %v2266 = vpack.c.bf16 %v2265, %v2264
        %2267 = vrot.lane.b32.xlu0 %v2014, 112
        %v2268 = vpop.permute.xlu0 %2267
        %v2271 = vsel %vm1163, %v2266, 0
        %2273 = vmatprep.subr.bf16.mxu0 0
        %2274 = vmatpush1.bf16.msra.mxu0 %v2268
        %2275 = vmatprep.subr.bf16.mxu0 0
        %2276 = vmatpush1.bf16.msra.mxu0 0
        %2277 = vmatprep.subr.bf16.mxu0 0
        %2278 = vmatpush1.bf16.msra.mxu0 0
        %2279 = vmatprep.subr.bf16.mxu0 0
        %2280 = vmatpush1.bf16.msra.mxu0 0
        %2281 = vmatprep.subr.bf16.mxu0 0
        %2282 = vmatpush1.bf16.msra.mxu0 0
        %2283 = vmatprep.subr.bf16.mxu0 0
        %2284 = vmatpush1.bf16.msra.mxu0 0
        %2285 = vmatprep.subr.bf16.mxu0 0
        %2286 = vmatpush1.bf16.msra.mxu0 0
        %2287 = vmatprep.subr.bf16.mxu0 0
        %2288 = vmatpush1.bf16.msra.mxu0 0
        %2289 = vmatprep.subr.bf16.mxu0 0
        %2290 = vmatpush1.bf16.msra.mxu0 0
        %2291 = vmatprep.subr.bf16.mxu0 0
        %2292 = vmatpush1.bf16.msra.mxu0 0
        %2293 = vmatprep.subr.bf16.mxu0 0
        %2294 = vmatpush1.bf16.msra.mxu0 0
        %2295 = vmatprep.subr.bf16.mxu0 0
        %2296 = vmatpush1.bf16.msra.mxu0 0
        %2297 = vmatprep.subr.bf16.mxu0 0
        %2298 = vmatpush1.bf16.msra.mxu0 0
        %2299 = vmatprep.subr.bf16.mxu0 0
        %2300 = vmatpush1.bf16.msra.mxu0 0
        %2301 = vmatprep.subr.bf16.mxu0 0
        %2302 = vmatpush1.bf16.msra.mxu0 0
        %2303 = vmatprep.subr.bf16.mxu0 0
        %2304 = vmatpush1.bf16.msra.mxu0 0
        %2305 = vmatprep.mubr.bf16.mxu0 0
        %2306 = vmatmul.mubr.bf16.gmra.mrb[0].mxu0 %v2271
        %v2307 = vpop.f32.mrb[0].mxu0
        %v2308 = vadd.f32 0.0, %v2307
        %v2309 = vpop.f32.mrb[0].mxu0
        %v2310 = vpop.f32.mrb[0].mxu0
        %v2311 = vadd.f32 0.0, %v2310
        %v2312 = vpop.f32.mrb[0].mxu0
        %2313 = vdwg.mxu0
        %2314 = vrot.lane.b32.xlu0 %v1824, 104
        %v2315 = vpop.permute.xlu0 %2314
        %2316 = vrot.lane.b32.xlu0 %v1881, 104
        %v2317 = vpop.permute.xlu0 %2316
        %v2319 = vsel %vm1115, %v2315, 0
        %v2322 = vsel %vm1115, %v2317, 0
        %2324 = vmatprep.subr.bf16.mxu0 0
        %2325 = vmatpush1.bf16.xpose.msra.mxu0 %v2322
        %2326 = vmatprep.subr.bf16.mxu0 0
        %2327 = vmatpush1.bf16.xpose.msra.mxu0 0
        %2328 = vmatprep.subr.bf16.mxu0 0
        %2329 = vmatpush1.bf16.xpose.msra.mxu0 0
        %2330 = vmatprep.subr.bf16.mxu0 0
        %2331 = vmatpush1.bf16.xpose.msra.mxu0 0
        %2332 = vmatprep.subr.bf16.mxu0 0
        %2333 = vmatpush1.bf16.xpose.msra.mxu0 0
        %2334 = vmatprep.subr.bf16.mxu0 0
        %2335 = vmatpush1.bf16.xpose.msra.mxu0 0
        %2336 = vmatprep.subr.bf16.mxu0 0
        %2337 = vmatpush1.bf16.xpose.msra.mxu0 0
        %2338 = vmatprep.subr.bf16.mxu0 0
        %2339 = vmatpush1.bf16.xpose.msra.mxu0 0
        %2340 = vmatprep.subr.bf16.mxu0 0
        %2341 = vmatpush1.bf16.xpose.msra.mxu0 0
        %2342 = vmatprep.subr.bf16.mxu0 0
        %2343 = vmatpush1.bf16.xpose.msra.mxu0 0
        %2344 = vmatprep.subr.bf16.mxu0 0
        %2345 = vmatpush1.bf16.xpose.msra.mxu0 0
        %2346 = vmatprep.subr.bf16.mxu0 0
        %2347 = vmatpush1.bf16.xpose.msra.mxu0 0
        %2348 = vmatprep.subr.bf16.mxu0 0
        %2349 = vmatpush1.bf16.xpose.msra.mxu0 0
        %2350 = vmatprep.subr.bf16.mxu0 0
        %2351 = vmatpush1.bf16.xpose.msra.mxu0 0
        %2352 = vmatprep.subr.bf16.mxu0 0
        %2353 = vmatpush1.bf16.xpose.msra.mxu0 0
        %2354 = vmatprep.subr.bf16.mxu0 0
        %2355 = vmatpush1.bf16.xpose.msra.mxu0 0
        %2356 = vmatprep.mubr.bf16.mxu0 0
        %2357 = vmatmul.mubr.bf16.gmra.mrb[0].mxu0 %v2319
        %v2358 = vpop.f32.mrb[0].mxu0
        %v2359 = vadd.f32 0.0, %v2358
        %v2360 = vpop.f32.mrb[0].mxu0
        %v2361 = vpop.f32.mrb[0].mxu0
        %v2362 = vadd.f32 0.0, %v2361
        %v2363 = vpop.f32.mrb[0].mxu0
        %2364 = vdwg.mxu0
        %v2365 = vsel %vm1163, %v2359, -inf
        %2366 = vmax.xlane.f32.xlu0 %v2365
        %v2367 = vpop.xlane.xlu0 %2366
        %v2368 = vsel %vm1163, %v2362, -inf
        %2369 = vmax.xlane.f32.xlu0 %v2368
        %v2370 = vpop.xlane.xlu0 %2369
        %v2371 = vsub.f32 %v2359, %v2367
        %v2372 = vsub.f32 %v2362, %v2370
        %v2373 = vmul.f32 %v2371, 1.442695
        %v2374 = vpow.pop %v2373
        %v2375 = vmul.f32 %v2372, 1.442695
        %v2376 = vpow.pop %v2375
        %v2377 = vsel %vm1163, %v2374, 0.0
        %2378 = vadd.xlane.f32.xlu0 %v2377
        %v2379 = vpop.xlane.xlu0 %2378
        %v2380 = vsel %vm1163, %v2376, 0.0
        %2381 = vadd.xlane.f32.xlu0 %v2380
        %v2382 = vpop.xlane.xlu0 %2381
        %v2383 = vrcp.pop %v2379
        %v2384 = vrcp.pop %v2382
        %v2385 = vmul.f32 %v2379, %v2383
        %v2386 = vmul.f32 %v2382, %v2384
        %v2387 = vsub.f32 2.0, %v2385
        %v2388 = vsub.f32 2.0, %v2386
        %v2389 = vmul.f32 %v2383, %v2387
        %v2390 = vmul.f32 %v2384, %v2388
        %v2391 = vmul.f32 %v2374, %v2389
        %v2392 = vmul.f32 %v2376, %v2390
        %v2393 = vpack.c.bf16 %v2392, %v2391
        %2394 = vrot.lane.b32.xlu0 %v2014, 104
        %v2395 = vpop.permute.xlu0 %2394
        %v2398 = vsel %vm1163, %v2393, 0
        %2400 = vmatprep.subr.bf16.mxu0 0
        %2401 = vmatpush1.bf16.msra.mxu0 %v2395
        %2402 = vmatprep.subr.bf16.mxu0 0
        %2403 = vmatpush1.bf16.msra.mxu0 0
        %2404 = vmatprep.subr.bf16.mxu0 0
        %2405 = vmatpush1.bf16.msra.mxu0 0
        %2406 = vmatprep.subr.bf16.mxu0 0
        %2407 = vmatpush1.bf16.msra.mxu0 0
        %2408 = vmatprep.subr.bf16.mxu0 0
        %2409 = vmatpush1.bf16.msra.mxu0 0
        %2410 = vmatprep.subr.bf16.mxu0 0
        %2411 = vmatpush1.bf16.msra.mxu0 0
        %2412 = vmatprep.subr.bf16.mxu0 0
        %2413 = vmatpush1.bf16.msra.mxu0 0
        %2414 = vmatprep.subr.bf16.mxu0 0
        %2415 = vmatpush1.bf16.msra.mxu0 0
        %2416 = vmatprep.subr.bf16.mxu0 0
        %2417 = vmatpush1.bf16.msra.mxu0 0
        %2418 = vmatprep.subr.bf16.mxu0 0
        %2419 = vmatpush1.bf16.msra.mxu0 0
        %2420 = vmatprep.subr.bf16.mxu0 0
        %2421 = vmatpush1.bf16.msra.mxu0 0
        %2422 = vmatprep.subr.bf16.mxu0 0
        %2423 = vmatpush1.bf16.msra.mxu0 0
        %2424 = vmatprep.subr.bf16.mxu0 0
        %2425 = vmatpush1.bf16.msra.mxu0 0
        %2426 = vmatprep.subr.bf16.mxu0 0
        %2427 = vmatpush1.bf16.msra.mxu0 0
        %2428 = vmatprep.subr.bf16.mxu0 0
        %2429 = vmatpush1.bf16.msra.mxu0 0
        %2430 = vmatprep.subr.bf16.mxu0 0
        %2431 = vmatpush1.bf16.msra.mxu0 0
        %2432 = vmatprep.mubr.bf16.mxu0 0
        %2433 = vmatmul.mubr.bf16.gmra.mrb[0].mxu0 %v2398
        %v2434 = vpop.f32.mrb[0].mxu0
        %v2435 = vadd.f32 0.0, %v2434
        %v2436 = vpop.f32.mrb[0].mxu0
        %v2437 = vpop.f32.mrb[0].mxu0
        %v2438 = vadd.f32 0.0, %v2437
        %v2439 = vpop.f32.mrb[0].mxu0
        %2440 = vdwg.mxu0
        %2443 = vrot.lane.b32.xlu0 %v2181, 8
        %v2444 = vpop.permute.xlu0 %2443
        %2445 = vrot.lane.b32.xlu0 %v2184, 8
        %v2446 = vpop.permute.xlu0 %2445
        %2451 = vrot.lane.b32.xlu0 %v2308, 16
        %v2452 = vpop.permute.xlu0 %2451
        %2453 = vrot.lane.b32.xlu0 %v2311, 16
        %v2454 = vpop.permute.xlu0 %2453
        %2459 = vrot.lane.b32.xlu0 %v2435, 24
        %v2460 = vpop.permute.xlu0 %2459
        %2461 = vrot.lane.b32.xlu0 %v2438, 24
        %v2462 = vpop.permute.xlu0 %2461
        %v2465 = vsel %vm1115, %v2054, %v2444
        %v2466 = vsel %vm1115, %v2057, %v2446
        %v2467 = vsel %vm1163, %v2465, %v2452
        %v2468 = vsel %vm1163, %v2466, %v2454
        %v2469 = vsel %vm1704, %v2467, %v2460
        %v2470 = vsel %vm1704, %v2468, %v2462
        %v2473 = vcombine.high %v2469, %v2469
        %v2475 = vunpack.c.l.s4 1983009808
        %v2476 = vunpack.c.0.s8 %v2475
        %v2477 = vlaneseq
        %v2478 = vshrl.u32 %v2477, 7
        %v2479 = vsub.s32 %v2476, %v2478
        %v2480 = vrot.slane %v2469, %v2479
        %v2482 = vunpack.c.l.s4 1983009808
        %v2483 = vunpack.c.0.s8 %v2482
        %v2484 = vlaneseq
        %v2485 = vshrl.u32 %v2484, 7
        %v2486 = vsub.s32 %v2483, %v2485
        %v2487 = vrot.slane %v2473, %v2486
        %v2488 = vcombine.high %v2480, %v2480
        %v2489 = vcombine.high %v2487, %v2487
        %v2490 = vcombine.high %v2470, %v2470
        %v2492 = vunpack.c.l.s4 1983009808
        %v2493 = vunpack.c.0.s8 %v2492
        %v2494 = vlaneseq
        %v2495 = vshrl.u32 %v2494, 7
        %v2496 = vsub.s32 %v2493, %v2495
        %v2497 = vrot.slane %v2470, %v2496
        %v2499 = vunpack.c.l.s4 1983009808
        %v2500 = vunpack.c.0.s8 %v2499
        %v2501 = vlaneseq
        %v2502 = vshrl.u32 %v2501, 7
        %v2503 = vsub.s32 %v2500, %v2502
        %v2504 = vrot.slane %v2490, %v2503
        %v2505 = vcombine.high %v2497, %v2497
        %v2506 = vcombine.high %v2504, %v2504
        %v2515 = vadd.f32 %v2480, %v890
        %v2516 = vadd.f32 %v2488, %v892
        %v2517 = vadd.f32 %v2487, %v894
        %v2518 = vadd.f32 %v2489, %v896
        %v2519 = vadd.f32 %v2497, %v898
        %v2520 = vadd.f32 %v2505, %v900
        %v2521 = vadd.f32 %v2504, %v902
        %v2522 = vadd.f32 %v2506, %v904
        %s2523 = scalar_lea.vmem %s435, 2 [#allocation10]
        %2524 = vst.msk [vmem:[%s2523] sm:$0x3] %vm1759, %v2515
        %2525 = vst.msk [vmem:[%s2523 + $0x4] sm:$0x3] %vm1759, %v2516
        %2526 = vst.msk [vmem:[%s2523 + $0x8] sm:$0x3] %vm1759, %v2517
        %2527 = vst.msk [vmem:[%s2523 + $0xc] sm:$0x3] %vm1759, %v2518
        %2528 = vst.msk [vmem:[%s2523 + $0x10] sm:$0x3] %vm1759, %v2519
        %2529 = vst.msk [vmem:[%s2523 + $0x14] sm:$0x3] %vm1759, %v2520
        %2530 = vst.msk [vmem:[%s2523 + $0x18] sm:$0x3] %vm1759, %v2521
        %2531 = vst.msk [vmem:[%s2523 + $0x1c] sm:$0x3] %vm1759, %v2522
        %s2532 = sand.u32 %s174, 1
        %s2533 = scalar_lea.sflag [#allocation4], %s2532
        %s2534 = sand.u32 %s174, 1
        %s2535 = smul.addr %s2534, 32
        %s2536 = scalar_lea.vmem [#allocation10], %s2535
        // Predicated region
        $region57: #{tpu_custom_call.1} parent=39 // pred_check
          %p2537 = pneg %p184
        $region58: #{tpu_custom_call.1} parent=39 // pred_check_branch
          %2539 = sbr.rel (%p2537) target = $region60
        $region59: #{tpu_custom_call.1} parent=39 // pred_region
          #allocation18 [shape = 'u32[6]{0}', space=smem, size = 0x18, scoped, tag = 'DMA stride descriptor']
          %s2540 = smul.u32 2, %s31
          %s2542 = ssub.s32 512, 512
          %2543 = vsyncadd %s2533, %s2542
          %s2544 = smul.addr %s30, 32
          %s2545 = sadd.s32 %s2540, %s2544
          %s2546 = smul.addr %s2545, 32
          %s2547 = scalar_lea.hbm %s5, %s2546
          %s2549 = sshll.u32 1, 14
          %s2550 = sxor.u32 4294967295, %s2549
          %s2553 = sshll.u32 7, 18
          %s2554 = sxor.u32 4294967295, %s2553
          %s2555 = sand.u32 0, %s2554
          %s2557 = sor.u32 %s2555, 0
          %s2559 = sshll.u32 3, 24
          %s2560 = sxor.u32 4294967295, %s2559
          %s2561 = sand.u32 %s2557, %s2560
          %s2563 = sor.u32 %s2561, 0
          %s2564 = sshll.u32 %s2536, 4
          %s2565 = int_to_ptr.vmem [resolvable:$true] %s2564
          %2571 = sst [smem:[#allocation18]] 64
          %s2572 = scalar_lea.smem [#allocation18], 1
          %2573 = sst [smem:[%s2572]] 128
          %s2574 = scalar_lea.smem [#allocation18], 2
          %2575 = sst [smem:[%s2574]] 2
          %s2576 = scalar_lea.smem [#allocation18], 3
          %2577 = sst [smem:[%s2576]] 32
          %s2578 = scalar_lea.smem [#allocation18], 4
          %2579 = sst [smem:[%s2578]] 32
          %s2580 = scalar_lea.smem [#allocation18], 5
          %2581 = sst [smem:[%s2580]] 2
          %2583 = dma.general %s2565, 512, %s2547, %s2533, [#allocation17], [#allocation18], %s2563, 0
        $region60: #{tpu_custom_call.1} parent=39 // pred_fallthru
          _
      $region40: #{tpu_custom_call.1} parent=5 // pred_fallthru
        _
      %p2584 = scmp.le.s32.totalorder 2, %s21
      // Predicated region
      $region61: #{tpu_custom_call.1} parent=5 // pred_check
        %p2585 = pneg %p2584
      $region62: #{tpu_custom_call.1} parent=5 // pred_check_branch
        %2587 = sbr.rel (%p2585) target = $region64
      $region63: #{tpu_custom_call.1} parent=5 // pred_region
        %s2588 = ssub.s32 %s21, 2
        // Predicated region
        $region65: #{tpu_custom_call.1} parent=63 // pred_check
          %p2589 = pneg %p190
        $region66: #{tpu_custom_call.1} parent=63 // pred_check_branch
          %2591 = sbr.rel (%p2589) target = $region68
        $region67: #{tpu_custom_call.1} parent=63 // pred_region
          %s2592 = sand.u32 %s175, 1
          %s2593 = scalar_lea.sflag [#allocation4], %s2592
          %s2594 = sand.u32 %s175, 1
          %s2595 = smul.addr %s2594, 32
          %s2596 = scalar_lea.vmem [#allocation10], %s2595
          %2597 = dma.done %s2593, 512
        $region68: #{tpu_custom_call.1} parent=63 // pred_fallthru
          _
      $region64: #{tpu_custom_call.1} parent=5 // pred_fallthru
        _
    $region6: #{tpu_custom_call.1} parent=1 // loop_footer
      %s25 = sadd.s32 1, %s21
    $region7: #{tpu_custom_call.1} parent=1 // loop_footer_branch
      %20 = sbr.rel target = $region3
    $region8: #{tpu_custom_call.1} parent=1 // loop_exit
      _
    %2598 = vsyncpa [#allocation3], 1
    %s2599 = scalar_lea.sflag [#allocation3], 1
    %2600 = vsyncpa %s2599, 1
    %2601 = vsyncpa [#allocation6], 1
    %s2602 = scalar_lea.sflag [#allocation6], 1
    %2603 = vsyncpa %s2602, 1
    %2604 = vsyncpa [#allocation9], 1
    %2605 = vsyncpa [#allocation4], 1
    %s2606 = scalar_lea.sflag [#allocation4], 1
    %2607 = vsyncpa %s2606, 1

</llo_original>
